<compile_context>
chip_gen: v6e
topology: v6e:2x2x1
jax: 0.10.0
libtpu: 0.0.40
codegen_flags: <defaults>
</compile_context>

<pallas_src>
import functools

import jax
import jax.numpy as jnp
from jax import lax
from jax.experimental import pallas as pl
from jax.experimental.pallas import tpu as pltpu


# ---------------------------------------------------------------------------
# Pallas kernel
# ---------------------------------------------------------------------------
def _decoder_kernel(
    emb_ref,        # (T, H)      embedded tokens (+ identity dropout)
    h0_ref,         # (1, H)      initial GRU hidden state (layer 0)
    enc_ref,        # (S, H)      encoder outputs
    w_comb_ref,     # (2H, H)     attn_combine weight (transposed: [ctx; emb])
    b_comb_ref,     # (1, H)
    gru_w_ref,      # (6, H, H)   [ih_r, ih_z, ih_n, hh_r, hh_z, hh_n]
    gru_b_ref,      # (6, H)      [b_ih_r, b_ih_z, b_ih_n, b_hh_r, b_hh_z, b_hh_n]
    w_out_ref,      # (H, O_pad)  output Linear weight, lane-padded to 128
    b_out_ref,      # (1, O_pad)  padded columns hold -1e30
    out_ref,        # (T, O_pad)  log-softmax output (padded)
    h_out_ref,      # (1, H)      final hidden state
    rnn_scr,        # VMEM (T, H) scratch: GRU outputs per step
    *, hidden_size, seq_len,
):
    H = hidden_size
    T = seq_len
    f32 = jnp.float32

    emb = emb_ref[...]                                      # (T, H)
    h0 = h0_ref[...]                                        # (1, H)

    # Attention weights = softmax over a singleton axis == exactly 1.0, so the
    # context vector for every target step is just the sum of encoder outputs.
    ctx = jnp.sum(enc_ref[...], axis=0, keepdims=True)      # (1, H)

    # rnn_input = attn_combine(cat([context, embedded], -1))  -> (T, H)
    rnn_in = (
        jnp.dot(ctx, w_comb_ref[:H, :], preferred_element_type=f32)    # (1, H) bcast
        + jnp.dot(emb, w_comb_ref[H:, :], preferred_element_type=f32)  # (T, H)
        + b_comb_ref[...]
    )

    # Per-gate GRU weights / biases (every gate starts at lane 0).
    w_ir, w_iz, w_in = gru_w_ref[0], gru_w_ref[1], gru_w_ref[2]
    w_hr, w_hz, w_hn = gru_w_ref[3], gru_w_ref[4], gru_w_ref[5]
    gb = gru_b_ref[...]
    b_ir, b_iz, b_in = gb[0:1], gb[1:2], gb[2:3]
    b_hr, b_hz, b_hn = gb[3:4], gb[4:5], gb[5:6]

    # Input-side gate pre-activations for all timesteps at once (stay in vregs).
    gi_r = jnp.dot(rnn_in, w_ir, preferred_element_type=f32) + b_ir    # (T, H)
    gi_z = jnp.dot(rnn_in, w_iz, preferred_element_type=f32) + b_iz
    gi_n = jnp.dot(rnn_in, w_in, preferred_element_type=f32) + b_in

    # GRU recurrence, fully unrolled (T is a small static constant).  Hidden
    # state lives in registers; only the per-step output row hits VMEM.
    h = h0
    for t in range(T):
        gh_r = jnp.dot(h, w_hr, preferred_element_type=f32) + b_hr
        gh_z = jnp.dot(h, w_hz, preferred_element_type=f32) + b_hz
        gh_n = jnp.dot(h, w_hn, preferred_element_type=f32) + b_hn
        r = jax.nn.sigmoid(gi_r[t:t + 1, :] + gh_r)
        z = jax.nn.sigmoid(gi_z[t:t + 1, :] + gh_z)
        n = jnp.tanh(gi_n[t:t + 1, :] + r * gh_n)
        h = (1.0 - z) * n + z * h
        rnn_scr[t:t + 1, :] = h

    # out = LogSoftmax(Linear(rnn_outputs)).  Padded vocab columns carry a
    # -1e30 bias, so exp() underflows to 0 and they don't perturb the softmax.
    logits = (
        jnp.dot(rnn_scr[...], w_out_ref[...], preferred_element_type=f32)
        + b_out_ref[...]
    )                                                       # (T, O_pad)
    m = jnp.max(logits, axis=-1, keepdims=True)
    shifted = logits - m
    lse = jnp.log(jnp.sum(jnp.exp(shifted), axis=-1, keepdims=True))
    out_ref[...] = shifted - lse
    h_out_ref[...] = h


# ---------------------------------------------------------------------------
# Parameters (deterministic, synthetic)
# ---------------------------------------------------------------------------
def init_params(key, hidden_size, output_size):
    H, O = hidden_size, output_size
    ks = jax.random.split(key, 11)

    def uni(k, shape, fan_in):
        b = 1.0 / float(fan_in) ** 0.5
        return jax.random.uniform(k, shape, jnp.float32, minval=-b, maxval=b)

    return dict(
        embedding=jax.random.normal(ks[0], (O, H), jnp.float32),
        # attn params are kept (used by the reference) but — since the softmax
        # over the singleton axis is identically 1 — never reach the kernel.
        w_attn=uni(ks[1], (2 * H, 1), 2 * H),
        b_attn=uni(ks[2], (1, 1), 2 * H),
        w_comb=uni(ks[3], (2 * H, H), 2 * H),
        b_comb=uni(ks[4], (1, H), 2 * H),
        w_ih=uni(ks[5], (H, 3 * H), H),     # gate order [r, z, n]
        b_ih=uni(ks[6], (1, 3 * H), H),
        w_hh=uni(ks[7], (H, 3 * H), H),
        b_hh=uni(ks[8], (1, 3 * H), H),
        w_out=uni(ks[9], (H, O), H),
        b_out=uni(ks[10], (1, O), H),
    )


# ---------------------------------------------------------------------------
# Wrapper (glue: embedding gather, weight packing, pallas_call)
# ---------------------------------------------------------------------------
def bahdanau_decoder_forward(params, x, hidden, encoder_outputs):
    H = params["w_comb"].shape[1]
    O = params["w_out"].shape[1]
    O_pad = max(128, ((O + 127) // 128) * 128)

    x = jnp.asarray(x)
    was_1d = x.ndim <= 1
    T = x.shape[0] if x.ndim == 2 else 1
    idx = x.reshape(T)

    embedded = jnp.take(params["embedding"], idx, axis=0).astype(jnp.float32)  # (T, H)
    # TODO(synk): nn.Dropout(p=0.5) reproduced as eval-mode identity (no RNG dropout in kernel).
    h0 = hidden.reshape(1, H).astype(jnp.float32)
    enc = encoder_outputs.astype(jnp.float32)

    # Per-gate GRU packing: (6, H, H) weights and (6, H) biases, order
    # [ih_r, ih_z, ih_n, hh_r, hh_z, hh_n] -> 2 DMAs for all GRU params.
    def split_gates(w):  # (H, 3H) -> (3, H, H)
        return jnp.stack([w[:, g * H:(g + 1) * H] for g in range(3)], axis=0)

    gru_w = jnp.concatenate(
        [split_gates(params["w_ih"]), split_gates(params["w_hh"])], axis=0)
    gru_b = jnp.concatenate(
        [params["b_ih"].reshape(3, H), params["b_hh"].reshape(3, H)], axis=0)

    # Lane-dense output: pad the vocab dim to a multiple of 128.  Padded bias
    # columns get -1e30 so they vanish under the in-kernel log-softmax.
    w_out_pad = jnp.zeros((H, O_pad), jnp.float32).at[:, :O].set(params["w_out"])
    b_out_pad = jnp.full((1, O_pad), -1e30, jnp.float32).at[:, :O].set(params["b_out"])

    kernel = functools.partial(_decoder_kernel, hidden_size=H, seq_len=T)
    vmem = pl.BlockSpec(memory_space=pltpu.MemorySpace.VMEM)

    out_pad, h_out = pl.pallas_call(
        kernel,
        out_shape=(
            jax.ShapeDtypeStruct((T, O_pad), jnp.float32),
            jax.ShapeDtypeStruct((1, H), jnp.float32),
        ),
        in_specs=[vmem] * 9,
        out_specs=(vmem, vmem),
        scratch_shapes=[pltpu.VMEM((T, H), jnp.float32)],
    )(
        embedded, h0, enc,
        params["w_comb"], params["b_comb"],
        gru_w, gru_b,
        w_out_pad, b_out_pad,
    )

    output = out_pad[:, :O]       # drop lane padding (== output.squeeze(1) in torch)
    if was_1d:
        output = output[0]        # == output.squeeze(0)
    return output, h_out.reshape(1, 1, H)


# ---------------------------------------------------------------------------
# Pure-JAX reference (mirrors the PyTorch forward, incl. the full attention
# math) for correctness check of the dead-code elimination.
# ---------------------------------------------------------------------------
def reference_forward(params, x, hidden, encoder_outputs):
    H = params["w_comb"].shape[1]
    x = jnp.asarray(x)
    T = x.shape[0] if x.ndim == 2 else 1
    idx = x.reshape(T)
    emb = params["embedding"][idx]                                   # (T, H)
    h0 = hidden.reshape(1, H)
    enc = encoder_outputs
    S = enc.shape[0]

    cat = jnp.concatenate(
        [jnp.broadcast_to(h0[None], (T, S, H)),
         jnp.broadcast_to(enc[None], (T, S, H))], axis=-1)
    logits = cat @ params["w_attn"] + params["b_attn"][0]            # (T, S, 1)
    attn_w = jax.nn.softmax(logits, axis=-1)                         # all ones
    context = jnp.swapaxes(attn_w, 1, 2) @ enc                       # (T, 1, H)
    rnn_in = (jnp.concatenate([context, emb[:, None, :]], axis=-1)
              @ params["w_comb"] + params["b_comb"])[:, 0, :]        # (T, H)

    def step(h, x_t):
        gi = x_t[None] @ params["w_ih"] + params["b_ih"]
        gh = h @ params["w_hh"] + params["b_hh"]
        r = jax.nn.sigmoid(gi[:, :H] + gh[:, :H])
        z = jax.nn.sigmoid(gi[:, H:2 * H] + gh[:, H:2 * H])
        n = jnp.tanh(gi[:, 2 * H:] + r * gh[:, 2 * H:])
        h_new = (1.0 - z) * n + z * h
        return h_new, h_new[0]

    h_fin, outs = lax.scan(step, h0, rnn_in)
    out = jax.nn.log_softmax(outs @ params["w_out"] + params["b_out"], axis=-1)
    if x.ndim <= 1:
        out = out[0]
    return out, h_fin.reshape(1, 1, H)


# ---------------------------------------------------------------------------
if __name__ == "__main__":
    hidden_size = 32
    output_size = 24      # vocab size
    T, S = 8, 6           # target / source sequence lengths

    key = jax.random.PRNGKey(0)
    kp, kx, kh, ke = jax.random.split(key, 4)

    params = init_params(kp, hidden_size, output_size)
    x = jax.random.randint(kx, (T, 1), 0, output_size, dtype=jnp.int32)
    hidden = jax.random.normal(kh, (1, 1, hidden_size), jnp.float32)
    encoder_outputs = jax.random.normal(ke, (S, hidden_size), jnp.float32)

    out, h_new = bahdanau_decoder_forward(params, x, hidden, encoder_outputs)
    jax.block_until_ready((out, h_new))

    ref_out, ref_h = reference_forward(params, x, hidden, encoder_outputs)
    assert out.shape == (T, output_size) and h_new.shape == (1, 1, hidden_size)
    assert jnp.allclose(out, ref_out, atol=1e-5, rtol=1e-5), "log-prob mismatch"
    assert jnp.allclose(h_new, ref_h, atol=1e-5, rtol=1e-5), "hidden mismatch"

    print("KERNEL_OK")
</pallas_src>

<mosaic_0001>
module attributes {stable_mosaic.version = 11 : i64} {
  func.func @_decoder_kernel(%arg0: memref<8x32xf32, #tpu.memory_space<vmem>>, %arg1: memref<1x32xf32, #tpu.memory_space<vmem>>, %arg2: memref<6x32xf32, #tpu.memory_space<vmem>>, %arg3: memref<64x32xf32, #tpu.memory_space<vmem>>, %arg4: memref<1x32xf32, #tpu.memory_space<vmem>>, %arg5: memref<6x32x32xf32, #tpu.memory_space<vmem>>, %arg6: memref<6x32xf32, #tpu.memory_space<vmem>>, %arg7: memref<32x128xf32, #tpu.memory_space<vmem>>, %arg8: memref<1x128xf32, #tpu.memory_space<vmem>>, %arg9: memref<8x128xf32, #tpu.memory_space<vmem>>, %arg10: memref<1x32xf32, #tpu.memory_space<vmem>>, %arg11: memref<8x32xf32, #tpu.memory_space<vmem>>) attributes {dimension_semantics = [], scalar_prefetch = 0 : i64, scratch_operands = 1 : i64, tpu.core_type = #tpu.core_type<tc>} {
    %c0 = arith.constant 0 : index
    %c0_0 = arith.constant 0 : index
    %0 = vector.load %arg0[%c0, %c0_0] : memref<8x32xf32, #tpu.memory_space<vmem>>, vector<8x32xf32>
    %c0_1 = arith.constant 0 : index
    %c0_2 = arith.constant 0 : index
    %1 = vector.load %arg1[%c0_1, %c0_2] : memref<1x32xf32, #tpu.memory_space<vmem>>, vector<1x32xf32>
    %c0_3 = arith.constant 0 : index
    %c0_4 = arith.constant 0 : index
    %2 = vector.load %arg2[%c0_3, %c0_4] : memref<6x32xf32, #tpu.memory_space<vmem>>, vector<6x32xf32>
    %cst = arith.constant dense<0.000000e+00> : vector<32xf32>
    %3 = vector.multi_reduction <add>, %2, %cst [0] : vector<6x32xf32> to vector<32xf32>
    %4 = vector.shape_cast %3 : vector<32xf32> to vector<1x32xf32>
    %c0_5 = arith.constant 0 : index
    %c0_6 = arith.constant 0 : index
    %5 = vector.load %arg3[%c0_5, %c0_6] : memref<64x32xf32, #tpu.memory_space<vmem>>, vector<32x32xf32>
    %cst_7 = arith.constant dense<0.000000e+00> : vector<1x32xf32>
    %6 = tpu.matmul %4, %5, %cst_7 {dimension_numbers = #tpu.dot_dimension_numbers<[1], [0], [0], [1], [0, 0, 1, 1], [], []>} : vector<1x32xf32>, vector<32x32xf32>, vector<1x32xf32> -> vector<1x32xf32>
    %c32 = arith.constant 32 : index
    %c0_8 = arith.constant 0 : index
    %7 = vector.load %arg3[%c32, %c0_8] : memref<64x32xf32, #tpu.memory_space<vmem>>, vector<32x32xf32>
    %cst_9 = arith.constant dense<0.000000e+00> : vector<8x32xf32>
    %8 = tpu.matmul %0, %7, %cst_9 {dimension_numbers = #tpu.dot_dimension_numbers<[1], [0], [0], [1], [0, 0, 1, 1], [], []>} : vector<8x32xf32>, vector<32x32xf32>, vector<8x32xf32> -> vector<8x32xf32>
    %9 = vector.broadcast %6 : vector<1x32xf32> to vector<8x32xf32>
    %10 = arith.addf %9, %8 : vector<8x32xf32>
    %c0_10 = arith.constant 0 : index
    %c0_11 = arith.constant 0 : index
    %11 = vector.load %arg4[%c0_10, %c0_11] : memref<1x32xf32, #tpu.memory_space<vmem>>, vector<1x32xf32>
    %12 = vector.broadcast %11 : vector<1x32xf32> to vector<8x32xf32>
    %13 = arith.addf %10, %12 : vector<8x32xf32>
    %c0_12 = arith.constant 0 : index
    %c0_13 = arith.constant 0 : index
    %c0_14 = arith.constant 0 : index
    %14 = vector.load %arg5[%c0_12, %c0_13, %c0_14] : memref<6x32x32xf32, #tpu.memory_space<vmem>>, vector<1x32x32xf32>
    %15 = vector.shape_cast %14 : vector<1x32x32xf32> to vector<32x32xf32>
    %c1 = arith.constant 1 : index
    %c0_15 = arith.constant 0 : index
    %c0_16 = arith.constant 0 : index
    %16 = vector.load %arg5[%c1, %c0_15, %c0_16] : memref<6x32x32xf32, #tpu.memory_space<vmem>>, vector<1x32x32xf32>
    %17 = vector.shape_cast %16 : vector<1x32x32xf32> to vector<32x32xf32>
    %c2 = arith.constant 2 : index
    %c0_17 = arith.constant 0 : index
    %c0_18 = arith.constant 0 : index
    %18 = vector.load %arg5[%c2, %c0_17, %c0_18] : memref<6x32x32xf32, #tpu.memory_space<vmem>>, vector<1x32x32xf32>
    %19 = vector.shape_cast %18 : vector<1x32x32xf32> to vector<32x32xf32>
    %c3 = arith.constant 3 : index
    %c0_19 = arith.constant 0 : index
    %c0_20 = arith.constant 0 : index
    %20 = vector.load %arg5[%c3, %c0_19, %c0_20] : memref<6x32x32xf32, #tpu.memory_space<vmem>>, vector<1x32x32xf32>
    %21 = vector.shape_cast %20 : vector<1x32x32xf32> to vector<32x32xf32>
    %c4 = arith.constant 4 : index
    %c0_21 = arith.constant 0 : index
    %c0_22 = arith.constant 0 : index
    %22 = vector.load %arg5[%c4, %c0_21, %c0_22] : memref<6x32x32xf32, #tpu.memory_space<vmem>>, vector<1x32x32xf32>
    %23 = vector.shape_cast %22 : vector<1x32x32xf32> to vector<32x32xf32>
    %c5 = arith.constant 5 : index
    %c0_23 = arith.constant 0 : index
    %c0_24 = arith.constant 0 : index
    %24 = vector.load %arg5[%c5, %c0_23, %c0_24] : memref<6x32x32xf32, #tpu.memory_space<vmem>>, vector<1x32x32xf32>
    %25 = vector.shape_cast %24 : vector<1x32x32xf32> to vector<32x32xf32>
    %c0_25 = arith.constant 0 : index
    %c0_26 = arith.constant 0 : index
    %26 = vector.load %arg6[%c0_25, %c0_26] : memref<6x32xf32, #tpu.memory_space<vmem>>, vector<6x32xf32>
    %27 = vector.extract_strided_slice %26 {offsets = [0, 0], sizes = [1, 32], strides = [1, 1]} : vector<6x32xf32> to vector<1x32xf32>
    %28 = vector.extract_strided_slice %26 {offsets = [1, 0], sizes = [1, 32], strides = [1, 1]} : vector<6x32xf32> to vector<1x32xf32>
    %29 = vector.extract_strided_slice %26 {offsets = [2, 0], sizes = [1, 32], strides = [1, 1]} : vector<6x32xf32> to vector<1x32xf32>
    %30 = vector.extract_strided_slice %26 {offsets = [3, 0], sizes = [1, 32], strides = [1, 1]} : vector<6x32xf32> to vector<1x32xf32>
    %31 = vector.extract_strided_slice %26 {offsets = [4, 0], sizes = [1, 32], strides = [1, 1]} : vector<6x32xf32> to vector<1x32xf32>
    %32 = vector.extract_strided_slice %26 {offsets = [5, 0], sizes = [1, 32], strides = [1, 1]} : vector<6x32xf32> to vector<1x32xf32>
    %cst_27 = arith.constant dense<0.000000e+00> : vector<8x32xf32>
    %33 = tpu.matmul %13, %15, %cst_27 {dimension_numbers = #tpu.dot_dimension_numbers<[1], [0], [0], [1], [0, 0, 1, 1], [], []>} : vector<8x32xf32>, vector<32x32xf32>, vector<8x32xf32> -> vector<8x32xf32>
    %34 = vector.broadcast %27 : vector<1x32xf32> to vector<8x32xf32>
    %35 = arith.addf %33, %34 : vector<8x32xf32>
    %cst_28 = arith.constant dense<0.000000e+00> : vector<8x32xf32>
    %36 = tpu.matmul %13, %17, %cst_28 {dimension_numbers = #tpu.dot_dimension_numbers<[1], [0], [0], [1], [0, 0, 1, 1], [], []>} : vector<8x32xf32>, vector<32x32xf32>, vector<8x32xf32> -> vector<8x32xf32>
    %37 = vector.broadcast %28 : vector<1x32xf32> to vector<8x32xf32>
    %38 = arith.addf %36, %37 : vector<8x32xf32>
    %cst_29 = arith.constant dense<0.000000e+00> : vector<8x32xf32>
    %39 = tpu.matmul %13, %19, %cst_29 {dimension_numbers = #tpu.dot_dimension_numbers<[1], [0], [0], [1], [0, 0, 1, 1], [], []>} : vector<8x32xf32>, vector<32x32xf32>, vector<8x32xf32> -> vector<8x32xf32>
    %40 = vector.broadcast %29 : vector<1x32xf32> to vector<8x32xf32>
    %41 = arith.addf %39, %40 : vector<8x32xf32>
    %cst_30 = arith.constant dense<0.000000e+00> : vector<1x32xf32>
    %42 = tpu.matmul %1, %21, %cst_30 {dimension_numbers = #tpu.dot_dimension_numbers<[1], [0], [0], [1], [0, 0, 1, 1], [], []>} : vector<1x32xf32>, vector<32x32xf32>, vector<1x32xf32> -> vector<1x32xf32>
    %43 = arith.addf %42, %30 : vector<1x32xf32>
    %cst_31 = arith.constant dense<0.000000e+00> : vector<1x32xf32>
    %44 = tpu.matmul %1, %23, %cst_31 {dimension_numbers = #tpu.dot_dimension_numbers<[1], [0], [0], [1], [0, 0, 1, 1], [], []>} : vector<1x32xf32>, vector<32x32xf32>, vector<1x32xf32> -> vector<1x32xf32>
    %45 = arith.addf %44, %31 : vector<1x32xf32>
    %cst_32 = arith.constant dense<0.000000e+00> : vector<1x32xf32>
    %46 = tpu.matmul %1, %25, %cst_32 {dimension_numbers = #tpu.dot_dimension_numbers<[1], [0], [0], [1], [0, 0, 1, 1], [], []>} : vector<1x32xf32>, vector<32x32xf32>, vector<1x32xf32> -> vector<1x32xf32>
    %47 = arith.addf %46, %32 : vector<1x32xf32>
    %48 = vector.extract_strided_slice %35 {offsets = [0, 0], sizes = [1, 32], strides = [1, 1]} : vector<8x32xf32> to vector<1x32xf32>
    %49 = arith.addf %48, %43 : vector<1x32xf32>
    %50 = arith.negf %49 : vector<1x32xf32>
    %51 = math.exp %50 : vector<1x32xf32>
    %cst_33 = arith.constant 1.000000e+00 : f32
    %52 = vector.broadcast %cst_33 : f32 to vector<1x32xf32>
    %53 = arith.addf %52, %51 : vector<1x32xf32>
    %54 = arith.divf %52, %53 : vector<1x32xf32>
    %55 = vector.extract_strided_slice %38 {offsets = [0, 0], sizes = [1, 32], strides = [1, 1]} : vector<8x32xf32> to vector<1x32xf32>
    %56 = arith.addf %55, %45 : vector<1x32xf32>
    %57 = arith.negf %56 : vector<1x32xf32>
    %58 = math.exp %57 : vector<1x32xf32>
    %cst_34 = arith.constant 1.000000e+00 : f32
    %59 = vector.broadcast %cst_34 : f32 to vector<1x32xf32>
    %60 = arith.addf %59, %58 : vector<1x32xf32>
    %61 = arith.divf %59, %60 : vector<1x32xf32>
    %62 = vector.extract_strided_slice %41 {offsets = [0, 0], sizes = [1, 32], strides = [1, 1]} : vector<8x32xf32> to vector<1x32xf32>
    %63 = arith.mulf %54, %47 : vector<1x32xf32>
    %64 = arith.addf %62, %63 : vector<1x32xf32>
    %65 = math.tanh %64 : vector<1x32xf32>
    %cst_35 = arith.constant 1.000000e+00 : f32
    %66 = vector.broadcast %cst_35 : f32 to vector<1x32xf32>
    %67 = arith.subf %66, %61 : vector<1x32xf32>
    %68 = arith.mulf %67, %65 : vector<1x32xf32>
    %69 = arith.mulf %61, %1 : vector<1x32xf32>
    %70 = arith.addf %68, %69 : vector<1x32xf32>
    %c0_36 = arith.constant 0 : index
    %c0_37 = arith.constant 0 : index
    %71 = vector.load %arg11[%c0_36, %c0_37] : memref<8x32xf32, #tpu.memory_space<vmem>>, vector<1x32xf32>
    tpu.vector_store %arg11[%c0_36, %c0_37], %70 {strides = array<i32>} : memref<8x32xf32, #tpu.memory_space<vmem>>, vector<1x32xf32>,
    %cst_38 = arith.constant dense<0.000000e+00> : vector<1x32xf32>
    %72 = tpu.matmul %70, %21, %cst_38 {dimension_numbers = #tpu.dot_dimension_numbers<[1], [0], [0], [1], [0, 0, 1, 1], [], []>} : vector<1x32xf32>, vector<32x32xf32>, vector<1x32xf32> -> vector<1x32xf32>
    %73 = arith.addf %72, %30 : vector<1x32xf32>
    %cst_39 = arith.constant dense<0.000000e+00> : vector<1x32xf32>
    %74 = tpu.matmul %70, %23, %cst_39 {dimension_numbers = #tpu.dot_dimension_numbers<[1], [0], [0], [1], [0, 0, 1, 1], [], []>} : vector<1x32xf32>, vector<32x32xf32>, vector<1x32xf32> -> vector<1x32xf32>
    %75 = arith.addf %74, %31 : vector<1x32xf32>
    %cst_40 = arith.constant dense<0.000000e+00> : vector<1x32xf32>
    %76 = tpu.matmul %70, %25, %cst_40 {dimension_numbers = #tpu.dot_dimension_numbers<[1], [0], [0], [1], [0, 0, 1, 1], [], []>} : vector<1x32xf32>, vector<32x32xf32>, vector<1x32xf32> -> vector<1x32xf32>
    %77 = arith.addf %76, %32 : vector<1x32xf32>
    %78 = vector.extract_strided_slice %35 {offsets = [1, 0], sizes = [1, 32], strides = [1, 1]} : vector<8x32xf32> to vector<1x32xf32>
    %79 = arith.addf %78, %73 : vector<1x32xf32>
    %80 = arith.negf %79 : vector<1x32xf32>
    %81 = math.exp %80 : vector<1x32xf32>
    %cst_41 = arith.constant 1.000000e+00 : f32
    %82 = vector.broadcast %cst_41 : f32 to vector<1x32xf32>
    %83 = arith.addf %82, %81 : vector<1x32xf32>
    %84 = arith.divf %82, %83 : vector<1x32xf32>
    %85 = vector.extract_strided_slice %38 {offsets = [1, 0], sizes = [1, 32], strides = [1, 1]} : vector<8x32xf32> to vector<1x32xf32>
    %86 = arith.addf %85, %75 : vector<1x32xf32>
    %87 = arith.negf %86 : vector<1x32xf32>
    %88 = math.exp %87 : vector<1x32xf32>
    %cst_42 = arith.constant 1.000000e+00 : f32
    %89 = vector.broadcast %cst_42 : f32 to vector<1x32xf32>
    %90 = arith.addf %89, %88 : vector<1x32xf32>
    %91 = arith.divf %89, %90 : vector<1x32xf32>
    %92 = vector.extract_strided_slice %41 {offsets = [1, 0], sizes = [1, 32], strides = [1, 1]} : vector<8x32xf32> to vector<1x32xf32>
    %93 = arith.mulf %84, %77 : vector<1x32xf32>
    %94 = arith.addf %92, %93 : vector<1x32xf32>
    %95 = math.tanh %94 : vector<1x32xf32>
    %cst_43 = arith.constant 1.000000e+00 : f32
    %96 = vector.broadcast %cst_43 : f32 to vector<1x32xf32>
    %97 = arith.subf %96, %91 : vector<1x32xf32>
    %98 = arith.mulf %97, %95 : vector<1x32xf32>
    %99 = arith.mulf %91, %70 : vector<1x32xf32>
    %100 = arith.addf %98, %99 : vector<1x32xf32>
    %c1_44 = arith.constant 1 : index
    %c0_45 = arith.constant 0 : index
    %101 = vector.load %arg11[%c1_44, %c0_45] : memref<8x32xf32, #tpu.memory_space<vmem>>, vector<1x32xf32>
    tpu.vector_store %arg11[%c1_44, %c0_45], %100 {strides = array<i32>} : memref<8x32xf32, #tpu.memory_space<vmem>>, vector<1x32xf32>,
    %cst_46 = arith.constant dense<0.000000e+00> : vector<1x32xf32>
    %102 = tpu.matmul %100, %21, %cst_46 {dimension_numbers = #tpu.dot_dimension_numbers<[1], [0], [0], [1], [0, 0, 1, 1], [], []>} : vector<1x32xf32>, vector<32x32xf32>, vector<1x32xf32> -> vector<1x32xf32>
    %103 = arith.addf %102, %30 : vector<1x32xf32>
    %cst_47 = arith.constant dense<0.000000e+00> : vector<1x32xf32>
    %104 = tpu.matmul %100, %23, %cst_47 {dimension_numbers = #tpu.dot_dimension_numbers<[1], [0], [0], [1], [0, 0, 1, 1], [], []>} : vector<1x32xf32>, vector<32x32xf32>, vector<1x32xf32> -> vector<1x32xf32>
    %105 = arith.addf %104, %31 : vector<1x32xf32>
    %cst_48 = arith.constant dense<0.000000e+00> : vector<1x32xf32>
    %106 = tpu.matmul %100, %25, %cst_48 {dimension_numbers = #tpu.dot_dimension_numbers<[1], [0], [0], [1], [0, 0, 1, 1], [], []>} : vector<1x32xf32>, vector<32x32xf32>, vector<1x32xf32> -> vector<1x32xf32>
    %107 = arith.addf %106, %32 : vector<1x32xf32>
    %108 = vector.extract_strided_slice %35 {offsets = [2, 0], sizes = [1, 32], strides = [1, 1]} : vector<8x32xf32> to vector<1x32xf32>
    %109 = arith.addf %108, %103 : vector<1x32xf32>
    %110 = arith.negf %109 : vector<1x32xf32>
    %111 = math.exp %110 : vector<1x32xf32>
    %cst_49 = arith.constant 1.000000e+00 : f32
    %112 = vector.broadcast %cst_49 : f32 to vector<1x32xf32>
    %113 = arith.addf %112, %111 : vector<1x32xf32>
    %114 = arith.divf %112, %113 : vector<1x32xf32>
    %115 = vector.extract_strided_slice %38 {offsets = [2, 0], sizes = [1, 32], strides = [1, 1]} : vector<8x32xf32> to vector<1x32xf32>
    %116 = arith.addf %115, %105 : vector<1x32xf32>
    %117 = arith.negf %116 : vector<1x32xf32>
    %118 = math.exp %117 : vector<1x32xf32>
    %cst_50 = arith.constant 1.000000e+00 : f32
    %119 = vector.broadcast %cst_50 : f32 to vector<1x32xf32>
    %120 = arith.addf %119, %118 : vector<1x32xf32>
    %121 = arith.divf %119, %120 : vector<1x32xf32>
    %122 = vector.extract_strided_slice %41 {offsets = [2, 0], sizes = [1, 32], strides = [1, 1]} : vector<8x32xf32> to vector<1x32xf32>
    %123 = arith.mulf %114, %107 : vector<1x32xf32>
    %124 = arith.addf %122, %123 : vector<1x32xf32>
    %125 = math.tanh %124 : vector<1x32xf32>
    %cst_51 = arith.constant 1.000000e+00 : f32
    %126 = vector.broadcast %cst_51 : f32 to vector<1x32xf32>
    %127 = arith.subf %126, %121 : vector<1x32xf32>
    %128 = arith.mulf %127, %125 : vector<1x32xf32>
    %129 = arith.mulf %121, %100 : vector<1x32xf32>
    %130 = arith.addf %128, %129 : vector<1x32xf32>
    %c2_52 = arith.constant 2 : index
    %c0_53 = arith.constant 0 : index
    %131 = vector.load %arg11[%c2_52, %c0_53] : memref<8x32xf32, #tpu.memory_space<vmem>>, vector<1x32xf32>
    tpu.vector_store %arg11[%c2_52, %c0_53], %130 {strides = array<i32>} : memref<8x32xf32, #tpu.memory_space<vmem>>, vector<1x32xf32>,
    %cst_54 = arith.constant dense<0.000000e+00> : vector<1x32xf32>
    %132 = tpu.matmul %130, %21, %cst_54 {dimension_numbers = #tpu.dot_dimension_numbers<[1], [0], [0], [1], [0, 0, 1, 1], [], []>} : vector<1x32xf32>, vector<32x32xf32>, vector<1x32xf32> -> vector<1x32xf32>
    %133 = arith.addf %132, %30 : vector<1x32xf32>
    %cst_55 = arith.constant dense<0.000000e+00> : vector<1x32xf32>
    %134 = tpu.matmul %130, %23, %cst_55 {dimension_numbers = #tpu.dot_dimension_numbers<[1], [0], [0], [1], [0, 0, 1, 1], [], []>} : vector<1x32xf32>, vector<32x32xf32>, vector<1x32xf32> -> vector<1x32xf32>
    %135 = arith.addf %134, %31 : vector<1x32xf32>
    %cst_56 = arith.constant dense<0.000000e+00> : vector<1x32xf32>
    %136 = tpu.matmul %130, %25, %cst_56 {dimension_numbers = #tpu.dot_dimension_numbers<[1], [0], [0], [1], [0, 0, 1, 1], [], []>} : vector<1x32xf32>, vector<32x32xf32>, vector<1x32xf32> -> vector<1x32xf32>
    %137 = arith.addf %136, %32 : vector<1x32xf32>
    %138 = vector.extract_strided_slice %35 {offsets = [3, 0], sizes = [1, 32], strides = [1, 1]} : vector<8x32xf32> to vector<1x32xf32>
    %139 = arith.addf %138, %133 : vector<1x32xf32>
    %140 = arith.negf %139 : vector<1x32xf32>
    %141 = math.exp %140 : vector<1x32xf32>
    %cst_57 = arith.constant 1.000000e+00 : f32
    %142 = vector.broadcast %cst_57 : f32 to vector<1x32xf32>
    %143 = arith.addf %142, %141 : vector<1x32xf32>
    %144 = arith.divf %142, %143 : vector<1x32xf32>
    %145 = vector.extract_strided_slice %38 {offsets = [3, 0], sizes = [1, 32], strides = [1, 1]} : vector<8x32xf32> to vector<1x32xf32>
    %146 = arith.addf %145, %135 : vector<1x32xf32>
    %147 = arith.negf %146 : vector<1x32xf32>
    %148 = math.exp %147 : vector<1x32xf32>
    %cst_58 = arith.constant 1.000000e+00 : f32
    %149 = vector.broadcast %cst_58 : f32 to vector<1x32xf32>
    %150 = arith.addf %149, %148 : vector<1x32xf32>
    %151 = arith.divf %149, %150 : vector<1x32xf32>
    %152 = vector.extract_strided_slice %41 {offsets = [3, 0], sizes = [1, 32], strides = [1, 1]} : vector<8x32xf32> to vector<1x32xf32>
    %153 = arith.mulf %144, %137 : vector<1x32xf32>
    %154 = arith.addf %152, %153 : vector<1x32xf32>
    %155 = math.tanh %154 : vector<1x32xf32>
    %cst_59 = arith.constant 1.000000e+00 : f32
    %156 = vector.broadcast %cst_59 : f32 to vector<1x32xf32>
    %157 = arith.subf %156, %151 : vector<1x32xf32>
    %158 = arith.mulf %157, %155 : vector<1x32xf32>
    %159 = arith.mulf %151, %130 : vector<1x32xf32>
    %160 = arith.addf %158, %159 : vector<1x32xf32>
    %c3_60 = arith.constant 3 : index
    %c0_61 = arith.constant 0 : index
    %161 = vector.load %arg11[%c3_60, %c0_61] : memref<8x32xf32, #tpu.memory_space<vmem>>, vector<1x32xf32>
    tpu.vector_store %arg11[%c3_60, %c0_61], %160 {strides = array<i32>} : memref<8x32xf32, #tpu.memory_space<vmem>>, vector<1x32xf32>,
    %cst_62 = arith.constant dense<0.000000e+00> : vector<1x32xf32>
    %162 = tpu.matmul %160, %21, %cst_62 {dimension_numbers = #tpu.dot_dimension_numbers<[1], [0], [0], [1], [0, 0, 1, 1], [], []>} : vector<1x32xf32>, vector<32x32xf32>, vector<1x32xf32> -> vector<1x32xf32>
    %163 = arith.addf %162, %30 : vector<1x32xf32>
    %cst_63 = arith.constant dense<0.000000e+00> : vector<1x32xf32>
    %164 = tpu.matmul %160, %23, %cst_63 {dimension_numbers = #tpu.dot_dimension_numbers<[1], [0], [0], [1], [0, 0, 1, 1], [], []>} : vector<1x32xf32>, vector<32x32xf32>, vector<1x32xf32> -> vector<1x32xf32>
    %165 = arith.addf %164, %31 : vector<1x32xf32>
    %cst_64 = arith.constant dense<0.000000e+00> : vector<1x32xf32>
    %166 = tpu.matmul %160, %25, %cst_64 {dimension_numbers = #tpu.dot_dimension_numbers<[1], [0], [0], [1], [0, 0, 1, 1], [], []>} : vector<1x32xf32>, vector<32x32xf32>, vector<1x32xf32> -> vector<1x32xf32>
    %167 = arith.addf %166, %32 : vector<1x32xf32>
    %168 = vector.extract_strided_slice %35 {offsets = [4, 0], sizes = [1, 32], strides = [1, 1]} : vector<8x32xf32> to vector<1x32xf32>
    %169 = arith.addf %168, %163 : vector<1x32xf32>
    %170 = arith.negf %169 : vector<1x32xf32>
    %171 = math.exp %170 : vector<1x32xf32>
    %cst_65 = arith.constant 1.000000e+00 : f32
    %172 = vector.broadcast %cst_65 : f32 to vector<1x32xf32>
    %173 = arith.addf %172, %171 : vector<1x32xf32>
    %174 = arith.divf %172, %173 : vector<1x32xf32>
    %175 = vector.extract_strided_slice %38 {offsets = [4, 0], sizes = [1, 32], strides = [1, 1]} : vector<8x32xf32> to vector<1x32xf32>
    %176 = arith.addf %175, %165 : vector<1x32xf32>
    %177 = arith.negf %176 : vector<1x32xf32>
    %178 = math.exp %177 : vector<1x32xf32>
    %cst_66 = arith.constant 1.000000e+00 : f32
    %179 = vector.broadcast %cst_66 : f32 to vector<1x32xf32>
    %180 = arith.addf %179, %178 : vector<1x32xf32>
    %181 = arith.divf %179, %180 : vector<1x32xf32>
    %182 = vector.extract_strided_slice %41 {offsets = [4, 0], sizes = [1, 32], strides = [1, 1]} : vector<8x32xf32> to vector<1x32xf32>
    %183 = arith.mulf %174, %167 : vector<1x32xf32>
    %184 = arith.addf %182, %183 : vector<1x32xf32>
    %185 = math.tanh %184 : vector<1x32xf32>
    %cst_67 = arith.constant 1.000000e+00 : f32
    %186 = vector.broadcast %cst_67 : f32 to vector<1x32xf32>
    %187 = arith.subf %186, %181 : vector<1x32xf32>
    %188 = arith.mulf %187, %185 : vector<1x32xf32>
    %189 = arith.mulf %181, %160 : vector<1x32xf32>
    %190 = arith.addf %188, %189 : vector<1x32xf32>
    %c4_68 = arith.constant 4 : index
    %c0_69 = arith.constant 0 : index
    %191 = vector.load %arg11[%c4_68, %c0_69] : memref<8x32xf32, #tpu.memory_space<vmem>>, vector<1x32xf32>
    tpu.vector_store %arg11[%c4_68, %c0_69], %190 {strides = array<i32>} : memref<8x32xf32, #tpu.memory_space<vmem>>, vector<1x32xf32>,
    %cst_70 = arith.constant dense<0.000000e+00> : vector<1x32xf32>
    %192 = tpu.matmul %190, %21, %cst_70 {dimension_numbers = #tpu.dot_dimension_numbers<[1], [0], [0], [1], [0, 0, 1, 1], [], []>} : vector<1x32xf32>, vector<32x32xf32>, vector<1x32xf32> -> vector<1x32xf32>
    %193 = arith.addf %192, %30 : vector<1x32xf32>
    %cst_71 = arith.constant dense<0.000000e+00> : vector<1x32xf32>
    %194 = tpu.matmul %190, %23, %cst_71 {dimension_numbers = #tpu.dot_dimension_numbers<[1], [0], [0], [1], [0, 0, 1, 1], [], []>} : vector<1x32xf32>, vector<32x32xf32>, vector<1x32xf32> -> vector<1x32xf32>
    %195 = arith.addf %194, %31 : vector<1x32xf32>
    %cst_72 = arith.constant dense<0.000000e+00> : vector<1x32xf32>
    %196 = tpu.matmul %190, %25, %cst_72 {dimension_numbers = #tpu.dot_dimension_numbers<[1], [0], [0], [1], [0, 0, 1, 1], [], []>} : vector<1x32xf32>, vector<32x32xf32>, vector<1x32xf32> -> vector<1x32xf32>
    %197 = arith.addf %196, %32 : vector<1x32xf32>
    %198 = vector.extract_strided_slice %35 {offsets = [5, 0], sizes = [1, 32], strides = [1, 1]} : vector<8x32xf32> to vector<1x32xf32>
    %199 = arith.addf %198, %193 : vector<1x32xf32>
    %200 = arith.negf %199 : vector<1x32xf32>
    %201 = math.exp %200 : vector<1x32xf32>
    %cst_73 = arith.constant 1.000000e+00 : f32
    %202 = vector.broadcast %cst_73 : f32 to vector<1x32xf32>
    %203 = arith.addf %202, %201 : vector<1x32xf32>
    %204 = arith.divf %202, %203 : vector<1x32xf32>
    %205 = vector.extract_strided_slice %38 {offsets = [5, 0], sizes = [1, 32], strides = [1, 1]} : vector<8x32xf32> to vector<1x32xf32>
    %206 = arith.addf %205, %195 : vector<1x32xf32>
    %207 = arith.negf %206 : vector<1x32xf32>
    %208 = math.exp %207 : vector<1x32xf32>
    %cst_74 = arith.constant 1.000000e+00 : f32
    %209 = vector.broadcast %cst_74 : f32 to vector<1x32xf32>
    %210 = arith.addf %209, %208 : vector<1x32xf32>
    %211 = arith.divf %209, %210 : vector<1x32xf32>
    %212 = vector.extract_strided_slice %41 {offsets = [5, 0], sizes = [1, 32], strides = [1, 1]} : vector<8x32xf32> to vector<1x32xf32>
    %213 = arith.mulf %204, %197 : vector<1x32xf32>
    %214 = arith.addf %212, %213 : vector<1x32xf32>
    %215 = math.tanh %214 : vector<1x32xf32>
    %cst_75 = arith.constant 1.000000e+00 : f32
    %216 = vector.broadcast %cst_75 : f32 to vector<1x32xf32>
    %217 = arith.subf %216, %211 : vector<1x32xf32>
    %218 = arith.mulf %217, %215 : vector<1x32xf32>
    %219 = arith.mulf %211, %190 : vector<1x32xf32>
    %220 = arith.addf %218, %219 : vector<1x32xf32>
    %c5_76 = arith.constant 5 : index
    %c0_77 = arith.constant 0 : index
    %221 = vector.load %arg11[%c5_76, %c0_77] : memref<8x32xf32, #tpu.memory_space<vmem>>, vector<1x32xf32>
    tpu.vector_store %arg11[%c5_76, %c0_77], %220 {strides = array<i32>} : memref<8x32xf32, #tpu.memory_space<vmem>>, vector<1x32xf32>,
    %cst_78 = arith.constant dense<0.000000e+00> : vector<1x32xf32>
    %222 = tpu.matmul %220, %21, %cst_78 {dimension_numbers = #tpu.dot_dimension_numbers<[1], [0], [0], [1], [0, 0, 1, 1], [], []>} : vector<1x32xf32>, vector<32x32xf32>, vector<1x32xf32> -> vector<1x32xf32>
    %223 = arith.addf %222, %30 : vector<1x32xf32>
    %cst_79 = arith.constant dense<0.000000e+00> : vector<1x32xf32>
    %224 = tpu.matmul %220, %23, %cst_79 {dimension_numbers = #tpu.dot_dimension_numbers<[1], [0], [0], [1], [0, 0, 1, 1], [], []>} : vector<1x32xf32>, vector<32x32xf32>, vector<1x32xf32> -> vector<1x32xf32>
    %225 = arith.addf %224, %31 : vector<1x32xf32>
    %cst_80 = arith.constant dense<0.000000e+00> : vector<1x32xf32>
    %226 = tpu.matmul %220, %25, %cst_80 {dimension_numbers = #tpu.dot_dimension_numbers<[1], [0], [0], [1], [0, 0, 1, 1], [], []>} : vector<1x32xf32>, vector<32x32xf32>, vector<1x32xf32> -> vector<1x32xf32>
    %227 = arith.addf %226, %32 : vector<1x32xf32>
    %228 = vector.extract_strided_slice %35 {offsets = [6, 0], sizes = [1, 32], strides = [1, 1]} : vector<8x32xf32> to vector<1x32xf32>
    %229 = arith.addf %228, %223 : vector<1x32xf32>
    %230 = arith.negf %229 : vector<1x32xf32>
    %231 = math.exp %230 : vector<1x32xf32>
    %cst_81 = arith.constant 1.000000e+00 : f32
    %232 = vector.broadcast %cst_81 : f32 to vector<1x32xf32>
    %233 = arith.addf %232, %231 : vector<1x32xf32>
    %234 = arith.divf %232, %233 : vector<1x32xf32>
    %235 = vector.extract_strided_slice %38 {offsets = [6, 0], sizes = [1, 32], strides = [1, 1]} : vector<8x32xf32> to vector<1x32xf32>
    %236 = arith.addf %235, %225 : vector<1x32xf32>
    %237 = arith.negf %236 : vector<1x32xf32>
    %238 = math.exp %237 : vector<1x32xf32>
    %cst_82 = arith.constant 1.000000e+00 : f32
    %239 = vector.broadcast %cst_82 : f32 to vector<1x32xf32>
    %240 = arith.addf %239, %238 : vector<1x32xf32>
    %241 = arith.divf %239, %240 : vector<1x32xf32>
    %242 = vector.extract_strided_slice %41 {offsets = [6, 0], sizes = [1, 32], strides = [1, 1]} : vector<8x32xf32> to vector<1x32xf32>
    %243 = arith.mulf %234, %227 : vector<1x32xf32>
    %244 = arith.addf %242, %243 : vector<1x32xf32>
    %245 = math.tanh %244 : vector<1x32xf32>
    %cst_83 = arith.constant 1.000000e+00 : f32
    %246 = vector.broadcast %cst_83 : f32 to vector<1x32xf32>
    %247 = arith.subf %246, %241 : vector<1x32xf32>
    %248 = arith.mulf %247, %245 : vector<1x32xf32>
    %249 = arith.mulf %241, %220 : vector<1x32xf32>
    %250 = arith.addf %248, %249 : vector<1x32xf32>
    %c6 = arith.constant 6 : index
    %c0_84 = arith.constant 0 : index
    %251 = vector.load %arg11[%c6, %c0_84] : memref<8x32xf32, #tpu.memory_space<vmem>>, vector<1x32xf32>
    tpu.vector_store %arg11[%c6, %c0_84], %250 {strides = array<i32>} : memref<8x32xf32, #tpu.memory_space<vmem>>, vector<1x32xf32>,
    %cst_85 = arith.constant dense<0.000000e+00> : vector<1x32xf32>
    %252 = tpu.matmul %250, %21, %cst_85 {dimension_numbers = #tpu.dot_dimension_numbers<[1], [0], [0], [1], [0, 0, 1, 1], [], []>} : vector<1x32xf32>, vector<32x32xf32>, vector<1x32xf32> -> vector<1x32xf32>
    %253 = arith.addf %252, %30 : vector<1x32xf32>
    %cst_86 = arith.constant dense<0.000000e+00> : vector<1x32xf32>
    %254 = tpu.matmul %250, %23, %cst_86 {dimension_numbers = #tpu.dot_dimension_numbers<[1], [0], [0], [1], [0, 0, 1, 1], [], []>} : vector<1x32xf32>, vector<32x32xf32>, vector<1x32xf32> -> vector<1x32xf32>
    %255 = arith.addf %254, %31 : vector<1x32xf32>
    %cst_87 = arith.constant dense<0.000000e+00> : vector<1x32xf32>
    %256 = tpu.matmul %250, %25, %cst_87 {dimension_numbers = #tpu.dot_dimension_numbers<[1], [0], [0], [1], [0, 0, 1, 1], [], []>} : vector<1x32xf32>, vector<32x32xf32>, vector<1x32xf32> -> vector<1x32xf32>
    %257 = arith.addf %256, %32 : vector<1x32xf32>
    %258 = vector.extract_strided_slice %35 {offsets = [7, 0], sizes = [1, 32], strides = [1, 1]} : vector<8x32xf32> to vector<1x32xf32>
    %259 = arith.addf %258, %253 : vector<1x32xf32>
    %260 = arith.negf %259 : vector<1x32xf32>
    %261 = math.exp %260 : vector<1x32xf32>
    %cst_88 = arith.constant 1.000000e+00 : f32
    %262 = vector.broadcast %cst_88 : f32 to vector<1x32xf32>
    %263 = arith.addf %262, %261 : vector<1x32xf32>
    %264 = arith.divf %262, %263 : vector<1x32xf32>
    %265 = vector.extract_strided_slice %38 {offsets = [7, 0], sizes = [1, 32], strides = [1, 1]} : vector<8x32xf32> to vector<1x32xf32>
    %266 = arith.addf %265, %255 : vector<1x32xf32>
    %267 = arith.negf %266 : vector<1x32xf32>
    %268 = math.exp %267 : vector<1x32xf32>
    %cst_89 = arith.constant 1.000000e+00 : f32
    %269 = vector.broadcast %cst_89 : f32 to vector<1x32xf32>
    %270 = arith.addf %269, %268 : vector<1x32xf32>
    %271 = arith.divf %269, %270 : vector<1x32xf32>
    %272 = vector.extract_strided_slice %41 {offsets = [7, 0], sizes = [1, 32], strides = [1, 1]} : vector<8x32xf32> to vector<1x32xf32>
    %273 = arith.mulf %264, %257 : vector<1x32xf32>
    %274 = arith.addf %272, %273 : vector<1x32xf32>
    %275 = math.tanh %274 : vector<1x32xf32>
    %cst_90 = arith.constant 1.000000e+00 : f32
    %276 = vector.broadcast %cst_90 : f32 to vector<1x32xf32>
    %277 = arith.subf %276, %271 : vector<1x32xf32>
    %278 = arith.mulf %277, %275 : vector<1x32xf32>
    %279 = arith.mulf %271, %250 : vector<1x32xf32>
    %280 = arith.addf %278, %279 : vector<1x32xf32>
    %c7 = arith.constant 7 : index
    %c0_91 = arith.constant 0 : index
    %281 = vector.load %arg11[%c7, %c0_91] : memref<8x32xf32, #tpu.memory_space<vmem>>, vector<1x32xf32>
    tpu.vector_store %arg11[%c7, %c0_91], %280 {strides = array<i32>} : memref<8x32xf32, #tpu.memory_space<vmem>>, vector<1x32xf32>,
    %c0_92 = arith.constant 0 : index
    %c0_93 = arith.constant 0 : index
    %282 = vector.load %arg11[%c0_92, %c0_93] : memref<8x32xf32, #tpu.memory_space<vmem>>, vector<8x32xf32>
    %c0_94 = arith.constant 0 : index
    %c0_95 = arith.constant 0 : index
    %283 = vector.load %arg7[%c0_94, %c0_95] : memref<32x128xf32, #tpu.memory_space<vmem>>, vector<32x128xf32>
    %cst_96 = arith.constant dense<0.000000e+00> : vector<8x128xf32>
    %284 = tpu.matmul %282, %283, %cst_96 {dimension_numbers = #tpu.dot_dimension_numbers<[1], [0], [0], [1], [0, 0, 1, 1], [], []>} : vector<8x32xf32>, vector<32x128xf32>, vector<8x128xf32> -> vector<8x128xf32>
    %c0_97 = arith.constant 0 : index
    %c0_98 = arith.constant 0 : index
    %285 = vector.load %arg8[%c0_97, %c0_98] : memref<1x128xf32, #tpu.memory_space<vmem>>, vector<1x128xf32>
    %286 = vector.broadcast %285 : vector<1x128xf32> to vector<8x128xf32>
    %287 = arith.addf %284, %286 : vector<8x128xf32>
    %cst_99 = arith.constant dense<0xFF800000> : vector<8xf32>
    %288 = vector.multi_reduction <maximumf>, %287, %cst_99 [1] : vector<8x128xf32> to vector<8xf32>
    %289 = vector.shape_cast %288 : vector<8xf32> to vector<8x1xf32>
    %290 = vector.broadcast %289 : vector<8x1xf32> to vector<8x128xf32>
    %291 = arith.subf %287, %290 : vector<8x128xf32>
    %292 = math.exp %291 : vector<8x128xf32>
    %cst_100 = arith.constant dense<0.000000e+00> : vector<8xf32>
    %293 = vector.multi_reduction <add>, %292, %cst_100 [1] : vector<8x128xf32> to vector<8xf32>
    %294 = vector.shape_cast %293 : vector<8xf32> to vector<8x1xf32>
    %295 = math.log %294 : vector<8x1xf32>
    %296 = vector.broadcast %295 : vector<8x1xf32> to vector<8x128xf32>
    %297 = arith.subf %291, %296 : vector<8x128xf32>
    %c0_101 = arith.constant 0 : index
    %c0_102 = arith.constant 0 : index
    %298 = vector.load %arg9[%c0_101, %c0_102] : memref<8x128xf32, #tpu.memory_space<vmem>>, vector<8x128xf32>
    tpu.vector_store %arg9[%c0_101, %c0_102], %297 {strides = array<i32>} : memref<8x128xf32, #tpu.memory_space<vmem>>, vector<8x128xf32>,
    %c0_103 = arith.constant 0 : index
    %c0_104 = arith.constant 0 : index
    %299 = vector.load %arg10[%c0_103, %c0_104] : memref<1x32xf32, #tpu.memory_space<vmem>>, vector<1x32xf32>
    tpu.vector_store %arg10[%c0_103, %c0_104], %280 {strides = array<i32>} : memref<1x32xf32, #tpu.memory_space<vmem>>, vector<1x32xf32>,
    return
  }
}

</mosaic_0001>

<llo_original>
// kernel: tpu_custom_call.1
$region0: #{tpu_custom_call.1}
  #allocation0 [shape = 'u32[]', space=smem, size = 0x4, offset = 0x4, fixed_abs, tag = 'smem constant byte address 0x4 - core index']
  #allocation1 [shape = 'u32[144,128]{1,0:T(1,128)}', space=vmem, size = 0x12000, scoped, tag = 'internal scratch']
  #allocation2 [shape = 'f32[8,32]{1,0:T(8,128)}', space=vmem, size = 0x1000, scoped, tag = 'scratch operand']
  %s0 = inlined_call_operand.vmem [shape: f32[8,32], index: 0, kind: input, shape index: {}]
  %s1 = inlined_call_operand.vmem [shape: f32[1,32], index: 1, kind: input, shape index: {}]
  %s2 = inlined_call_operand.vmem [shape: f32[6,32], index: 2, kind: input, shape index: {}]
  %s3 = inlined_call_operand.vmem [shape: f32[64,32], index: 3, kind: input, shape index: {}]
  %s4 = inlined_call_operand.vmem [shape: f32[1,32], index: 4, kind: input, shape index: {}]
  %s5 = inlined_call_operand.hbm [shape: f32[6,32,32], index: 5, kind: input, shape index: {}]
  %s6 = inlined_call_operand.vmem [shape: f32[6,32], index: 6, kind: input, shape index: {}]
  %s7 = inlined_call_operand.vmem [shape: f32[32,128], index: 7, kind: input, shape index: {}]
  %s8 = inlined_call_operand.vmem [shape: f32[1,128], index: 8, kind: input, shape index: {}]
  %s9 = inlined_call_operand.hbm [shape: f32[8,128], index: 9, kind: output, shape index: {0}]
  %s10 = inlined_call_operand.hbm [shape: f32[1,32], index: 10, kind: output, shape index: {1}]
  %11 = xla_tuple %s9, %s10
  %s12 = sld [smem:[#allocation0]]
  $region58: #{tpu_custom_call.1} parent=0
    _
  %s14 = ssub.s32 1, %s12
  %s15 = scalar_select 0, %s14, %s12
  $region1: #{tpu_custom_call.1} parent=0
    #allocation3 [shape = 'u8[98304]{0}', space=vmem, size = 0x18000, scoped, tag = 'input window, operand 5, single buffered']
    #allocation4 [shape = 's32[1]{0}', space=sflag, size = 0x4, scoped, tag = 'scoped memory for tpu_custom_call.1']
    #allocation5 [shape = 's32[1]{0}', space=sflag, size = 0x4, scoped, tag = 'scoped memory for tpu_custom_call.1']
    #allocation6 [shape = 'u8[4096]{0}', space=vmem, size = 0x1000, scoped, tag = 'output window, operand 0, single buffered']
    #allocation7 [shape = 'u8[512]{0}', space=vmem, size = 0x400, scoped, tag = 'output window, operand 1, single buffered']
    #allocation8 [shape = 's32[1]{0}', space=sflag, size = 0x4, scoped, tag = 'scoped memory for tpu_custom_call.1']
    %16 = vsyncpa [#allocation4], 0
    %17 = vsyncpa [#allocation5], 0
    %18 = vsyncpa [#allocation8], 0
    // Predicated region
    $region2: #{tpu_custom_call.1} parent=1 // pred_check
      _
    $region3: #{tpu_custom_call.1} parent=1 // pred_check_branch
      %20 = sbr.rel (0) target = $region5
    $region4: #{tpu_custom_call.1} parent=1 // pred_region
      _
    $region5: #{tpu_custom_call.1} parent=1 // pred_fallthru
      _
    // Predicated region
    $region6: #{tpu_custom_call.1} parent=1 // pred_check
      _
    $region7: #{tpu_custom_call.1} parent=1 // pred_check_branch
      %22 = sbr.rel (0) target = $region9
    $region8: #{tpu_custom_call.1} parent=1 // pred_region
      _
    $region9: #{tpu_custom_call.1} parent=1 // pred_fallthru
      _
    // Predicated region
    $region10: #{tpu_custom_call.1} parent=1 // pred_check
      _
    $region11: #{tpu_custom_call.1} parent=1 // pred_check_branch
      %24 = sbr.rel (0) target = $region13
    $region12: #{tpu_custom_call.1} parent=1 // pred_region
      _
    $region13: #{tpu_custom_call.1} parent=1 // pred_fallthru
      _
    // Predicated region
    $region14: #{tpu_custom_call.1} parent=1 // pred_check
      _
    $region15: #{tpu_custom_call.1} parent=1 // pred_check_branch
      %26 = sbr.rel (0) target = $region17
    $region16: #{tpu_custom_call.1} parent=1 // pred_region
      _
    $region17: #{tpu_custom_call.1} parent=1 // pred_fallthru
      _
    // Predicated region
    $region18: #{tpu_custom_call.1} parent=1 // pred_check
      _
    $region19: #{tpu_custom_call.1} parent=1 // pred_check_branch
      %28 = sbr.rel (0) target = $region21
    $region20: #{tpu_custom_call.1} parent=1 // pred_region
      _
    $region21: #{tpu_custom_call.1} parent=1 // pred_fallthru
      _
    // Predicated region
    $region22: #{tpu_custom_call.1} parent=1 // pred_check
      _
    $region23: #{tpu_custom_call.1} parent=1 // pred_check_branch
      %30 = sbr.rel (0) target = $region25
    $region24: #{tpu_custom_call.1} parent=1 // pred_region
      %s32 = ssub.s32 3072, 3072
      %33 = vsyncadd [#allocation4], %s32
      %s34 = sshll.u32 [#allocation3], 4
      %s35 = int_to_ptr.vmem [resolvable:$true] %s34
      %40 = dma.hbm_to_vmem [thread:$0]  %s5, 3072, %s35, [#allocation4], 128, 128, 8
    $region25: #{tpu_custom_call.1} parent=1 // pred_fallthru
      _
    // Predicated region
    $region26: #{tpu_custom_call.1} parent=1 // pred_check
      _
    $region27: #{tpu_custom_call.1} parent=1 // pred_check_branch
      %42 = sbr.rel (0) target = $region29
    $region28: #{tpu_custom_call.1} parent=1 // pred_region
      _
    $region29: #{tpu_custom_call.1} parent=1 // pred_fallthru
      _
    // Predicated region
    $region30: #{tpu_custom_call.1} parent=1 // pred_check
      _
    $region31: #{tpu_custom_call.1} parent=1 // pred_check_branch
      %44 = sbr.rel (0) target = $region33
    $region32: #{tpu_custom_call.1} parent=1 // pred_region
      _
    $region33: #{tpu_custom_call.1} parent=1 // pred_fallthru
      _
    // Predicated region
    $region34: #{tpu_custom_call.1} parent=1 // pred_check
      _
    $region35: #{tpu_custom_call.1} parent=1 // pred_check_branch
      %46 = sbr.rel (0) target = $region37
    $region36: #{tpu_custom_call.1} parent=1 // pred_region
      _
    $region37: #{tpu_custom_call.1} parent=1 // pred_fallthru
      _
    // Predicated region
    $region38: #{tpu_custom_call.1} parent=1 // pred_check
      _
    $region39: #{tpu_custom_call.1} parent=1 // pred_check_branch
      %48 = sbr.rel (0) target = $region41
    $region40: #{tpu_custom_call.1} parent=1 // pred_region
      %49 = dma.done [#allocation4], 3072
    $region41: #{tpu_custom_call.1} parent=1 // pred_fallthru
      _
    %v50 = vld [vmem:[%s0] sm:$0xff]
    %v51 = vld [vmem:[%s1] sm:$0x1]
    %v52 = vld [vmem:[%s2] sm:$0x3f]
    %vm53 = vcmask 259072
    %v54 = vsel %vm53, %v52, 0.0
    %v55 = vrot.slane %v54, 4
    %v56 = vadd.f32 %v54, %v55
    %v57 = vrot.slane %v56, 2
    %v58 = vadd.f32 %v56, %v57
    %v59 = vrot.slane %v58, 1
    %v60 = vadd.f32 %v58, %v59
    %v61 = vld [vmem:[%s3] sm:$0xff]
    %v62 = vld [vmem:[%s3 + $0x8] sm:$0xff]
    %v63 = vld [vmem:[%s3 + $0x10] sm:$0xff]
    %v64 = vld [vmem:[%s3 + $0x18] sm:$0xff]
    %vm65 = vcmask 261120
    %v67 = vsel %vm65, %v60, 0
    %69 = vmatprep.subr.mxu0 0.0
    %70 = vmatpush1.msra.mxu0 0.0
    %71 = vmatprep.subr.mxu0 0.0
    %72 = vmatpush1.msra.mxu0 0.0
    %73 = vmatprep.subr.mxu0 0.0
    %74 = vmatpush1.msra.mxu0 0.0
    %75 = vmatprep.subr.mxu0 0.0
    %76 = vmatpush1.msra.mxu0 0.0
    %77 = vmatprep.subr.mxu0 0.0
    %78 = vmatpush1.msra.mxu0 0.0
    %79 = vmatprep.subr.mxu0 0.0
    %80 = vmatpush1.msra.mxu0 0.0
    %81 = vmatprep.subr.mxu0 0.0
    %82 = vmatpush1.msra.mxu0 0.0
    %83 = vmatprep.subr.mxu0 0.0
    %84 = vmatpush1.msra.mxu0 0.0
    %85 = vmatprep.subr.mxu0 0.0
    %86 = vmatpush1.msra.mxu0 0.0
    %87 = vmatprep.subr.mxu0 0.0
    %88 = vmatpush1.msra.mxu0 0.0
    %89 = vmatprep.subr.mxu0 0.0
    %90 = vmatpush1.msra.mxu0 0.0
    %91 = vmatprep.subr.mxu0 0.0
    %92 = vmatpush1.msra.mxu0 0.0
    %93 = vmatprep.subr.mxu0 0.0
    %94 = vmatpush1.msra.mxu0 %v64
    %95 = vmatprep.subr.mxu0 0.0
    %96 = vmatpush1.msra.mxu0 %v63
    %97 = vmatprep.subr.mxu0 0.0
    %98 = vmatpush1.msra.mxu0 %v62
    %99 = vmatprep.subr.mxu0 0.0
    %100 = vmatpush1.msra.mxu0 %v61
    %101 = vmatprep.subr.mxu0 0.0
    %102 = vmatpush2.msra.mxu0 0.0
    %103 = vmatprep.subr.mxu0 0.0
    %104 = vmatpush2.msra.mxu0 0.0
    %105 = vmatprep.subr.mxu0 0.0
    %106 = vmatpush2.msra.mxu0 0.0
    %107 = vmatprep.subr.mxu0 0.0
    %108 = vmatpush2.msra.mxu0 0.0
    %109 = vmatprep.subr.mxu0 0.0
    %110 = vmatpush2.msra.mxu0 0.0
    %111 = vmatprep.subr.mxu0 0.0
    %112 = vmatpush2.msra.mxu0 0.0
    %113 = vmatprep.subr.mxu0 0.0
    %114 = vmatpush2.msra.mxu0 0.0
    %115 = vmatprep.subr.mxu0 0.0
    %116 = vmatpush2.msra.mxu0 0.0
    %117 = vmatprep.subr.mxu0 0.0
    %118 = vmatpush2.msra.mxu0 0.0
    %119 = vmatprep.subr.mxu0 0.0
    %120 = vmatpush2.msra.mxu0 0.0
    %121 = vmatprep.subr.mxu0 0.0
    %122 = vmatpush2.msra.mxu0 0.0
    %123 = vmatprep.subr.mxu0 0.0
    %124 = vmatpush2.msra.mxu0 0.0
    %125 = vmatprep.subr.mxu0 0.0
    %126 = vmatpush2.msra.mxu0 0.0
    %127 = vmatprep.subr.mxu0 0.0
    %128 = vmatpush2.msra.mxu0 0.0
    %129 = vmatprep.subr.mxu0 0.0
    %130 = vmatpush2.msra.mxu0 0.0
    %131 = vmatprep.subr.mxu0 0.0
    %132 = vmatpush2.msra.mxu0 0.0
    %133 = vmatprep.mubr.f32.mxu0 0.0
    %134 = vmatmul.mubr.f32.gmra.mxu0 %v67
    %v135 = vpop.f32.mrf.mxu0
    %v136 = vadd.f32 0.0, %v135
    %v137 = vpop.f32.mrf.mxu0
    %138 = vdwg.mxu0
    %v139 = vld [vmem:[%s3 + $0x20] sm:$0xff]
    %v140 = vld [vmem:[%s3 + $0x28] sm:$0xff]
    %v141 = vld [vmem:[%s3 + $0x30] sm:$0xff]
    %v142 = vld [vmem:[%s3 + $0x38] sm:$0xff]
    %v144 = vsel %vm65, %v50, 0
    %146 = vmatprep.subr.mxu0 0.0
    %147 = vmatpush1.msra.mxu0 0.0
    %148 = vmatprep.subr.mxu0 0.0
    %149 = vmatpush1.msra.mxu0 0.0
    %150 = vmatprep.subr.mxu0 0.0
    %151 = vmatpush1.msra.mxu0 0.0
    %152 = vmatprep.subr.mxu0 0.0
    %153 = vmatpush1.msra.mxu0 0.0
    %154 = vmatprep.subr.mxu0 0.0
    %155 = vmatpush1.msra.mxu0 0.0
    %156 = vmatprep.subr.mxu0 0.0
    %157 = vmatpush1.msra.mxu0 0.0
    %158 = vmatprep.subr.mxu0 0.0
    %159 = vmatpush1.msra.mxu0 0.0
    %160 = vmatprep.subr.mxu0 0.0
    %161 = vmatpush1.msra.mxu0 0.0
    %162 = vmatprep.subr.mxu0 0.0
    %163 = vmatpush1.msra.mxu0 0.0
    %164 = vmatprep.subr.mxu0 0.0
    %165 = vmatpush1.msra.mxu0 0.0
    %166 = vmatprep.subr.mxu0 0.0
    %167 = vmatpush1.msra.mxu0 0.0
    %168 = vmatprep.subr.mxu0 0.0
    %169 = vmatpush1.msra.mxu0 0.0
    %170 = vmatprep.subr.mxu0 0.0
    %171 = vmatpush1.msra.mxu0 %v142
    %172 = vmatprep.subr.mxu0 0.0
    %173 = vmatpush1.msra.mxu0 %v141
    %174 = vmatprep.subr.mxu0 0.0
    %175 = vmatpush1.msra.mxu0 %v140
    %176 = vmatprep.subr.mxu0 0.0
    %177 = vmatpush1.msra.mxu0 %v139
    %178 = vmatprep.subr.mxu0 0.0
    %179 = vmatpush2.msra.mxu0 0.0
    %180 = vmatprep.subr.mxu0 0.0
    %181 = vmatpush2.msra.mxu0 0.0
    %182 = vmatprep.subr.mxu0 0.0
    %183 = vmatpush2.msra.mxu0 0.0
    %184 = vmatprep.subr.mxu0 0.0
    %185 = vmatpush2.msra.mxu0 0.0
    %186 = vmatprep.subr.mxu0 0.0
    %187 = vmatpush2.msra.mxu0 0.0
    %188 = vmatprep.subr.mxu0 0.0
    %189 = vmatpush2.msra.mxu0 0.0
    %190 = vmatprep.subr.mxu0 0.0
    %191 = vmatpush2.msra.mxu0 0.0
    %192 = vmatprep.subr.mxu0 0.0
    %193 = vmatpush2.msra.mxu0 0.0
    %194 = vmatprep.subr.mxu0 0.0
    %195 = vmatpush2.msra.mxu0 0.0
    %196 = vmatprep.subr.mxu0 0.0
    %197 = vmatpush2.msra.mxu0 0.0
    %198 = vmatprep.subr.mxu0 0.0
    %199 = vmatpush2.msra.mxu0 0.0
    %200 = vmatprep.subr.mxu0 0.0
    %201 = vmatpush2.msra.mxu0 0.0
    %202 = vmatprep.subr.mxu0 0.0
    %203 = vmatpush2.msra.mxu0 0.0
    %204 = vmatprep.subr.mxu0 0.0
    %205 = vmatpush2.msra.mxu0 0.0
    %206 = vmatprep.subr.mxu0 0.0
    %207 = vmatpush2.msra.mxu0 0.0
    %208 = vmatprep.subr.mxu0 0.0
    %209 = vmatpush2.msra.mxu0 0.0
    %210 = vmatprep.mubr.f32.mxu0 0.0
    %211 = vmatmul.mubr.f32.gmra.mxu0 %v144
    %v212 = vpop.f32.mrf.mxu0
    %v213 = vadd.f32 0.0, %v212
    %v214 = vpop.f32.mrf.mxu0
    %215 = vdwg.mxu0
    %v216 = vlaneseq
    %v217 = vshrl.u32 %v216, 7
    %v218 = vsub.s32 0, %v217
    %v219 = vrot.slane %v136, %v218
    %v220 = vadd.f32 %v219, %v213
    %v221 = vld [vmem:[%s4] sm:$0x1]
    %v223 = vlaneseq
    %v224 = vshrl.u32 %v223, 7
    %v225 = vsub.s32 0, %v224
    %v226 = vrot.slane %v221, %v225
    %v228 = vadd.f32 %v220, %v226
    %v229 = vld [vmem:[#allocation3] sm:$0xff]
    %v230 = vld [vmem:[#allocation3 + $0x8] sm:$0xff]
    %v231 = vld [vmem:[#allocation3 + $0x10] sm:$0xff]
    %v232 = vld [vmem:[#allocation3 + $0x18] sm:$0xff]
    %s233 = scalar_lea.vmem [#allocation3], 32
    %v234 = vld [vmem:[%s233] sm:$0xff]
    %v235 = vld [vmem:[%s233 + $0x8] sm:$0xff]
    %v236 = vld [vmem:[%s233 + $0x10] sm:$0xff]
    %v237 = vld [vmem:[%s233 + $0x18] sm:$0xff]
    %s238 = scalar_lea.vmem [#allocation3], 64
    %v239 = vld [vmem:[%s238] sm:$0xff]
    %v240 = vld [vmem:[%s238 + $0x8] sm:$0xff]
    %v241 = vld [vmem:[%s238 + $0x10] sm:$0xff]
    %v242 = vld [vmem:[%s238 + $0x18] sm:$0xff]
    %s243 = scalar_lea.vmem [#allocation3], 96
    %v244 = vld [vmem:[%s243] sm:$0xff]
    %v245 = vld [vmem:[%s243 + $0x8] sm:$0xff]
    %v246 = vld [vmem:[%s243 + $0x10] sm:$0xff]
    %v247 = vld [vmem:[%s243 + $0x18] sm:$0xff]
    %s248 = scalar_lea.vmem [#allocation3], 128
    %v249 = vld [vmem:[%s248] sm:$0xff]
    %v250 = vld [vmem:[%s248 + $0x8] sm:$0xff]
    %v251 = vld [vmem:[%s248 + $0x10] sm:$0xff]
    %v252 = vld [vmem:[%s248 + $0x18] sm:$0xff]
    %s253 = scalar_lea.vmem [#allocation3], 160
    %v254 = vld [vmem:[%s253] sm:$0xff]
    %v255 = vld [vmem:[%s253 + $0x8] sm:$0xff]
    %v256 = vld [vmem:[%s253 + $0x10] sm:$0xff]
    %v257 = vld [vmem:[%s253 + $0x18] sm:$0xff]
    %v258 = vld [vmem:[%s6] sm:$0x3f]
    %v259 = vlaneseq
    %v260 = vshrl.u32 %v259, 7
    %v261 = vsub.s32 0, %v260
    %v262 = vrot.slane %v258, %v261
    %v264 = vsel %vm65, %v228, 0
    %266 = vmatprep.subr.mxu0 0.0
    %267 = vmatpush1.msra.mxu0 0.0
    %268 = vmatprep.subr.mxu0 0.0
    %269 = vmatpush1.msra.mxu0 0.0
    %270 = vmatprep.subr.mxu0 0.0
    %271 = vmatpush1.msra.mxu0 0.0
    %272 = vmatprep.subr.mxu0 0.0
    %273 = vmatpush1.msra.mxu0 0.0
    %274 = vmatprep.subr.mxu0 0.0
    %275 = vmatpush1.msra.mxu0 0.0
    %276 = vmatprep.subr.mxu0 0.0
    %277 = vmatpush1.msra.mxu0 0.0
    %278 = vmatprep.subr.mxu0 0.0
    %279 = vmatpush1.msra.mxu0 0.0
    %280 = vmatprep.subr.mxu0 0.0
    %281 = vmatpush1.msra.mxu0 0.0
    %282 = vmatprep.subr.mxu0 0.0
    %283 = vmatpush1.msra.mxu0 0.0
    %284 = vmatprep.subr.mxu0 0.0
    %285 = vmatpush1.msra.mxu0 0.0
    %286 = vmatprep.subr.mxu0 0.0
    %287 = vmatpush1.msra.mxu0 0.0
    %288 = vmatprep.subr.mxu0 0.0
    %289 = vmatpush1.msra.mxu0 0.0
    %290 = vmatprep.subr.mxu0 0.0
    %291 = vmatpush1.msra.mxu0 %v232
    %292 = vmatprep.subr.mxu0 0.0
    %293 = vmatpush1.msra.mxu0 %v231
    %294 = vmatprep.subr.mxu0 0.0
    %295 = vmatpush1.msra.mxu0 %v230
    %296 = vmatprep.subr.mxu0 0.0
    %297 = vmatpush1.msra.mxu0 %v229
    %298 = vmatprep.subr.mxu0 0.0
    %299 = vmatpush2.msra.mxu0 0.0
    %300 = vmatprep.subr.mxu0 0.0
    %301 = vmatpush2.msra.mxu0 0.0
    %302 = vmatprep.subr.mxu0 0.0
    %303 = vmatpush2.msra.mxu0 0.0
    %304 = vmatprep.subr.mxu0 0.0
    %305 = vmatpush2.msra.mxu0 0.0
    %306 = vmatprep.subr.mxu0 0.0
    %307 = vmatpush2.msra.mxu0 0.0
    %308 = vmatprep.subr.mxu0 0.0
    %309 = vmatpush2.msra.mxu0 0.0
    %310 = vmatprep.subr.mxu0 0.0
    %311 = vmatpush2.msra.mxu0 0.0
    %312 = vmatprep.subr.mxu0 0.0
    %313 = vmatpush2.msra.mxu0 0.0
    %314 = vmatprep.subr.mxu0 0.0
    %315 = vmatpush2.msra.mxu0 0.0
    %316 = vmatprep.subr.mxu0 0.0
    %317 = vmatpush2.msra.mxu0 0.0
    %318 = vmatprep.subr.mxu0 0.0
    %319 = vmatpush2.msra.mxu0 0.0
    %320 = vmatprep.subr.mxu0 0.0
    %321 = vmatpush2.msra.mxu0 0.0
    %322 = vmatprep.subr.mxu0 0.0
    %323 = vmatpush2.msra.mxu0 0.0
    %324 = vmatprep.subr.mxu0 0.0
    %325 = vmatpush2.msra.mxu0 0.0
    %326 = vmatprep.subr.mxu0 0.0
    %327 = vmatpush2.msra.mxu0 0.0
    %328 = vmatprep.subr.mxu0 0.0
    %329 = vmatpush2.msra.mxu0 0.0
    %330 = vmatprep.mubr.f32.mxu0 0.0
    %331 = vmatmul.mubr.f32.gmra.mxu0 %v264
    %v332 = vpop.f32.mrf.mxu0
    %v333 = vadd.f32 %v262, %v332
    %v334 = vpop.f32.mrf.mxu0
    %335 = vdwg.mxu0
    %v336 = vlaneseq
    %v337 = vshrl.u32 %v336, 7
    %v338 = vsub.s32 1, %v337
    %v339 = vrot.slane %v258, %v338
    %340 = vmatprep.subr.mxu0 0.0
    %341 = vmatpush1.msra.mxu0 0.0
    %342 = vmatprep.subr.mxu0 0.0
    %343 = vmatpush1.msra.mxu0 0.0
    %344 = vmatprep.subr.mxu0 0.0
    %345 = vmatpush1.msra.mxu0 0.0
    %346 = vmatprep.subr.mxu0 0.0
    %347 = vmatpush1.msra.mxu0 0.0
    %348 = vmatprep.subr.mxu0 0.0
    %349 = vmatpush1.msra.mxu0 0.0
    %350 = vmatprep.subr.mxu0 0.0
    %351 = vmatpush1.msra.mxu0 0.0
    %352 = vmatprep.subr.mxu0 0.0
    %353 = vmatpush1.msra.mxu0 0.0
    %354 = vmatprep.subr.mxu0 0.0
    %355 = vmatpush1.msra.mxu0 0.0
    %356 = vmatprep.subr.mxu0 0.0
    %357 = vmatpush1.msra.mxu0 0.0
    %358 = vmatprep.subr.mxu0 0.0
    %359 = vmatpush1.msra.mxu0 0.0
    %360 = vmatprep.subr.mxu0 0.0
    %361 = vmatpush1.msra.mxu0 0.0
    %362 = vmatprep.subr.mxu0 0.0
    %363 = vmatpush1.msra.mxu0 0.0
    %364 = vmatprep.subr.mxu0 0.0
    %365 = vmatpush1.msra.mxu0 %v237
    %366 = vmatprep.subr.mxu0 0.0
    %367 = vmatpush1.msra.mxu0 %v236
    %368 = vmatprep.subr.mxu0 0.0
    %369 = vmatpush1.msra.mxu0 %v235
    %370 = vmatprep.subr.mxu0 0.0
    %371 = vmatpush1.msra.mxu0 %v234
    %372 = vmatprep.subr.mxu0 0.0
    %373 = vmatpush2.msra.mxu0 0.0
    %374 = vmatprep.subr.mxu0 0.0
    %375 = vmatpush2.msra.mxu0 0.0
    %376 = vmatprep.subr.mxu0 0.0
    %377 = vmatpush2.msra.mxu0 0.0
    %378 = vmatprep.subr.mxu0 0.0
    %379 = vmatpush2.msra.mxu0 0.0
    %380 = vmatprep.subr.mxu0 0.0
    %381 = vmatpush2.msra.mxu0 0.0
    %382 = vmatprep.subr.mxu0 0.0
    %383 = vmatpush2.msra.mxu0 0.0
    %384 = vmatprep.subr.mxu0 0.0
    %385 = vmatpush2.msra.mxu0 0.0
    %386 = vmatprep.subr.mxu0 0.0
    %387 = vmatpush2.msra.mxu0 0.0
    %388 = vmatprep.subr.mxu0 0.0
    %389 = vmatpush2.msra.mxu0 0.0
    %390 = vmatprep.subr.mxu0 0.0
    %391 = vmatpush2.msra.mxu0 0.0
    %392 = vmatprep.subr.mxu0 0.0
    %393 = vmatpush2.msra.mxu0 0.0
    %394 = vmatprep.subr.mxu0 0.0
    %395 = vmatpush2.msra.mxu0 0.0
    %396 = vmatprep.subr.mxu0 0.0
    %397 = vmatpush2.msra.mxu0 0.0
    %398 = vmatprep.subr.mxu0 0.0
    %399 = vmatpush2.msra.mxu0 0.0
    %400 = vmatprep.subr.mxu0 0.0
    %401 = vmatpush2.msra.mxu0 0.0
    %402 = vmatprep.subr.mxu0 0.0
    %403 = vmatpush2.msra.mxu0 0.0
    %404 = vmatprep.mubr.f32.mxu0 0.0
    %405 = vmatmul.mubr.f32.gmra.mxu0 %v264
    %v406 = vpop.f32.mrf.mxu0
    %v407 = vadd.f32 %v339, %v406
    %v408 = vpop.f32.mrf.mxu0
    %409 = vdwg.mxu0
    %v410 = vlaneseq
    %v411 = vshrl.u32 %v410, 7
    %v412 = vsub.s32 2, %v411
    %v413 = vrot.slane %v258, %v412
    %414 = vmatprep.subr.mxu0 0.0
    %415 = vmatpush1.msra.mxu0 0.0
    %416 = vmatprep.subr.mxu0 0.0
    %417 = vmatpush1.msra.mxu0 0.0
    %418 = vmatprep.subr.mxu0 0.0
    %419 = vmatpush1.msra.mxu0 0.0
    %420 = vmatprep.subr.mxu0 0.0
    %421 = vmatpush1.msra.mxu0 0.0
    %422 = vmatprep.subr.mxu0 0.0
    %423 = vmatpush1.msra.mxu0 0.0
    %424 = vmatprep.subr.mxu0 0.0
    %425 = vmatpush1.msra.mxu0 0.0
    %426 = vmatprep.subr.mxu0 0.0
    %427 = vmatpush1.msra.mxu0 0.0
    %428 = vmatprep.subr.mxu0 0.0
    %429 = vmatpush1.msra.mxu0 0.0
    %430 = vmatprep.subr.mxu0 0.0
    %431 = vmatpush1.msra.mxu0 0.0
    %432 = vmatprep.subr.mxu0 0.0
    %433 = vmatpush1.msra.mxu0 0.0
    %434 = vmatprep.subr.mxu0 0.0
    %435 = vmatpush1.msra.mxu0 0.0
    %436 = vmatprep.subr.mxu0 0.0
    %437 = vmatpush1.msra.mxu0 0.0
    %438 = vmatprep.subr.mxu0 0.0
    %439 = vmatpush1.msra.mxu0 %v242
    %440 = vmatprep.subr.mxu0 0.0
    %441 = vmatpush1.msra.mxu0 %v241
    %442 = vmatprep.subr.mxu0 0.0
    %443 = vmatpush1.msra.mxu0 %v240
    %444 = vmatprep.subr.mxu0 0.0
    %445 = vmatpush1.msra.mxu0 %v239
    %446 = vmatprep.subr.mxu0 0.0
    %447 = vmatpush2.msra.mxu0 0.0
    %448 = vmatprep.subr.mxu0 0.0
    %449 = vmatpush2.msra.mxu0 0.0
    %450 = vmatprep.subr.mxu0 0.0
    %451 = vmatpush2.msra.mxu0 0.0
    %452 = vmatprep.subr.mxu0 0.0
    %453 = vmatpush2.msra.mxu0 0.0
    %454 = vmatprep.subr.mxu0 0.0
    %455 = vmatpush2.msra.mxu0 0.0
    %456 = vmatprep.subr.mxu0 0.0
    %457 = vmatpush2.msra.mxu0 0.0
    %458 = vmatprep.subr.mxu0 0.0
    %459 = vmatpush2.msra.mxu0 0.0
    %460 = vmatprep.subr.mxu0 0.0
    %461 = vmatpush2.msra.mxu0 0.0
    %462 = vmatprep.subr.mxu0 0.0
    %463 = vmatpush2.msra.mxu0 0.0
    %464 = vmatprep.subr.mxu0 0.0
    %465 = vmatpush2.msra.mxu0 0.0
    %466 = vmatprep.subr.mxu0 0.0
    %467 = vmatpush2.msra.mxu0 0.0
    %468 = vmatprep.subr.mxu0 0.0
    %469 = vmatpush2.msra.mxu0 0.0
    %470 = vmatprep.subr.mxu0 0.0
    %471 = vmatpush2.msra.mxu0 0.0
    %472 = vmatprep.subr.mxu0 0.0
    %473 = vmatpush2.msra.mxu0 0.0
    %474 = vmatprep.subr.mxu0 0.0
    %475 = vmatpush2.msra.mxu0 0.0
    %476 = vmatprep.subr.mxu0 0.0
    %477 = vmatpush2.msra.mxu0 0.0
    %478 = vmatprep.mubr.f32.mxu0 0.0
    %479 = vmatmul.mubr.f32.gmra.mxu0 %v264
    %v480 = vpop.f32.mrf.mxu0
    %v481 = vadd.f32 %v413, %v480
    %v482 = vpop.f32.mrf.mxu0
    %483 = vdwg.mxu0
    %v485 = vrot.slane %v258, 3
    %v488 = vsel %vm65, %v51, 0
    %490 = vmatprep.subr.mxu0 0.0
    %491 = vmatpush1.msra.mxu0 0.0
    %492 = vmatprep.subr.mxu0 0.0
    %493 = vmatpush1.msra.mxu0 0.0
    %494 = vmatprep.subr.mxu0 0.0
    %495 = vmatpush1.msra.mxu0 0.0
    %496 = vmatprep.subr.mxu0 0.0
    %497 = vmatpush1.msra.mxu0 0.0
    %498 = vmatprep.subr.mxu0 0.0
    %499 = vmatpush1.msra.mxu0 0.0
    %500 = vmatprep.subr.mxu0 0.0
    %501 = vmatpush1.msra.mxu0 0.0
    %502 = vmatprep.subr.mxu0 0.0
    %503 = vmatpush1.msra.mxu0 0.0
    %504 = vmatprep.subr.mxu0 0.0
    %505 = vmatpush1.msra.mxu0 0.0
    %506 = vmatprep.subr.mxu0 0.0
    %507 = vmatpush1.msra.mxu0 0.0
    %508 = vmatprep.subr.mxu0 0.0
    %509 = vmatpush1.msra.mxu0 0.0
    %510 = vmatprep.subr.mxu0 0.0
    %511 = vmatpush1.msra.mxu0 0.0
    %512 = vmatprep.subr.mxu0 0.0
    %513 = vmatpush1.msra.mxu0 0.0
    %514 = vmatprep.subr.mxu0 0.0
    %515 = vmatpush1.msra.mxu0 %v247
    %516 = vmatprep.subr.mxu0 0.0
    %517 = vmatpush1.msra.mxu0 %v246
    %518 = vmatprep.subr.mxu0 0.0
    %519 = vmatpush1.msra.mxu0 %v245
    %520 = vmatprep.subr.mxu0 0.0
    %521 = vmatpush1.msra.mxu0 %v244
    %522 = vmatprep.subr.mxu0 0.0
    %523 = vmatpush2.msra.mxu0 0.0
    %524 = vmatprep.subr.mxu0 0.0
    %525 = vmatpush2.msra.mxu0 0.0
    %526 = vmatprep.subr.mxu0 0.0
    %527 = vmatpush2.msra.mxu0 0.0
    %528 = vmatprep.subr.mxu0 0.0
    %529 = vmatpush2.msra.mxu0 0.0
    %530 = vmatprep.subr.mxu0 0.0
    %531 = vmatpush2.msra.mxu0 0.0
    %532 = vmatprep.subr.mxu0 0.0
    %533 = vmatpush2.msra.mxu0 0.0
    %534 = vmatprep.subr.mxu0 0.0
    %535 = vmatpush2.msra.mxu0 0.0
    %536 = vmatprep.subr.mxu0 0.0
    %537 = vmatpush2.msra.mxu0 0.0
    %538 = vmatprep.subr.mxu0 0.0
    %539 = vmatpush2.msra.mxu0 0.0
    %540 = vmatprep.subr.mxu0 0.0
    %541 = vmatpush2.msra.mxu0 0.0
    %542 = vmatprep.subr.mxu0 0.0
    %543 = vmatpush2.msra.mxu0 0.0
    %544 = vmatprep.subr.mxu0 0.0
    %545 = vmatpush2.msra.mxu0 0.0
    %546 = vmatprep.subr.mxu0 0.0
    %547 = vmatpush2.msra.mxu0 0.0
    %548 = vmatprep.subr.mxu0 0.0
    %549 = vmatpush2.msra.mxu0 0.0
    %550 = vmatprep.subr.mxu0 0.0
    %551 = vmatpush2.msra.mxu0 0.0
    %552 = vmatprep.subr.mxu0 0.0
    %553 = vmatpush2.msra.mxu0 0.0
    %554 = vmatprep.mubr.f32.mxu0 0.0
    %555 = vmatmul.mubr.f32.gmra.mxu0 %v488
    %v556 = vpop.f32.mrf.mxu0
    %v557 = vadd.f32 %v485, %v556
    %v558 = vpop.f32.mrf.mxu0
    %559 = vdwg.mxu0
    %v560 = vrot.slane %v258, 4
    %562 = vmatprep.subr.mxu0 0.0
    %563 = vmatpush1.msra.mxu0 0.0
    %564 = vmatprep.subr.mxu0 0.0
    %565 = vmatpush1.msra.mxu0 0.0
    %566 = vmatprep.subr.mxu0 0.0
    %567 = vmatpush1.msra.mxu0 0.0
    %568 = vmatprep.subr.mxu0 0.0
    %569 = vmatpush1.msra.mxu0 0.0
    %570 = vmatprep.subr.mxu0 0.0
    %571 = vmatpush1.msra.mxu0 0.0
    %572 = vmatprep.subr.mxu0 0.0
    %573 = vmatpush1.msra.mxu0 0.0
    %574 = vmatprep.subr.mxu0 0.0
    %575 = vmatpush1.msra.mxu0 0.0
    %576 = vmatprep.subr.mxu0 0.0
    %577 = vmatpush1.msra.mxu0 0.0
    %578 = vmatprep.subr.mxu0 0.0
    %579 = vmatpush1.msra.mxu0 0.0
    %580 = vmatprep.subr.mxu0 0.0
    %581 = vmatpush1.msra.mxu0 0.0
    %582 = vmatprep.subr.mxu0 0.0
    %583 = vmatpush1.msra.mxu0 0.0
    %584 = vmatprep.subr.mxu0 0.0
    %585 = vmatpush1.msra.mxu0 0.0
    %586 = vmatprep.subr.mxu0 0.0
    %587 = vmatpush1.msra.mxu0 %v252
    %588 = vmatprep.subr.mxu0 0.0
    %589 = vmatpush1.msra.mxu0 %v251
    %590 = vmatprep.subr.mxu0 0.0
    %591 = vmatpush1.msra.mxu0 %v250
    %592 = vmatprep.subr.mxu0 0.0
    %593 = vmatpush1.msra.mxu0 %v249
    %594 = vmatprep.subr.mxu0 0.0
    %595 = vmatpush2.msra.mxu0 0.0
    %596 = vmatprep.subr.mxu0 0.0
    %597 = vmatpush2.msra.mxu0 0.0
    %598 = vmatprep.subr.mxu0 0.0
    %599 = vmatpush2.msra.mxu0 0.0
    %600 = vmatprep.subr.mxu0 0.0
    %601 = vmatpush2.msra.mxu0 0.0
    %602 = vmatprep.subr.mxu0 0.0
    %603 = vmatpush2.msra.mxu0 0.0
    %604 = vmatprep.subr.mxu0 0.0
    %605 = vmatpush2.msra.mxu0 0.0
    %606 = vmatprep.subr.mxu0 0.0
    %607 = vmatpush2.msra.mxu0 0.0
    %608 = vmatprep.subr.mxu0 0.0
    %609 = vmatpush2.msra.mxu0 0.0
    %610 = vmatprep.subr.mxu0 0.0
    %611 = vmatpush2.msra.mxu0 0.0
    %612 = vmatprep.subr.mxu0 0.0
    %613 = vmatpush2.msra.mxu0 0.0
    %614 = vmatprep.subr.mxu0 0.0
    %615 = vmatpush2.msra.mxu0 0.0
    %616 = vmatprep.subr.mxu0 0.0
    %617 = vmatpush2.msra.mxu0 0.0
    %618 = vmatprep.subr.mxu0 0.0
    %619 = vmatpush2.msra.mxu0 0.0
    %620 = vmatprep.subr.mxu0 0.0
    %621 = vmatpush2.msra.mxu0 0.0
    %622 = vmatprep.subr.mxu0 0.0
    %623 = vmatpush2.msra.mxu0 0.0
    %624 = vmatprep.subr.mxu0 0.0
    %625 = vmatpush2.msra.mxu0 0.0
    %626 = vmatprep.mubr.f32.mxu0 0.0
    %627 = vmatmul.mubr.f32.gmra.mxu0 %v488
    %v628 = vpop.f32.mrf.mxu0
    %v629 = vadd.f32 %v560, %v628
    %v630 = vpop.f32.mrf.mxu0
    %631 = vdwg.mxu0
    %v632 = vrot.slane %v258, 5
    %634 = vmatprep.subr.mxu0 0.0
    %635 = vmatpush1.msra.mxu0 0.0
    %636 = vmatprep.subr.mxu0 0.0
    %637 = vmatpush1.msra.mxu0 0.0
    %638 = vmatprep.subr.mxu0 0.0
    %639 = vmatpush1.msra.mxu0 0.0
    %640 = vmatprep.subr.mxu0 0.0
    %641 = vmatpush1.msra.mxu0 0.0
    %642 = vmatprep.subr.mxu0 0.0
    %643 = vmatpush1.msra.mxu0 0.0
    %644 = vmatprep.subr.mxu0 0.0
    %645 = vmatpush1.msra.mxu0 0.0
    %646 = vmatprep.subr.mxu0 0.0
    %647 = vmatpush1.msra.mxu0 0.0
    %648 = vmatprep.subr.mxu0 0.0
    %649 = vmatpush1.msra.mxu0 0.0
    %650 = vmatprep.subr.mxu0 0.0
    %651 = vmatpush1.msra.mxu0 0.0
    %652 = vmatprep.subr.mxu0 0.0
    %653 = vmatpush1.msra.mxu0 0.0
    %654 = vmatprep.subr.mxu0 0.0
    %655 = vmatpush1.msra.mxu0 0.0
    %656 = vmatprep.subr.mxu0 0.0
    %657 = vmatpush1.msra.mxu0 0.0
    %658 = vmatprep.subr.mxu0 0.0
    %659 = vmatpush1.msra.mxu0 %v257
    %660 = vmatprep.subr.mxu0 0.0
    %661 = vmatpush1.msra.mxu0 %v256
    %662 = vmatprep.subr.mxu0 0.0
    %663 = vmatpush1.msra.mxu0 %v255
    %664 = vmatprep.subr.mxu0 0.0
    %665 = vmatpush1.msra.mxu0 %v254
    %666 = vmatprep.subr.mxu0 0.0
    %667 = vmatpush2.msra.mxu0 0.0
    %668 = vmatprep.subr.mxu0 0.0
    %669 = vmatpush2.msra.mxu0 0.0
    %670 = vmatprep.subr.mxu0 0.0
    %671 = vmatpush2.msra.mxu0 0.0
    %672 = vmatprep.subr.mxu0 0.0
    %673 = vmatpush2.msra.mxu0 0.0
    %674 = vmatprep.subr.mxu0 0.0
    %675 = vmatpush2.msra.mxu0 0.0
    %676 = vmatprep.subr.mxu0 0.0
    %677 = vmatpush2.msra.mxu0 0.0
    %678 = vmatprep.subr.mxu0 0.0
    %679 = vmatpush2.msra.mxu0 0.0
    %680 = vmatprep.subr.mxu0 0.0
    %681 = vmatpush2.msra.mxu0 0.0
    %682 = vmatprep.subr.mxu0 0.0
    %683 = vmatpush2.msra.mxu0 0.0
    %684 = vmatprep.subr.mxu0 0.0
    %685 = vmatpush2.msra.mxu0 0.0
    %686 = vmatprep.subr.mxu0 0.0
    %687 = vmatpush2.msra.mxu0 0.0
    %688 = vmatprep.subr.mxu0 0.0
    %689 = vmatpush2.msra.mxu0 0.0
    %690 = vmatprep.subr.mxu0 0.0
    %691 = vmatpush2.msra.mxu0 0.0
    %692 = vmatprep.subr.mxu0 0.0
    %693 = vmatpush2.msra.mxu0 0.0
    %694 = vmatprep.subr.mxu0 0.0
    %695 = vmatpush2.msra.mxu0 0.0
    %696 = vmatprep.subr.mxu0 0.0
    %697 = vmatpush2.msra.mxu0 0.0
    %698 = vmatprep.mubr.f32.mxu0 0.0
    %699 = vmatmul.mubr.f32.gmra.mxu0 %v488
    %v700 = vpop.f32.mrf.mxu0
    %v701 = vadd.f32 %v632, %v700
    %v702 = vpop.f32.mrf.mxu0
    %703 = vdwg.mxu0
    %v704 = vadd.f32 %v333, %v557
    %v705 = vxor.u32 %v704, 2147483648
    %v706 = vmul.f32 %v705, 1.442695
    %v707 = vpow.pop %v706
    %v708 = vadd.f32 %v707, 1.0
    %v709 = vrcp.pop %v708
    %v710 = vmul.f32 1.0, %v709
    %v711 = vadd.f32 %v407, %v629
    %v712 = vxor.u32 %v711, 2147483648
    %v713 = vmul.f32 %v712, 1.442695
    %v714 = vpow.pop %v713
    %v715 = vadd.f32 %v714, 1.0
    %v716 = vrcp.pop %v715
    %v717 = vmul.f32 1.0, %v716
    %v718 = vmul.f32 %v710, %v701
    %v719 = vadd.f32 %v481, %v718
    %v720 = vtanh.pop %v719
    %v721 = vsub.f32 1.0, %v717
    %v722 = vmul.f32 %v721, %v720
    %v723 = vmul.f32 %v717, %v51
    %v724 = vadd.f32 %v722, %v723
    %vm725 = vcmask 253952
    %726 = vst.msk [vmem:[#allocation2] sm:$0x1] %vm725, %v724
    %v728 = vsel %vm65, %v724, 0
    %730 = vmatprep.subr.mxu0 0.0
    %731 = vmatpush1.msra.mxu0 0.0
    %732 = vmatprep.subr.mxu0 0.0
    %733 = vmatpush1.msra.mxu0 0.0
    %734 = vmatprep.subr.mxu0 0.0
    %735 = vmatpush1.msra.mxu0 0.0
    %736 = vmatprep.subr.mxu0 0.0
    %737 = vmatpush1.msra.mxu0 0.0
    %738 = vmatprep.subr.mxu0 0.0
    %739 = vmatpush1.msra.mxu0 0.0
    %740 = vmatprep.subr.mxu0 0.0
    %741 = vmatpush1.msra.mxu0 0.0
    %742 = vmatprep.subr.mxu0 0.0
    %743 = vmatpush1.msra.mxu0 0.0
    %744 = vmatprep.subr.mxu0 0.0
    %745 = vmatpush1.msra.mxu0 0.0
    %746 = vmatprep.subr.mxu0 0.0
    %747 = vmatpush1.msra.mxu0 0.0
    %748 = vmatprep.subr.mxu0 0.0
    %749 = vmatpush1.msra.mxu0 0.0
    %750 = vmatprep.subr.mxu0 0.0
    %751 = vmatpush1.msra.mxu0 0.0
    %752 = vmatprep.subr.mxu0 0.0
    %753 = vmatpush1.msra.mxu0 0.0
    %754 = vmatprep.subr.mxu0 0.0
    %755 = vmatpush1.msra.mxu0 %v247
    %756 = vmatprep.subr.mxu0 0.0
    %757 = vmatpush1.msra.mxu0 %v246
    %758 = vmatprep.subr.mxu0 0.0
    %759 = vmatpush1.msra.mxu0 %v245
    %760 = vmatprep.subr.mxu0 0.0
    %761 = vmatpush1.msra.mxu0 %v244
    %762 = vmatprep.subr.mxu0 0.0
    %763 = vmatpush2.msra.mxu0 0.0
    %764 = vmatprep.subr.mxu0 0.0
    %765 = vmatpush2.msra.mxu0 0.0
    %766 = vmatprep.subr.mxu0 0.0
    %767 = vmatpush2.msra.mxu0 0.0
    %768 = vmatprep.subr.mxu0 0.0
    %769 = vmatpush2.msra.mxu0 0.0
    %770 = vmatprep.subr.mxu0 0.0
    %771 = vmatpush2.msra.mxu0 0.0
    %772 = vmatprep.subr.mxu0 0.0
    %773 = vmatpush2.msra.mxu0 0.0
    %774 = vmatprep.subr.mxu0 0.0
    %775 = vmatpush2.msra.mxu0 0.0
    %776 = vmatprep.subr.mxu0 0.0
    %777 = vmatpush2.msra.mxu0 0.0
    %778 = vmatprep.subr.mxu0 0.0
    %779 = vmatpush2.msra.mxu0 0.0
    %780 = vmatprep.subr.mxu0 0.0
    %781 = vmatpush2.msra.mxu0 0.0
    %782 = vmatprep.subr.mxu0 0.0
    %783 = vmatpush2.msra.mxu0 0.0
    %784 = vmatprep.subr.mxu0 0.0
    %785 = vmatpush2.msra.mxu0 0.0
    %786 = vmatprep.subr.mxu0 0.0
    %787 = vmatpush2.msra.mxu0 0.0
    %788 = vmatprep.subr.mxu0 0.0
    %789 = vmatpush2.msra.mxu0 0.0
    %790 = vmatprep.subr.mxu0 0.0
    %791 = vmatpush2.msra.mxu0 0.0
    %792 = vmatprep.subr.mxu0 0.0
    %793 = vmatpush2.msra.mxu0 0.0
    %794 = vmatprep.mubr.f32.mxu0 0.0
    %795 = vmatmul.mubr.f32.gmra.mxu0 %v728
    %v796 = vpop.f32.mrf.mxu0
    %v797 = vadd.f32 %v485, %v796
    %v798 = vpop.f32.mrf.mxu0
    %799 = vdwg.mxu0
    %800 = vmatprep.subr.mxu0 0.0
    %801 = vmatpush1.msra.mxu0 0.0
    %802 = vmatprep.subr.mxu0 0.0
    %803 = vmatpush1.msra.mxu0 0.0
    %804 = vmatprep.subr.mxu0 0.0
    %805 = vmatpush1.msra.mxu0 0.0
    %806 = vmatprep.subr.mxu0 0.0
    %807 = vmatpush1.msra.mxu0 0.0
    %808 = vmatprep.subr.mxu0 0.0
    %809 = vmatpush1.msra.mxu0 0.0
    %810 = vmatprep.subr.mxu0 0.0
    %811 = vmatpush1.msra.mxu0 0.0
    %812 = vmatprep.subr.mxu0 0.0
    %813 = vmatpush1.msra.mxu0 0.0
    %814 = vmatprep.subr.mxu0 0.0
    %815 = vmatpush1.msra.mxu0 0.0
    %816 = vmatprep.subr.mxu0 0.0
    %817 = vmatpush1.msra.mxu0 0.0
    %818 = vmatprep.subr.mxu0 0.0
    %819 = vmatpush1.msra.mxu0 0.0
    %820 = vmatprep.subr.mxu0 0.0
    %821 = vmatpush1.msra.mxu0 0.0
    %822 = vmatprep.subr.mxu0 0.0
    %823 = vmatpush1.msra.mxu0 0.0
    %824 = vmatprep.subr.mxu0 0.0
    %825 = vmatpush1.msra.mxu0 %v252
    %826 = vmatprep.subr.mxu0 0.0
    %827 = vmatpush1.msra.mxu0 %v251
    %828 = vmatprep.subr.mxu0 0.0
    %829 = vmatpush1.msra.mxu0 %v250
    %830 = vmatprep.subr.mxu0 0.0
    %831 = vmatpush1.msra.mxu0 %v249
    %832 = vmatprep.subr.mxu0 0.0
    %833 = vmatpush2.msra.mxu0 0.0
    %834 = vmatprep.subr.mxu0 0.0
    %835 = vmatpush2.msra.mxu0 0.0
    %836 = vmatprep.subr.mxu0 0.0
    %837 = vmatpush2.msra.mxu0 0.0
    %838 = vmatprep.subr.mxu0 0.0
    %839 = vmatpush2.msra.mxu0 0.0
    %840 = vmatprep.subr.mxu0 0.0
    %841 = vmatpush2.msra.mxu0 0.0
    %842 = vmatprep.subr.mxu0 0.0
    %843 = vmatpush2.msra.mxu0 0.0
    %844 = vmatprep.subr.mxu0 0.0
    %845 = vmatpush2.msra.mxu0 0.0
    %846 = vmatprep.subr.mxu0 0.0
    %847 = vmatpush2.msra.mxu0 0.0
    %848 = vmatprep.subr.mxu0 0.0
    %849 = vmatpush2.msra.mxu0 0.0
    %850 = vmatprep.subr.mxu0 0.0
    %851 = vmatpush2.msra.mxu0 0.0
    %852 = vmatprep.subr.mxu0 0.0
    %853 = vmatpush2.msra.mxu0 0.0
    %854 = vmatprep.subr.mxu0 0.0
    %855 = vmatpush2.msra.mxu0 0.0
    %856 = vmatprep.subr.mxu0 0.0
    %857 = vmatpush2.msra.mxu0 0.0
    %858 = vmatprep.subr.mxu0 0.0
    %859 = vmatpush2.msra.mxu0 0.0
    %860 = vmatprep.subr.mxu0 0.0
    %861 = vmatpush2.msra.mxu0 0.0
    %862 = vmatprep.subr.mxu0 0.0
    %863 = vmatpush2.msra.mxu0 0.0
    %864 = vmatprep.mubr.f32.mxu0 0.0
    %865 = vmatmul.mubr.f32.gmra.mxu0 %v728
    %v866 = vpop.f32.mrf.mxu0
    %v867 = vadd.f32 %v560, %v866
    %v868 = vpop.f32.mrf.mxu0
    %869 = vdwg.mxu0
    %870 = vmatprep.subr.mxu0 0.0
    %871 = vmatpush1.msra.mxu0 0.0
    %872 = vmatprep.subr.mxu0 0.0
    %873 = vmatpush1.msra.mxu0 0.0
    %874 = vmatprep.subr.mxu0 0.0
    %875 = vmatpush1.msra.mxu0 0.0
    %876 = vmatprep.subr.mxu0 0.0
    %877 = vmatpush1.msra.mxu0 0.0
    %878 = vmatprep.subr.mxu0 0.0
    %879 = vmatpush1.msra.mxu0 0.0
    %880 = vmatprep.subr.mxu0 0.0
    %881 = vmatpush1.msra.mxu0 0.0
    %882 = vmatprep.subr.mxu0 0.0
    %883 = vmatpush1.msra.mxu0 0.0
    %884 = vmatprep.subr.mxu0 0.0
    %885 = vmatpush1.msra.mxu0 0.0
    %886 = vmatprep.subr.mxu0 0.0
    %887 = vmatpush1.msra.mxu0 0.0
    %888 = vmatprep.subr.mxu0 0.0
    %889 = vmatpush1.msra.mxu0 0.0
    %890 = vmatprep.subr.mxu0 0.0
    %891 = vmatpush1.msra.mxu0 0.0
    %892 = vmatprep.subr.mxu0 0.0
    %893 = vmatpush1.msra.mxu0 0.0
    %894 = vmatprep.subr.mxu0 0.0
    %895 = vmatpush1.msra.mxu0 %v257
    %896 = vmatprep.subr.mxu0 0.0
    %897 = vmatpush1.msra.mxu0 %v256
    %898 = vmatprep.subr.mxu0 0.0
    %899 = vmatpush1.msra.mxu0 %v255
    %900 = vmatprep.subr.mxu0 0.0
    %901 = vmatpush1.msra.mxu0 %v254
    %902 = vmatprep.subr.mxu0 0.0
    %903 = vmatpush2.msra.mxu0 0.0
    %904 = vmatprep.subr.mxu0 0.0
    %905 = vmatpush2.msra.mxu0 0.0
    %906 = vmatprep.subr.mxu0 0.0
    %907 = vmatpush2.msra.mxu0 0.0
    %908 = vmatprep.subr.mxu0 0.0
    %909 = vmatpush2.msra.mxu0 0.0
    %910 = vmatprep.subr.mxu0 0.0
    %911 = vmatpush2.msra.mxu0 0.0
    %912 = vmatprep.subr.mxu0 0.0
    %913 = vmatpush2.msra.mxu0 0.0
    %914 = vmatprep.subr.mxu0 0.0
    %915 = vmatpush2.msra.mxu0 0.0
    %916 = vmatprep.subr.mxu0 0.0
    %917 = vmatpush2.msra.mxu0 0.0
    %918 = vmatprep.subr.mxu0 0.0
    %919 = vmatpush2.msra.mxu0 0.0
    %920 = vmatprep.subr.mxu0 0.0
    %921 = vmatpush2.msra.mxu0 0.0
    %922 = vmatprep.subr.mxu0 0.0
    %923 = vmatpush2.msra.mxu0 0.0
    %924 = vmatprep.subr.mxu0 0.0
    %925 = vmatpush2.msra.mxu0 0.0
    %926 = vmatprep.subr.mxu0 0.0
    %927 = vmatpush2.msra.mxu0 0.0
    %928 = vmatprep.subr.mxu0 0.0
    %929 = vmatpush2.msra.mxu0 0.0
    %930 = vmatprep.subr.mxu0 0.0
    %931 = vmatpush2.msra.mxu0 0.0
    %932 = vmatprep.subr.mxu0 0.0
    %933 = vmatpush2.msra.mxu0 0.0
    %934 = vmatprep.mubr.f32.mxu0 0.0
    %935 = vmatmul.mubr.f32.gmra.mxu0 %v728
    %v936 = vpop.f32.mrf.mxu0
    %v937 = vadd.f32 %v632, %v936
    %v938 = vpop.f32.mrf.mxu0
    %939 = vdwg.mxu0
    %v941 = vrot.slane %v797, 7
    %v943 = vadd.f32 %v333, %v941
    %v944 = vxor.u32 %v943, 2147483648
    %v945 = vmul.f32 %v944, 1.442695
    %v946 = vpow.pop %v945
    %v947 = vadd.f32 %v946, 1.0
    %v948 = vrcp.pop %v947
    %v949 = vmul.f32 1.0, %v948
    %v951 = vrot.slane %v867, 7
    %v953 = vadd.f32 %v407, %v951
    %v954 = vxor.u32 %v953, 2147483648
    %v955 = vmul.f32 %v954, 1.442695
    %v956 = vpow.pop %v955
    %v957 = vadd.f32 %v956, 1.0
    %v958 = vrcp.pop %v957
    %v959 = vmul.f32 1.0, %v958
    %v961 = vrot.slane %v937, 7
    %v963 = vmul.f32 %v949, %v961
    %v964 = vadd.f32 %v481, %v963
    %v965 = vtanh.pop %v964
    %v966 = vsub.f32 1.0, %v959
    %v967 = vmul.f32 %v966, %v965
    %v968 = vrot.slane %v724, 7
    %v970 = vmul.f32 %v959, %v968
    %v971 = vadd.f32 %v967, %v970
    %vm972 = vcmask 254977
    %973 = vst.msk [vmem:[#allocation2] sm:$0x2] %vm972, %v971
    %v975 = vrot.slane %v971, 1
    %v976 = vsel %vm65, %v975, 0
    %978 = vmatprep.subr.mxu0 0.0
    %979 = vmatpush1.msra.mxu0 0.0
    %980 = vmatprep.subr.mxu0 0.0
    %981 = vmatpush1.msra.mxu0 0.0
    %982 = vmatprep.subr.mxu0 0.0
    %983 = vmatpush1.msra.mxu0 0.0
    %984 = vmatprep.subr.mxu0 0.0
    %985 = vmatpush1.msra.mxu0 0.0
    %986 = vmatprep.subr.mxu0 0.0
    %987 = vmatpush1.msra.mxu0 0.0
    %988 = vmatprep.subr.mxu0 0.0
    %989 = vmatpush1.msra.mxu0 0.0
    %990 = vmatprep.subr.mxu0 0.0
    %991 = vmatpush1.msra.mxu0 0.0
    %992 = vmatprep.subr.mxu0 0.0
    %993 = vmatpush1.msra.mxu0 0.0
    %994 = vmatprep.subr.mxu0 0.0
    %995 = vmatpush1.msra.mxu0 0.0
    %996 = vmatprep.subr.mxu0 0.0
    %997 = vmatpush1.msra.mxu0 0.0
    %998 = vmatprep.subr.mxu0 0.0
    %999 = vmatpush1.msra.mxu0 0.0
    %1000 = vmatprep.subr.mxu0 0.0
    %1001 = vmatpush1.msra.mxu0 0.0
    %1002 = vmatprep.subr.mxu0 0.0
    %1003 = vmatpush1.msra.mxu0 %v247
    %1004 = vmatprep.subr.mxu0 0.0
    %1005 = vmatpush1.msra.mxu0 %v246
    %1006 = vmatprep.subr.mxu0 0.0
    %1007 = vmatpush1.msra.mxu0 %v245
    %1008 = vmatprep.subr.mxu0 0.0
    %1009 = vmatpush1.msra.mxu0 %v244
    %1010 = vmatprep.subr.mxu0 0.0
    %1011 = vmatpush2.msra.mxu0 0.0
    %1012 = vmatprep.subr.mxu0 0.0
    %1013 = vmatpush2.msra.mxu0 0.0
    %1014 = vmatprep.subr.mxu0 0.0
    %1015 = vmatpush2.msra.mxu0 0.0
    %1016 = vmatprep.subr.mxu0 0.0
    %1017 = vmatpush2.msra.mxu0 0.0
    %1018 = vmatprep.subr.mxu0 0.0
    %1019 = vmatpush2.msra.mxu0 0.0
    %1020 = vmatprep.subr.mxu0 0.0
    %1021 = vmatpush2.msra.mxu0 0.0
    %1022 = vmatprep.subr.mxu0 0.0
    %1023 = vmatpush2.msra.mxu0 0.0
    %1024 = vmatprep.subr.mxu0 0.0
    %1025 = vmatpush2.msra.mxu0 0.0
    %1026 = vmatprep.subr.mxu0 0.0
    %1027 = vmatpush2.msra.mxu0 0.0
    %1028 = vmatprep.subr.mxu0 0.0
    %1029 = vmatpush2.msra.mxu0 0.0
    %1030 = vmatprep.subr.mxu0 0.0
    %1031 = vmatpush2.msra.mxu0 0.0
    %1032 = vmatprep.subr.mxu0 0.0
    %1033 = vmatpush2.msra.mxu0 0.0
    %1034 = vmatprep.subr.mxu0 0.0
    %1035 = vmatpush2.msra.mxu0 0.0
    %1036 = vmatprep.subr.mxu0 0.0
    %1037 = vmatpush2.msra.mxu0 0.0
    %1038 = vmatprep.subr.mxu0 0.0
    %1039 = vmatpush2.msra.mxu0 0.0
    %1040 = vmatprep.subr.mxu0 0.0
    %1041 = vmatpush2.msra.mxu0 0.0
    %1042 = vmatprep.mubr.f32.mxu0 0.0
    %1043 = vmatmul.mubr.f32.gmra.mxu0 %v976
    %v1044 = vpop.f32.mrf.mxu0
    %v1045 = vadd.f32 %v485, %v1044
    %v1046 = vpop.f32.mrf.mxu0
    %1047 = vdwg.mxu0
    %1048 = vmatprep.subr.mxu0 0.0
    %1049 = vmatpush1.msra.mxu0 0.0
    %1050 = vmatprep.subr.mxu0 0.0
    %1051 = vmatpush1.msra.mxu0 0.0
    %1052 = vmatprep.subr.mxu0 0.0
    %1053 = vmatpush1.msra.mxu0 0.0
    %1054 = vmatprep.subr.mxu0 0.0
    %1055 = vmatpush1.msra.mxu0 0.0
    %1056 = vmatprep.subr.mxu0 0.0
    %1057 = vmatpush1.msra.mxu0 0.0
    %1058 = vmatprep.subr.mxu0 0.0
    %1059 = vmatpush1.msra.mxu0 0.0
    %1060 = vmatprep.subr.mxu0 0.0
    %1061 = vmatpush1.msra.mxu0 0.0
    %1062 = vmatprep.subr.mxu0 0.0
    %1063 = vmatpush1.msra.mxu0 0.0
    %1064 = vmatprep.subr.mxu0 0.0
    %1065 = vmatpush1.msra.mxu0 0.0
    %1066 = vmatprep.subr.mxu0 0.0
    %1067 = vmatpush1.msra.mxu0 0.0
    %1068 = vmatprep.subr.mxu0 0.0
    %1069 = vmatpush1.msra.mxu0 0.0
    %1070 = vmatprep.subr.mxu0 0.0
    %1071 = vmatpush1.msra.mxu0 0.0
    %1072 = vmatprep.subr.mxu0 0.0
    %1073 = vmatpush1.msra.mxu0 %v252
    %1074 = vmatprep.subr.mxu0 0.0
    %1075 = vmatpush1.msra.mxu0 %v251
    %1076 = vmatprep.subr.mxu0 0.0
    %1077 = vmatpush1.msra.mxu0 %v250
    %1078 = vmatprep.subr.mxu0 0.0
    %1079 = vmatpush1.msra.mxu0 %v249
    %1080 = vmatprep.subr.mxu0 0.0
    %1081 = vmatpush2.msra.mxu0 0.0
    %1082 = vmatprep.subr.mxu0 0.0
    %1083 = vmatpush2.msra.mxu0 0.0
    %1084 = vmatprep.subr.mxu0 0.0
    %1085 = vmatpush2.msra.mxu0 0.0
    %1086 = vmatprep.subr.mxu0 0.0
    %1087 = vmatpush2.msra.mxu0 0.0
    %1088 = vmatprep.subr.mxu0 0.0
    %1089 = vmatpush2.msra.mxu0 0.0
    %1090 = vmatprep.subr.mxu0 0.0
    %1091 = vmatpush2.msra.mxu0 0.0
    %1092 = vmatprep.subr.mxu0 0.0
    %1093 = vmatpush2.msra.mxu0 0.0
    %1094 = vmatprep.subr.mxu0 0.0
    %1095 = vmatpush2.msra.mxu0 0.0
    %1096 = vmatprep.subr.mxu0 0.0
    %1097 = vmatpush2.msra.mxu0 0.0
    %1098 = vmatprep.subr.mxu0 0.0
    %1099 = vmatpush2.msra.mxu0 0.0
    %1100 = vmatprep.subr.mxu0 0.0
    %1101 = vmatpush2.msra.mxu0 0.0
    %1102 = vmatprep.subr.mxu0 0.0
    %1103 = vmatpush2.msra.mxu0 0.0
    %1104 = vmatprep.subr.mxu0 0.0
    %1105 = vmatpush2.msra.mxu0 0.0
    %1106 = vmatprep.subr.mxu0 0.0
    %1107 = vmatpush2.msra.mxu0 0.0
    %1108 = vmatprep.subr.mxu0 0.0
    %1109 = vmatpush2.msra.mxu0 0.0
    %1110 = vmatprep.subr.mxu0 0.0
    %1111 = vmatpush2.msra.mxu0 0.0
    %1112 = vmatprep.mubr.f32.mxu0 0.0
    %1113 = vmatmul.mubr.f32.gmra.mxu0 %v976
    %v1114 = vpop.f32.mrf.mxu0
    %v1115 = vadd.f32 %v560, %v1114
    %v1116 = vpop.f32.mrf.mxu0
    %1117 = vdwg.mxu0
    %1118 = vmatprep.subr.mxu0 0.0
    %1119 = vmatpush1.msra.mxu0 0.0
    %1120 = vmatprep.subr.mxu0 0.0
    %1121 = vmatpush1.msra.mxu0 0.0
    %1122 = vmatprep.subr.mxu0 0.0
    %1123 = vmatpush1.msra.mxu0 0.0
    %1124 = vmatprep.subr.mxu0 0.0
    %1125 = vmatpush1.msra.mxu0 0.0
    %1126 = vmatprep.subr.mxu0 0.0
    %1127 = vmatpush1.msra.mxu0 0.0
    %1128 = vmatprep.subr.mxu0 0.0
    %1129 = vmatpush1.msra.mxu0 0.0
    %1130 = vmatprep.subr.mxu0 0.0
    %1131 = vmatpush1.msra.mxu0 0.0
    %1132 = vmatprep.subr.mxu0 0.0
    %1133 = vmatpush1.msra.mxu0 0.0
    %1134 = vmatprep.subr.mxu0 0.0
    %1135 = vmatpush1.msra.mxu0 0.0
    %1136 = vmatprep.subr.mxu0 0.0
    %1137 = vmatpush1.msra.mxu0 0.0
    %1138 = vmatprep.subr.mxu0 0.0
    %1139 = vmatpush1.msra.mxu0 0.0
    %1140 = vmatprep.subr.mxu0 0.0
    %1141 = vmatpush1.msra.mxu0 0.0
    %1142 = vmatprep.subr.mxu0 0.0
    %1143 = vmatpush1.msra.mxu0 %v257
    %1144 = vmatprep.subr.mxu0 0.0
    %1145 = vmatpush1.msra.mxu0 %v256
    %1146 = vmatprep.subr.mxu0 0.0
    %1147 = vmatpush1.msra.mxu0 %v255
    %1148 = vmatprep.subr.mxu0 0.0
    %1149 = vmatpush1.msra.mxu0 %v254
    %1150 = vmatprep.subr.mxu0 0.0
    %1151 = vmatpush2.msra.mxu0 0.0
    %1152 = vmatprep.subr.mxu0 0.0
    %1153 = vmatpush2.msra.mxu0 0.0
    %1154 = vmatprep.subr.mxu0 0.0
    %1155 = vmatpush2.msra.mxu0 0.0
    %1156 = vmatprep.subr.mxu0 0.0
    %1157 = vmatpush2.msra.mxu0 0.0
    %1158 = vmatprep.subr.mxu0 0.0
    %1159 = vmatpush2.msra.mxu0 0.0
    %1160 = vmatprep.subr.mxu0 0.0
    %1161 = vmatpush2.msra.mxu0 0.0
    %1162 = vmatprep.subr.mxu0 0.0
    %1163 = vmatpush2.msra.mxu0 0.0
    %1164 = vmatprep.subr.mxu0 0.0
    %1165 = vmatpush2.msra.mxu0 0.0
    %1166 = vmatprep.subr.mxu0 0.0
    %1167 = vmatpush2.msra.mxu0 0.0
    %1168 = vmatprep.subr.mxu0 0.0
    %1169 = vmatpush2.msra.mxu0 0.0
    %1170 = vmatprep.subr.mxu0 0.0
    %1171 = vmatpush2.msra.mxu0 0.0
    %1172 = vmatprep.subr.mxu0 0.0
    %1173 = vmatpush2.msra.mxu0 0.0
    %1174 = vmatprep.subr.mxu0 0.0
    %1175 = vmatpush2.msra.mxu0 0.0
    %1176 = vmatprep.subr.mxu0 0.0
    %1177 = vmatpush2.msra.mxu0 0.0
    %1178 = vmatprep.subr.mxu0 0.0
    %1179 = vmatpush2.msra.mxu0 0.0
    %1180 = vmatprep.subr.mxu0 0.0
    %1181 = vmatpush2.msra.mxu0 0.0
    %1182 = vmatprep.mubr.f32.mxu0 0.0
    %1183 = vmatmul.mubr.f32.gmra.mxu0 %v976
    %v1184 = vpop.f32.mrf.mxu0
    %v1185 = vadd.f32 %v632, %v1184
    %v1186 = vpop.f32.mrf.mxu0
    %1187 = vdwg.mxu0
    %v1189 = vrot.slane %v1045, 6
    %v1191 = vadd.f32 %v333, %v1189
    %v1192 = vxor.u32 %v1191, 2147483648
    %v1193 = vmul.f32 %v1192, 1.442695
    %v1194 = vpow.pop %v1193
    %v1195 = vadd.f32 %v1194, 1.0
    %v1196 = vrcp.pop %v1195
    %v1197 = vmul.f32 1.0, %v1196
    %v1199 = vrot.slane %v1115, 6
    %v1201 = vadd.f32 %v407, %v1199
    %v1202 = vxor.u32 %v1201, 2147483648
    %v1203 = vmul.f32 %v1202, 1.442695
    %v1204 = vpow.pop %v1203
    %v1205 = vadd.f32 %v1204, 1.0
    %v1206 = vrcp.pop %v1205
    %v1207 = vmul.f32 1.0, %v1206
    %v1209 = vrot.slane %v1185, 6
    %v1211 = vmul.f32 %v1197, %v1209
    %v1212 = vadd.f32 %v481, %v1211
    %v1213 = vtanh.pop %v1212
    %v1214 = vsub.f32 1.0, %v1207
    %v1215 = vmul.f32 %v1214, %v1213
    %v1216 = vrot.slane %v971, 7
    %v1218 = vmul.f32 %v1207, %v1216
    %v1219 = vadd.f32 %v1215, %v1218
    %vm1220 = vcmask 256002
    %1221 = vst.msk [vmem:[#allocation2] sm:$0x4] %vm1220, %v1219
    %v1223 = vrot.slane %v1219, 2
    %v1224 = vsel %vm65, %v1223, 0
    %1226 = vmatprep.subr.mxu0 0.0
    %1227 = vmatpush1.msra.mxu0 0.0
    %1228 = vmatprep.subr.mxu0 0.0
    %1229 = vmatpush1.msra.mxu0 0.0
    %1230 = vmatprep.subr.mxu0 0.0
    %1231 = vmatpush1.msra.mxu0 0.0
    %1232 = vmatprep.subr.mxu0 0.0
    %1233 = vmatpush1.msra.mxu0 0.0
    %1234 = vmatprep.subr.mxu0 0.0
    %1235 = vmatpush1.msra.mxu0 0.0
    %1236 = vmatprep.subr.mxu0 0.0
    %1237 = vmatpush1.msra.mxu0 0.0
    %1238 = vmatprep.subr.mxu0 0.0
    %1239 = vmatpush1.msra.mxu0 0.0
    %1240 = vmatprep.subr.mxu0 0.0
    %1241 = vmatpush1.msra.mxu0 0.0
    %1242 = vmatprep.subr.mxu0 0.0
    %1243 = vmatpush1.msra.mxu0 0.0
    %1244 = vmatprep.subr.mxu0 0.0
    %1245 = vmatpush1.msra.mxu0 0.0
    %1246 = vmatprep.subr.mxu0 0.0
    %1247 = vmatpush1.msra.mxu0 0.0
    %1248 = vmatprep.subr.mxu0 0.0
    %1249 = vmatpush1.msra.mxu0 0.0
    %1250 = vmatprep.subr.mxu0 0.0
    %1251 = vmatpush1.msra.mxu0 %v247
    %1252 = vmatprep.subr.mxu0 0.0
    %1253 = vmatpush1.msra.mxu0 %v246
    %1254 = vmatprep.subr.mxu0 0.0
    %1255 = vmatpush1.msra.mxu0 %v245
    %1256 = vmatprep.subr.mxu0 0.0
    %1257 = vmatpush1.msra.mxu0 %v244
    %1258 = vmatprep.subr.mxu0 0.0
    %1259 = vmatpush2.msra.mxu0 0.0
    %1260 = vmatprep.subr.mxu0 0.0
    %1261 = vmatpush2.msra.mxu0 0.0
    %1262 = vmatprep.subr.mxu0 0.0
    %1263 = vmatpush2.msra.mxu0 0.0
    %1264 = vmatprep.subr.mxu0 0.0
    %1265 = vmatpush2.msra.mxu0 0.0
    %1266 = vmatprep.subr.mxu0 0.0
    %1267 = vmatpush2.msra.mxu0 0.0
    %1268 = vmatprep.subr.mxu0 0.0
    %1269 = vmatpush2.msra.mxu0 0.0
    %1270 = vmatprep.subr.mxu0 0.0
    %1271 = vmatpush2.msra.mxu0 0.0
    %1272 = vmatprep.subr.mxu0 0.0
    %1273 = vmatpush2.msra.mxu0 0.0
    %1274 = vmatprep.subr.mxu0 0.0
    %1275 = vmatpush2.msra.mxu0 0.0
    %1276 = vmatprep.subr.mxu0 0.0
    %1277 = vmatpush2.msra.mxu0 0.0
    %1278 = vmatprep.subr.mxu0 0.0
    %1279 = vmatpush2.msra.mxu0 0.0
    %1280 = vmatprep.subr.mxu0 0.0
    %1281 = vmatpush2.msra.mxu0 0.0
    %1282 = vmatprep.subr.mxu0 0.0
    %1283 = vmatpush2.msra.mxu0 0.0
    %1284 = vmatprep.subr.mxu0 0.0
    %1285 = vmatpush2.msra.mxu0 0.0
    %1286 = vmatprep.subr.mxu0 0.0
    %1287 = vmatpush2.msra.mxu0 0.0
    %1288 = vmatprep.subr.mxu0 0.0
    %1289 = vmatpush2.msra.mxu0 0.0
    %1290 = vmatprep.mubr.f32.mxu0 0.0
    %1291 = vmatmul.mubr.f32.gmra.mxu0 %v1224
    %v1292 = vpop.f32.mrf.mxu0
    %v1293 = vadd.f32 %v485, %v1292
    %v1294 = vpop.f32.mrf.mxu0
    %1295 = vdwg.mxu0
    %1296 = vmatprep.subr.mxu0 0.0
    %1297 = vmatpush1.msra.mxu0 0.0
    %1298 = vmatprep.subr.mxu0 0.0
    %1299 = vmatpush1.msra.mxu0 0.0
    %1300 = vmatprep.subr.mxu0 0.0
    %1301 = vmatpush1.msra.mxu0 0.0
    %1302 = vmatprep.subr.mxu0 0.0
    %1303 = vmatpush1.msra.mxu0 0.0
    %1304 = vmatprep.subr.mxu0 0.0
    %1305 = vmatpush1.msra.mxu0 0.0
    %1306 = vmatprep.subr.mxu0 0.0
    %1307 = vmatpush1.msra.mxu0 0.0
    %1308 = vmatprep.subr.mxu0 0.0
    %1309 = vmatpush1.msra.mxu0 0.0
    %1310 = vmatprep.subr.mxu0 0.0
    %1311 = vmatpush1.msra.mxu0 0.0
    %1312 = vmatprep.subr.mxu0 0.0
    %1313 = vmatpush1.msra.mxu0 0.0
    %1314 = vmatprep.subr.mxu0 0.0
    %1315 = vmatpush1.msra.mxu0 0.0
    %1316 = vmatprep.subr.mxu0 0.0
    %1317 = vmatpush1.msra.mxu0 0.0
    %1318 = vmatprep.subr.mxu0 0.0
    %1319 = vmatpush1.msra.mxu0 0.0
    %1320 = vmatprep.subr.mxu0 0.0
    %1321 = vmatpush1.msra.mxu0 %v252
    %1322 = vmatprep.subr.mxu0 0.0
    %1323 = vmatpush1.msra.mxu0 %v251
    %1324 = vmatprep.subr.mxu0 0.0
    %1325 = vmatpush1.msra.mxu0 %v250
    %1326 = vmatprep.subr.mxu0 0.0
    %1327 = vmatpush1.msra.mxu0 %v249
    %1328 = vmatprep.subr.mxu0 0.0
    %1329 = vmatpush2.msra.mxu0 0.0
    %1330 = vmatprep.subr.mxu0 0.0
    %1331 = vmatpush2.msra.mxu0 0.0
    %1332 = vmatprep.subr.mxu0 0.0
    %1333 = vmatpush2.msra.mxu0 0.0
    %1334 = vmatprep.subr.mxu0 0.0
    %1335 = vmatpush2.msra.mxu0 0.0
    %1336 = vmatprep.subr.mxu0 0.0
    %1337 = vmatpush2.msra.mxu0 0.0
    %1338 = vmatprep.subr.mxu0 0.0
    %1339 = vmatpush2.msra.mxu0 0.0
    %1340 = vmatprep.subr.mxu0 0.0
    %1341 = vmatpush2.msra.mxu0 0.0
    %1342 = vmatprep.subr.mxu0 0.0
    %1343 = vmatpush2.msra.mxu0 0.0
    %1344 = vmatprep.subr.mxu0 0.0
    %1345 = vmatpush2.msra.mxu0 0.0
    %1346 = vmatprep.subr.mxu0 0.0
    %1347 = vmatpush2.msra.mxu0 0.0
    %1348 = vmatprep.subr.mxu0 0.0
    %1349 = vmatpush2.msra.mxu0 0.0
    %1350 = vmatprep.subr.mxu0 0.0
    %1351 = vmatpush2.msra.mxu0 0.0
    %1352 = vmatprep.subr.mxu0 0.0
    %1353 = vmatpush2.msra.mxu0 0.0
    %1354 = vmatprep.subr.mxu0 0.0
    %1355 = vmatpush2.msra.mxu0 0.0
    %1356 = vmatprep.subr.mxu0 0.0
    %1357 = vmatpush2.msra.mxu0 0.0
    %1358 = vmatprep.subr.mxu0 0.0
    %1359 = vmatpush2.msra.mxu0 0.0
    %1360 = vmatprep.mubr.f32.mxu0 0.0
    %1361 = vmatmul.mubr.f32.gmra.mxu0 %v1224
    %v1362 = vpop.f32.mrf.mxu0
    %v1363 = vadd.f32 %v560, %v1362
    %v1364 = vpop.f32.mrf.mxu0
    %1365 = vdwg.mxu0
    %1366 = vmatprep.subr.mxu0 0.0
    %1367 = vmatpush1.msra.mxu0 0.0
    %1368 = vmatprep.subr.mxu0 0.0
    %1369 = vmatpush1.msra.mxu0 0.0
    %1370 = vmatprep.subr.mxu0 0.0
    %1371 = vmatpush1.msra.mxu0 0.0
    %1372 = vmatprep.subr.mxu0 0.0
    %1373 = vmatpush1.msra.mxu0 0.0
    %1374 = vmatprep.subr.mxu0 0.0
    %1375 = vmatpush1.msra.mxu0 0.0
    %1376 = vmatprep.subr.mxu0 0.0
    %1377 = vmatpush1.msra.mxu0 0.0
    %1378 = vmatprep.subr.mxu0 0.0
    %1379 = vmatpush1.msra.mxu0 0.0
    %1380 = vmatprep.subr.mxu0 0.0
    %1381 = vmatpush1.msra.mxu0 0.0
    %1382 = vmatprep.subr.mxu0 0.0
    %1383 = vmatpush1.msra.mxu0 0.0
    %1384 = vmatprep.subr.mxu0 0.0
    %1385 = vmatpush1.msra.mxu0 0.0
    %1386 = vmatprep.subr.mxu0 0.0
    %1387 = vmatpush1.msra.mxu0 0.0
    %1388 = vmatprep.subr.mxu0 0.0
    %1389 = vmatpush1.msra.mxu0 0.0
    %1390 = vmatprep.subr.mxu0 0.0
    %1391 = vmatpush1.msra.mxu0 %v257
    %1392 = vmatprep.subr.mxu0 0.0
    %1393 = vmatpush1.msra.mxu0 %v256
    %1394 = vmatprep.subr.mxu0 0.0
    %1395 = vmatpush1.msra.mxu0 %v255
    %1396 = vmatprep.subr.mxu0 0.0
    %1397 = vmatpush1.msra.mxu0 %v254
    %1398 = vmatprep.subr.mxu0 0.0
    %1399 = vmatpush2.msra.mxu0 0.0
    %1400 = vmatprep.subr.mxu0 0.0
    %1401 = vmatpush2.msra.mxu0 0.0
    %1402 = vmatprep.subr.mxu0 0.0
    %1403 = vmatpush2.msra.mxu0 0.0
    %1404 = vmatprep.subr.mxu0 0.0
    %1405 = vmatpush2.msra.mxu0 0.0
    %1406 = vmatprep.subr.mxu0 0.0
    %1407 = vmatpush2.msra.mxu0 0.0
    %1408 = vmatprep.subr.mxu0 0.0
    %1409 = vmatpush2.msra.mxu0 0.0
    %1410 = vmatprep.subr.mxu0 0.0
    %1411 = vmatpush2.msra.mxu0 0.0
    %1412 = vmatprep.subr.mxu0 0.0
    %1413 = vmatpush2.msra.mxu0 0.0
    %1414 = vmatprep.subr.mxu0 0.0
    %1415 = vmatpush2.msra.mxu0 0.0
    %1416 = vmatprep.subr.mxu0 0.0
    %1417 = vmatpush2.msra.mxu0 0.0
    %1418 = vmatprep.subr.mxu0 0.0
    %1419 = vmatpush2.msra.mxu0 0.0
    %1420 = vmatprep.subr.mxu0 0.0
    %1421 = vmatpush2.msra.mxu0 0.0
    %1422 = vmatprep.subr.mxu0 0.0
    %1423 = vmatpush2.msra.mxu0 0.0
    %1424 = vmatprep.subr.mxu0 0.0
    %1425 = vmatpush2.msra.mxu0 0.0
    %1426 = vmatprep.subr.mxu0 0.0
    %1427 = vmatpush2.msra.mxu0 0.0
    %1428 = vmatprep.subr.mxu0 0.0
    %1429 = vmatpush2.msra.mxu0 0.0
    %1430 = vmatprep.mubr.f32.mxu0 0.0
    %1431 = vmatmul.mubr.f32.gmra.mxu0 %v1224
    %v1432 = vpop.f32.mrf.mxu0
    %v1433 = vadd.f32 %v632, %v1432
    %v1434 = vpop.f32.mrf.mxu0
    %1435 = vdwg.mxu0
    %v1437 = vrot.slane %v1293, 5
    %v1439 = vadd.f32 %v333, %v1437
    %v1440 = vxor.u32 %v1439, 2147483648
    %v1441 = vmul.f32 %v1440, 1.442695
    %v1442 = vpow.pop %v1441
    %v1443 = vadd.f32 %v1442, 1.0
    %v1444 = vrcp.pop %v1443
    %v1445 = vmul.f32 1.0, %v1444
    %v1447 = vrot.slane %v1363, 5
    %v1449 = vadd.f32 %v407, %v1447
    %v1450 = vxor.u32 %v1449, 2147483648
    %v1451 = vmul.f32 %v1450, 1.442695
    %v1452 = vpow.pop %v1451
    %v1453 = vadd.f32 %v1452, 1.0
    %v1454 = vrcp.pop %v1453
    %v1455 = vmul.f32 1.0, %v1454
    %v1457 = vrot.slane %v1433, 5
    %v1459 = vmul.f32 %v1445, %v1457
    %v1460 = vadd.f32 %v481, %v1459
    %v1461 = vtanh.pop %v1460
    %v1462 = vsub.f32 1.0, %v1455
    %v1463 = vmul.f32 %v1462, %v1461
    %v1464 = vrot.slane %v1219, 7
    %v1466 = vmul.f32 %v1455, %v1464
    %v1467 = vadd.f32 %v1463, %v1466
    %vm1468 = vcmask 257027
    %1469 = vst.msk [vmem:[#allocation2] sm:$0x8] %vm1468, %v1467
    %v1471 = vrot.slane %v1467, 3
    %v1472 = vsel %vm65, %v1471, 0
    %1474 = vmatprep.subr.mxu0 0.0
    %1475 = vmatpush1.msra.mxu0 0.0
    %1476 = vmatprep.subr.mxu0 0.0
    %1477 = vmatpush1.msra.mxu0 0.0
    %1478 = vmatprep.subr.mxu0 0.0
    %1479 = vmatpush1.msra.mxu0 0.0
    %1480 = vmatprep.subr.mxu0 0.0
    %1481 = vmatpush1.msra.mxu0 0.0
    %1482 = vmatprep.subr.mxu0 0.0
    %1483 = vmatpush1.msra.mxu0 0.0
    %1484 = vmatprep.subr.mxu0 0.0
    %1485 = vmatpush1.msra.mxu0 0.0
    %1486 = vmatprep.subr.mxu0 0.0
    %1487 = vmatpush1.msra.mxu0 0.0
    %1488 = vmatprep.subr.mxu0 0.0
    %1489 = vmatpush1.msra.mxu0 0.0
    %1490 = vmatprep.subr.mxu0 0.0
    %1491 = vmatpush1.msra.mxu0 0.0
    %1492 = vmatprep.subr.mxu0 0.0
    %1493 = vmatpush1.msra.mxu0 0.0
    %1494 = vmatprep.subr.mxu0 0.0
    %1495 = vmatpush1.msra.mxu0 0.0
    %1496 = vmatprep.subr.mxu0 0.0
    %1497 = vmatpush1.msra.mxu0 0.0
    %1498 = vmatprep.subr.mxu0 0.0
    %1499 = vmatpush1.msra.mxu0 %v247
    %1500 = vmatprep.subr.mxu0 0.0
    %1501 = vmatpush1.msra.mxu0 %v246
    %1502 = vmatprep.subr.mxu0 0.0
    %1503 = vmatpush1.msra.mxu0 %v245
    %1504 = vmatprep.subr.mxu0 0.0
    %1505 = vmatpush1.msra.mxu0 %v244
    %1506 = vmatprep.subr.mxu0 0.0
    %1507 = vmatpush2.msra.mxu0 0.0
    %1508 = vmatprep.subr.mxu0 0.0
    %1509 = vmatpush2.msra.mxu0 0.0
    %1510 = vmatprep.subr.mxu0 0.0
    %1511 = vmatpush2.msra.mxu0 0.0
    %1512 = vmatprep.subr.mxu0 0.0
    %1513 = vmatpush2.msra.mxu0 0.0
    %1514 = vmatprep.subr.mxu0 0.0
    %1515 = vmatpush2.msra.mxu0 0.0
    %1516 = vmatprep.subr.mxu0 0.0
    %1517 = vmatpush2.msra.mxu0 0.0
    %1518 = vmatprep.subr.mxu0 0.0
    %1519 = vmatpush2.msra.mxu0 0.0
    %1520 = vmatprep.subr.mxu0 0.0
    %1521 = vmatpush2.msra.mxu0 0.0
    %1522 = vmatprep.subr.mxu0 0.0
    %1523 = vmatpush2.msra.mxu0 0.0
    %1524 = vmatprep.subr.mxu0 0.0
    %1525 = vmatpush2.msra.mxu0 0.0
    %1526 = vmatprep.subr.mxu0 0.0
    %1527 = vmatpush2.msra.mxu0 0.0
    %1528 = vmatprep.subr.mxu0 0.0
    %1529 = vmatpush2.msra.mxu0 0.0
    %1530 = vmatprep.subr.mxu0 0.0
    %1531 = vmatpush2.msra.mxu0 0.0
    %1532 = vmatprep.subr.mxu0 0.0
    %1533 = vmatpush2.msra.mxu0 0.0
    %1534 = vmatprep.subr.mxu0 0.0
    %1535 = vmatpush2.msra.mxu0 0.0
    %1536 = vmatprep.subr.mxu0 0.0
    %1537 = vmatpush2.msra.mxu0 0.0
    %1538 = vmatprep.mubr.f32.mxu0 0.0
    %1539 = vmatmul.mubr.f32.gmra.mxu0 %v1472
    %v1540 = vpop.f32.mrf.mxu0
    %v1541 = vadd.f32 %v485, %v1540
    %v1542 = vpop.f32.mrf.mxu0
    %1543 = vdwg.mxu0
    %1544 = vmatprep.subr.mxu0 0.0
    %1545 = vmatpush1.msra.mxu0 0.0
    %1546 = vmatprep.subr.mxu0 0.0
    %1547 = vmatpush1.msra.mxu0 0.0
    %1548 = vmatprep.subr.mxu0 0.0
    %1549 = vmatpush1.msra.mxu0 0.0
    %1550 = vmatprep.subr.mxu0 0.0
    %1551 = vmatpush1.msra.mxu0 0.0
    %1552 = vmatprep.subr.mxu0 0.0
    %1553 = vmatpush1.msra.mxu0 0.0
    %1554 = vmatprep.subr.mxu0 0.0
    %1555 = vmatpush1.msra.mxu0 0.0
    %1556 = vmatprep.subr.mxu0 0.0
    %1557 = vmatpush1.msra.mxu0 0.0
    %1558 = vmatprep.subr.mxu0 0.0
    %1559 = vmatpush1.msra.mxu0 0.0
    %1560 = vmatprep.subr.mxu0 0.0
    %1561 = vmatpush1.msra.mxu0 0.0
    %1562 = vmatprep.subr.mxu0 0.0
    %1563 = vmatpush1.msra.mxu0 0.0
    %1564 = vmatprep.subr.mxu0 0.0
    %1565 = vmatpush1.msra.mxu0 0.0
    %1566 = vmatprep.subr.mxu0 0.0
    %1567 = vmatpush1.msra.mxu0 0.0
    %1568 = vmatprep.subr.mxu0 0.0
    %1569 = vmatpush1.msra.mxu0 %v252
    %1570 = vmatprep.subr.mxu0 0.0
    %1571 = vmatpush1.msra.mxu0 %v251
    %1572 = vmatprep.subr.mxu0 0.0
    %1573 = vmatpush1.msra.mxu0 %v250
    %1574 = vmatprep.subr.mxu0 0.0
    %1575 = vmatpush1.msra.mxu0 %v249
    %1576 = vmatprep.subr.mxu0 0.0
    %1577 = vmatpush2.msra.mxu0 0.0
    %1578 = vmatprep.subr.mxu0 0.0
    %1579 = vmatpush2.msra.mxu0 0.0
    %1580 = vmatprep.subr.mxu0 0.0
    %1581 = vmatpush2.msra.mxu0 0.0
    %1582 = vmatprep.subr.mxu0 0.0
    %1583 = vmatpush2.msra.mxu0 0.0
    %1584 = vmatprep.subr.mxu0 0.0
    %1585 = vmatpush2.msra.mxu0 0.0
    %1586 = vmatprep.subr.mxu0 0.0
    %1587 = vmatpush2.msra.mxu0 0.0
    %1588 = vmatprep.subr.mxu0 0.0
    %1589 = vmatpush2.msra.mxu0 0.0
    %1590 = vmatprep.subr.mxu0 0.0
    %1591 = vmatpush2.msra.mxu0 0.0
    %1592 = vmatprep.subr.mxu0 0.0
    %1593 = vmatpush2.msra.mxu0 0.0
    %1594 = vmatprep.subr.mxu0 0.0
    %1595 = vmatpush2.msra.mxu0 0.0
    %1596 = vmatprep.subr.mxu0 0.0
    %1597 = vmatpush2.msra.mxu0 0.0
    %1598 = vmatprep.subr.mxu0 0.0
    %1599 = vmatpush2.msra.mxu0 0.0
    %1600 = vmatprep.subr.mxu0 0.0
    %1601 = vmatpush2.msra.mxu0 0.0
    %1602 = vmatprep.subr.mxu0 0.0
    %1603 = vmatpush2.msra.mxu0 0.0
    %1604 = vmatprep.subr.mxu0 0.0
    %1605 = vmatpush2.msra.mxu0 0.0
    %1606 = vmatprep.subr.mxu0 0.0
    %1607 = vmatpush2.msra.mxu0 0.0
    %1608 = vmatprep.mubr.f32.mxu0 0.0
    %1609 = vmatmul.mubr.f32.gmra.mxu0 %v1472
    %v1610 = vpop.f32.mrf.mxu0
    %v1611 = vadd.f32 %v560, %v1610
    %v1612 = vpop.f32.mrf.mxu0
    %1613 = vdwg.mxu0
    %1614 = vmatprep.subr.mxu0 0.0
    %1615 = vmatpush1.msra.mxu0 0.0
    %1616 = vmatprep.subr.mxu0 0.0
    %1617 = vmatpush1.msra.mxu0 0.0
    %1618 = vmatprep.subr.mxu0 0.0
    %1619 = vmatpush1.msra.mxu0 0.0
    %1620 = vmatprep.subr.mxu0 0.0
    %1621 = vmatpush1.msra.mxu0 0.0
    %1622 = vmatprep.subr.mxu0 0.0
    %1623 = vmatpush1.msra.mxu0 0.0
    %1624 = vmatprep.subr.mxu0 0.0
    %1625 = vmatpush1.msra.mxu0 0.0
    %1626 = vmatprep.subr.mxu0 0.0
    %1627 = vmatpush1.msra.mxu0 0.0
    %1628 = vmatprep.subr.mxu0 0.0
    %1629 = vmatpush1.msra.mxu0 0.0
    %1630 = vmatprep.subr.mxu0 0.0
    %1631 = vmatpush1.msra.mxu0 0.0
    %1632 = vmatprep.subr.mxu0 0.0
    %1633 = vmatpush1.msra.mxu0 0.0
    %1634 = vmatprep.subr.mxu0 0.0
    %1635 = vmatpush1.msra.mxu0 0.0
    %1636 = vmatprep.subr.mxu0 0.0
    %1637 = vmatpush1.msra.mxu0 0.0
    %1638 = vmatprep.subr.mxu0 0.0
    %1639 = vmatpush1.msra.mxu0 %v257
    %1640 = vmatprep.subr.mxu0 0.0
    %1641 = vmatpush1.msra.mxu0 %v256
    %1642 = vmatprep.subr.mxu0 0.0
    %1643 = vmatpush1.msra.mxu0 %v255
    %1644 = vmatprep.subr.mxu0 0.0
    %1645 = vmatpush1.msra.mxu0 %v254
    %1646 = vmatprep.subr.mxu0 0.0
    %1647 = vmatpush2.msra.mxu0 0.0
    %1648 = vmatprep.subr.mxu0 0.0
    %1649 = vmatpush2.msra.mxu0 0.0
    %1650 = vmatprep.subr.mxu0 0.0
    %1651 = vmatpush2.msra.mxu0 0.0
    %1652 = vmatprep.subr.mxu0 0.0
    %1653 = vmatpush2.msra.mxu0 0.0
    %1654 = vmatprep.subr.mxu0 0.0
    %1655 = vmatpush2.msra.mxu0 0.0
    %1656 = vmatprep.subr.mxu0 0.0
    %1657 = vmatpush2.msra.mxu0 0.0
    %1658 = vmatprep.subr.mxu0 0.0
    %1659 = vmatpush2.msra.mxu0 0.0
    %1660 = vmatprep.subr.mxu0 0.0
    %1661 = vmatpush2.msra.mxu0 0.0
    %1662 = vmatprep.subr.mxu0 0.0
    %1663 = vmatpush2.msra.mxu0 0.0
    %1664 = vmatprep.subr.mxu0 0.0
    %1665 = vmatpush2.msra.mxu0 0.0
    %1666 = vmatprep.subr.mxu0 0.0
    %1667 = vmatpush2.msra.mxu0 0.0
    %1668 = vmatprep.subr.mxu0 0.0
    %1669 = vmatpush2.msra.mxu0 0.0
    %1670 = vmatprep.subr.mxu0 0.0
    %1671 = vmatpush2.msra.mxu0 0.0
    %1672 = vmatprep.subr.mxu0 0.0
    %1673 = vmatpush2.msra.mxu0 0.0
    %1674 = vmatprep.subr.mxu0 0.0
    %1675 = vmatpush2.msra.mxu0 0.0
    %1676 = vmatprep.subr.mxu0 0.0
    %1677 = vmatpush2.msra.mxu0 0.0
    %1678 = vmatprep.mubr.f32.mxu0 0.0
    %1679 = vmatmul.mubr.f32.gmra.mxu0 %v1472
    %v1680 = vpop.f32.mrf.mxu0
    %v1681 = vadd.f32 %v632, %v1680
    %v1682 = vpop.f32.mrf.mxu0
    %1683 = vdwg.mxu0
    %v1685 = vrot.slane %v1541, 4
    %v1687 = vadd.f32 %v333, %v1685
    %v1688 = vxor.u32 %v1687, 2147483648
    %v1689 = vmul.f32 %v1688, 1.442695
    %v1690 = vpow.pop %v1689
    %v1691 = vadd.f32 %v1690, 1.0
    %v1692 = vrcp.pop %v1691
    %v1693 = vmul.f32 1.0, %v1692
    %v1695 = vrot.slane %v1611, 4
    %v1697 = vadd.f32 %v407, %v1695
    %v1698 = vxor.u32 %v1697, 2147483648
    %v1699 = vmul.f32 %v1698, 1.442695
    %v1700 = vpow.pop %v1699
    %v1701 = vadd.f32 %v1700, 1.0
    %v1702 = vrcp.pop %v1701
    %v1703 = vmul.f32 1.0, %v1702
    %v1705 = vrot.slane %v1681, 4
    %v1707 = vmul.f32 %v1693, %v1705
    %v1708 = vadd.f32 %v481, %v1707
    %v1709 = vtanh.pop %v1708
    %v1710 = vsub.f32 1.0, %v1703
    %v1711 = vmul.f32 %v1710, %v1709
    %v1712 = vrot.slane %v1467, 7
    %v1714 = vmul.f32 %v1703, %v1712
    %v1715 = vadd.f32 %v1711, %v1714
    %vm1716 = vcmask 258052
    %1717 = vst.msk [vmem:[#allocation2] sm:$0x10] %vm1716, %v1715
    %v1719 = vrot.slane %v1715, 4
    %v1720 = vsel %vm65, %v1719, 0
    %1722 = vmatprep.subr.mxu0 0.0
    %1723 = vmatpush1.msra.mxu0 0.0
    %1724 = vmatprep.subr.mxu0 0.0
    %1725 = vmatpush1.msra.mxu0 0.0
    %1726 = vmatprep.subr.mxu0 0.0
    %1727 = vmatpush1.msra.mxu0 0.0
    %1728 = vmatprep.subr.mxu0 0.0
    %1729 = vmatpush1.msra.mxu0 0.0
    %1730 = vmatprep.subr.mxu0 0.0
    %1731 = vmatpush1.msra.mxu0 0.0
    %1732 = vmatprep.subr.mxu0 0.0
    %1733 = vmatpush1.msra.mxu0 0.0
    %1734 = vmatprep.subr.mxu0 0.0
    %1735 = vmatpush1.msra.mxu0 0.0
    %1736 = vmatprep.subr.mxu0 0.0
    %1737 = vmatpush1.msra.mxu0 0.0
    %1738 = vmatprep.subr.mxu0 0.0
    %1739 = vmatpush1.msra.mxu0 0.0
    %1740 = vmatprep.subr.mxu0 0.0
    %1741 = vmatpush1.msra.mxu0 0.0
    %1742 = vmatprep.subr.mxu0 0.0
    %1743 = vmatpush1.msra.mxu0 0.0
    %1744 = vmatprep.subr.mxu0 0.0
    %1745 = vmatpush1.msra.mxu0 0.0
    %1746 = vmatprep.subr.mxu0 0.0
    %1747 = vmatpush1.msra.mxu0 %v247
    %1748 = vmatprep.subr.mxu0 0.0
    %1749 = vmatpush1.msra.mxu0 %v246
    %1750 = vmatprep.subr.mxu0 0.0
    %1751 = vmatpush1.msra.mxu0 %v245
    %1752 = vmatprep.subr.mxu0 0.0
    %1753 = vmatpush1.msra.mxu0 %v244
    %1754 = vmatprep.subr.mxu0 0.0
    %1755 = vmatpush2.msra.mxu0 0.0
    %1756 = vmatprep.subr.mxu0 0.0
    %1757 = vmatpush2.msra.mxu0 0.0
    %1758 = vmatprep.subr.mxu0 0.0
    %1759 = vmatpush2.msra.mxu0 0.0
    %1760 = vmatprep.subr.mxu0 0.0
    %1761 = vmatpush2.msra.mxu0 0.0
    %1762 = vmatprep.subr.mxu0 0.0
    %1763 = vmatpush2.msra.mxu0 0.0
    %1764 = vmatprep.subr.mxu0 0.0
    %1765 = vmatpush2.msra.mxu0 0.0
    %1766 = vmatprep.subr.mxu0 0.0
    %1767 = vmatpush2.msra.mxu0 0.0
    %1768 = vmatprep.subr.mxu0 0.0
    %1769 = vmatpush2.msra.mxu0 0.0
    %1770 = vmatprep.subr.mxu0 0.0
    %1771 = vmatpush2.msra.mxu0 0.0
    %1772 = vmatprep.subr.mxu0 0.0
    %1773 = vmatpush2.msra.mxu0 0.0
    %1774 = vmatprep.subr.mxu0 0.0
    %1775 = vmatpush2.msra.mxu0 0.0
    %1776 = vmatprep.subr.mxu0 0.0
    %1777 = vmatpush2.msra.mxu0 0.0
    %1778 = vmatprep.subr.mxu0 0.0
    %1779 = vmatpush2.msra.mxu0 0.0
    %1780 = vmatprep.subr.mxu0 0.0
    %1781 = vmatpush2.msra.mxu0 0.0
    %1782 = vmatprep.subr.mxu0 0.0
    %1783 = vmatpush2.msra.mxu0 0.0
    %1784 = vmatprep.subr.mxu0 0.0
    %1785 = vmatpush2.msra.mxu0 0.0
    %1786 = vmatprep.mubr.f32.mxu0 0.0
    %1787 = vmatmul.mubr.f32.gmra.mxu0 %v1720
    %v1788 = vpop.f32.mrf.mxu0
    %v1789 = vadd.f32 %v485, %v1788
    %v1790 = vpop.f32.mrf.mxu0
    %1791 = vdwg.mxu0
    %1792 = vmatprep.subr.mxu0 0.0
    %1793 = vmatpush1.msra.mxu0 0.0
    %1794 = vmatprep.subr.mxu0 0.0
    %1795 = vmatpush1.msra.mxu0 0.0
    %1796 = vmatprep.subr.mxu0 0.0
    %1797 = vmatpush1.msra.mxu0 0.0
    %1798 = vmatprep.subr.mxu0 0.0
    %1799 = vmatpush1.msra.mxu0 0.0
    %1800 = vmatprep.subr.mxu0 0.0
    %1801 = vmatpush1.msra.mxu0 0.0
    %1802 = vmatprep.subr.mxu0 0.0
    %1803 = vmatpush1.msra.mxu0 0.0
    %1804 = vmatprep.subr.mxu0 0.0
    %1805 = vmatpush1.msra.mxu0 0.0
    %1806 = vmatprep.subr.mxu0 0.0
    %1807 = vmatpush1.msra.mxu0 0.0
    %1808 = vmatprep.subr.mxu0 0.0
    %1809 = vmatpush1.msra.mxu0 0.0
    %1810 = vmatprep.subr.mxu0 0.0
    %1811 = vmatpush1.msra.mxu0 0.0
    %1812 = vmatprep.subr.mxu0 0.0
    %1813 = vmatpush1.msra.mxu0 0.0
    %1814 = vmatprep.subr.mxu0 0.0
    %1815 = vmatpush1.msra.mxu0 0.0
    %1816 = vmatprep.subr.mxu0 0.0
    %1817 = vmatpush1.msra.mxu0 %v252
    %1818 = vmatprep.subr.mxu0 0.0
    %1819 = vmatpush1.msra.mxu0 %v251
    %1820 = vmatprep.subr.mxu0 0.0
    %1821 = vmatpush1.msra.mxu0 %v250
    %1822 = vmatprep.subr.mxu0 0.0
    %1823 = vmatpush1.msra.mxu0 %v249
    %1824 = vmatprep.subr.mxu0 0.0
    %1825 = vmatpush2.msra.mxu0 0.0
    %1826 = vmatprep.subr.mxu0 0.0
    %1827 = vmatpush2.msra.mxu0 0.0
    %1828 = vmatprep.subr.mxu0 0.0
    %1829 = vmatpush2.msra.mxu0 0.0
    %1830 = vmatprep.subr.mxu0 0.0
    %1831 = vmatpush2.msra.mxu0 0.0
    %1832 = vmatprep.subr.mxu0 0.0
    %1833 = vmatpush2.msra.mxu0 0.0
    %1834 = vmatprep.subr.mxu0 0.0
    %1835 = vmatpush2.msra.mxu0 0.0
    %1836 = vmatprep.subr.mxu0 0.0
    %1837 = vmatpush2.msra.mxu0 0.0
    %1838 = vmatprep.subr.mxu0 0.0
    %1839 = vmatpush2.msra.mxu0 0.0
    %1840 = vmatprep.subr.mxu0 0.0
    %1841 = vmatpush2.msra.mxu0 0.0
    %1842 = vmatprep.subr.mxu0 0.0
    %1843 = vmatpush2.msra.mxu0 0.0
    %1844 = vmatprep.subr.mxu0 0.0
    %1845 = vmatpush2.msra.mxu0 0.0
    %1846 = vmatprep.subr.mxu0 0.0
    %1847 = vmatpush2.msra.mxu0 0.0
    %1848 = vmatprep.subr.mxu0 0.0
    %1849 = vmatpush2.msra.mxu0 0.0
    %1850 = vmatprep.subr.mxu0 0.0
    %1851 = vmatpush2.msra.mxu0 0.0
    %1852 = vmatprep.subr.mxu0 0.0
    %1853 = vmatpush2.msra.mxu0 0.0
    %1854 = vmatprep.subr.mxu0 0.0
    %1855 = vmatpush2.msra.mxu0 0.0
    %1856 = vmatprep.mubr.f32.mxu0 0.0
    %1857 = vmatmul.mubr.f32.gmra.mxu0 %v1720
    %v1858 = vpop.f32.mrf.mxu0
    %v1859 = vadd.f32 %v560, %v1858
    %v1860 = vpop.f32.mrf.mxu0
    %1861 = vdwg.mxu0
    %1862 = vmatprep.subr.mxu0 0.0
    %1863 = vmatpush1.msra.mxu0 0.0
    %1864 = vmatprep.subr.mxu0 0.0
    %1865 = vmatpush1.msra.mxu0 0.0
    %1866 = vmatprep.subr.mxu0 0.0
    %1867 = vmatpush1.msra.mxu0 0.0
    %1868 = vmatprep.subr.mxu0 0.0
    %1869 = vmatpush1.msra.mxu0 0.0
    %1870 = vmatprep.subr.mxu0 0.0
    %1871 = vmatpush1.msra.mxu0 0.0
    %1872 = vmatprep.subr.mxu0 0.0
    %1873 = vmatpush1.msra.mxu0 0.0
    %1874 = vmatprep.subr.mxu0 0.0
    %1875 = vmatpush1.msra.mxu0 0.0
    %1876 = vmatprep.subr.mxu0 0.0
    %1877 = vmatpush1.msra.mxu0 0.0
    %1878 = vmatprep.subr.mxu0 0.0
    %1879 = vmatpush1.msra.mxu0 0.0
    %1880 = vmatprep.subr.mxu0 0.0
    %1881 = vmatpush1.msra.mxu0 0.0
    %1882 = vmatprep.subr.mxu0 0.0
    %1883 = vmatpush1.msra.mxu0 0.0
    %1884 = vmatprep.subr.mxu0 0.0
    %1885 = vmatpush1.msra.mxu0 0.0
    %1886 = vmatprep.subr.mxu0 0.0
    %1887 = vmatpush1.msra.mxu0 %v257
    %1888 = vmatprep.subr.mxu0 0.0
    %1889 = vmatpush1.msra.mxu0 %v256
    %1890 = vmatprep.subr.mxu0 0.0
    %1891 = vmatpush1.msra.mxu0 %v255
    %1892 = vmatprep.subr.mxu0 0.0
    %1893 = vmatpush1.msra.mxu0 %v254
    %1894 = vmatprep.subr.mxu0 0.0
    %1895 = vmatpush2.msra.mxu0 0.0
    %1896 = vmatprep.subr.mxu0 0.0
    %1897 = vmatpush2.msra.mxu0 0.0
    %1898 = vmatprep.subr.mxu0 0.0
    %1899 = vmatpush2.msra.mxu0 0.0
    %1900 = vmatprep.subr.mxu0 0.0
    %1901 = vmatpush2.msra.mxu0 0.0
    %1902 = vmatprep.subr.mxu0 0.0
    %1903 = vmatpush2.msra.mxu0 0.0
    %1904 = vmatprep.subr.mxu0 0.0
    %1905 = vmatpush2.msra.mxu0 0.0
    %1906 = vmatprep.subr.mxu0 0.0
    %1907 = vmatpush2.msra.mxu0 0.0
    %1908 = vmatprep.subr.mxu0 0.0
    %1909 = vmatpush2.msra.mxu0 0.0
    %1910 = vmatprep.subr.mxu0 0.0
    %1911 = vmatpush2.msra.mxu0 0.0
    %1912 = vmatprep.subr.mxu0 0.0
    %1913 = vmatpush2.msra.mxu0 0.0
    %1914 = vmatprep.subr.mxu0 0.0
    %1915 = vmatpush2.msra.mxu0 0.0
    %1916 = vmatprep.subr.mxu0 0.0
    %1917 = vmatpush2.msra.mxu0 0.0
    %1918 = vmatprep.subr.mxu0 0.0
    %1919 = vmatpush2.msra.mxu0 0.0
    %1920 = vmatprep.subr.mxu0 0.0
    %1921 = vmatpush2.msra.mxu0 0.0
    %1922 = vmatprep.subr.mxu0 0.0
    %1923 = vmatpush2.msra.mxu0 0.0
    %1924 = vmatprep.subr.mxu0 0.0
    %1925 = vmatpush2.msra.mxu0 0.0
    %1926 = vmatprep.mubr.f32.mxu0 0.0
    %1927 = vmatmul.mubr.f32.gmra.mxu0 %v1720
    %v1928 = vpop.f32.mrf.mxu0
    %v1929 = vadd.f32 %v632, %v1928
    %v1930 = vpop.f32.mrf.mxu0
    %1931 = vdwg.mxu0
    %v1933 = vrot.slane %v1789, 3
    %v1935 = vadd.f32 %v333, %v1933
    %v1936 = vxor.u32 %v1935, 2147483648
    %v1937 = vmul.f32 %v1936, 1.442695
    %v1938 = vpow.pop %v1937
    %v1939 = vadd.f32 %v1938, 1.0
    %v1940 = vrcp.pop %v1939
    %v1941 = vmul.f32 1.0, %v1940
    %v1943 = vrot.slane %v1859, 3
    %v1945 = vadd.f32 %v407, %v1943
    %v1946 = vxor.u32 %v1945, 2147483648
    %v1947 = vmul.f32 %v1946, 1.442695
    %v1948 = vpow.pop %v1947
    %v1949 = vadd.f32 %v1948, 1.0
    %v1950 = vrcp.pop %v1949
    %v1951 = vmul.f32 1.0, %v1950
    %v1953 = vrot.slane %v1929, 3
    %v1955 = vmul.f32 %v1941, %v1953
    %v1956 = vadd.f32 %v481, %v1955
    %v1957 = vtanh.pop %v1956
    %v1958 = vsub.f32 1.0, %v1951
    %v1959 = vmul.f32 %v1958, %v1957
    %v1960 = vrot.slane %v1715, 7
    %v1962 = vmul.f32 %v1951, %v1960
    %v1963 = vadd.f32 %v1959, %v1962
    %vm1964 = vcmask 259077
    %1965 = vst.msk [vmem:[#allocation2] sm:$0x20] %vm1964, %v1963
    %v1967 = vrot.slane %v1963, 5
    %v1968 = vsel %vm65, %v1967, 0
    %1970 = vmatprep.subr.mxu0 0.0
    %1971 = vmatpush1.msra.mxu0 0.0
    %1972 = vmatprep.subr.mxu0 0.0
    %1973 = vmatpush1.msra.mxu0 0.0
    %1974 = vmatprep.subr.mxu0 0.0
    %1975 = vmatpush1.msra.mxu0 0.0
    %1976 = vmatprep.subr.mxu0 0.0
    %1977 = vmatpush1.msra.mxu0 0.0
    %1978 = vmatprep.subr.mxu0 0.0
    %1979 = vmatpush1.msra.mxu0 0.0
    %1980 = vmatprep.subr.mxu0 0.0
    %1981 = vmatpush1.msra.mxu0 0.0
    %1982 = vmatprep.subr.mxu0 0.0
    %1983 = vmatpush1.msra.mxu0 0.0
    %1984 = vmatprep.subr.mxu0 0.0
    %1985 = vmatpush1.msra.mxu0 0.0
    %1986 = vmatprep.subr.mxu0 0.0
    %1987 = vmatpush1.msra.mxu0 0.0
    %1988 = vmatprep.subr.mxu0 0.0
    %1989 = vmatpush1.msra.mxu0 0.0
    %1990 = vmatprep.subr.mxu0 0.0
    %1991 = vmatpush1.msra.mxu0 0.0
    %1992 = vmatprep.subr.mxu0 0.0
    %1993 = vmatpush1.msra.mxu0 0.0
    %1994 = vmatprep.subr.mxu0 0.0
    %1995 = vmatpush1.msra.mxu0 %v247
    %1996 = vmatprep.subr.mxu0 0.0
    %1997 = vmatpush1.msra.mxu0 %v246
    %1998 = vmatprep.subr.mxu0 0.0
    %1999 = vmatpush1.msra.mxu0 %v245
    %2000 = vmatprep.subr.mxu0 0.0
    %2001 = vmatpush1.msra.mxu0 %v244
    %2002 = vmatprep.subr.mxu0 0.0
    %2003 = vmatpush2.msra.mxu0 0.0
    %2004 = vmatprep.subr.mxu0 0.0
    %2005 = vmatpush2.msra.mxu0 0.0
    %2006 = vmatprep.subr.mxu0 0.0
    %2007 = vmatpush2.msra.mxu0 0.0
    %2008 = vmatprep.subr.mxu0 0.0
    %2009 = vmatpush2.msra.mxu0 0.0
    %2010 = vmatprep.subr.mxu0 0.0
    %2011 = vmatpush2.msra.mxu0 0.0
    %2012 = vmatprep.subr.mxu0 0.0
    %2013 = vmatpush2.msra.mxu0 0.0
    %2014 = vmatprep.subr.mxu0 0.0
    %2015 = vmatpush2.msra.mxu0 0.0
    %2016 = vmatprep.subr.mxu0 0.0
    %2017 = vmatpush2.msra.mxu0 0.0
    %2018 = vmatprep.subr.mxu0 0.0
    %2019 = vmatpush2.msra.mxu0 0.0
    %2020 = vmatprep.subr.mxu0 0.0
    %2021 = vmatpush2.msra.mxu0 0.0
    %2022 = vmatprep.subr.mxu0 0.0
    %2023 = vmatpush2.msra.mxu0 0.0
    %2024 = vmatprep.subr.mxu0 0.0
    %2025 = vmatpush2.msra.mxu0 0.0
    %2026 = vmatprep.subr.mxu0 0.0
    %2027 = vmatpush2.msra.mxu0 0.0
    %2028 = vmatprep.subr.mxu0 0.0
    %2029 = vmatpush2.msra.mxu0 0.0
    %2030 = vmatprep.subr.mxu0 0.0
    %2031 = vmatpush2.msra.mxu0 0.0
    %2032 = vmatprep.subr.mxu0 0.0
    %2033 = vmatpush2.msra.mxu0 0.0
    %2034 = vmatprep.mubr.f32.mxu0 0.0
    %2035 = vmatmul.mubr.f32.gmra.mxu0 %v1968
    %v2036 = vpop.f32.mrf.mxu0
    %v2037 = vadd.f32 %v485, %v2036
    %v2038 = vpop.f32.mrf.mxu0
    %2039 = vdwg.mxu0
    %2040 = vmatprep.subr.mxu0 0.0
    %2041 = vmatpush1.msra.mxu0 0.0
    %2042 = vmatprep.subr.mxu0 0.0
    %2043 = vmatpush1.msra.mxu0 0.0
    %2044 = vmatprep.subr.mxu0 0.0
    %2045 = vmatpush1.msra.mxu0 0.0
    %2046 = vmatprep.subr.mxu0 0.0
    %2047 = vmatpush1.msra.mxu0 0.0
    %2048 = vmatprep.subr.mxu0 0.0
    %2049 = vmatpush1.msra.mxu0 0.0
    %2050 = vmatprep.subr.mxu0 0.0
    %2051 = vmatpush1.msra.mxu0 0.0
    %2052 = vmatprep.subr.mxu0 0.0
    %2053 = vmatpush1.msra.mxu0 0.0
    %2054 = vmatprep.subr.mxu0 0.0
    %2055 = vmatpush1.msra.mxu0 0.0
    %2056 = vmatprep.subr.mxu0 0.0
    %2057 = vmatpush1.msra.mxu0 0.0
    %2058 = vmatprep.subr.mxu0 0.0
    %2059 = vmatpush1.msra.mxu0 0.0
    %2060 = vmatprep.subr.mxu0 0.0
    %2061 = vmatpush1.msra.mxu0 0.0
    %2062 = vmatprep.subr.mxu0 0.0
    %2063 = vmatpush1.msra.mxu0 0.0
    %2064 = vmatprep.subr.mxu0 0.0
    %2065 = vmatpush1.msra.mxu0 %v252
    %2066 = vmatprep.subr.mxu0 0.0
    %2067 = vmatpush1.msra.mxu0 %v251
    %2068 = vmatprep.subr.mxu0 0.0
    %2069 = vmatpush1.msra.mxu0 %v250
    %2070 = vmatprep.subr.mxu0 0.0
    %2071 = vmatpush1.msra.mxu0 %v249
    %2072 = vmatprep.subr.mxu0 0.0
    %2073 = vmatpush2.msra.mxu0 0.0
    %2074 = vmatprep.subr.mxu0 0.0
    %2075 = vmatpush2.msra.mxu0 0.0
    %2076 = vmatprep.subr.mxu0 0.0
    %2077 = vmatpush2.msra.mxu0 0.0
    %2078 = vmatprep.subr.mxu0 0.0
    %2079 = vmatpush2.msra.mxu0 0.0
    %2080 = vmatprep.subr.mxu0 0.0
    %2081 = vmatpush2.msra.mxu0 0.0
    %2082 = vmatprep.subr.mxu0 0.0
    %2083 = vmatpush2.msra.mxu0 0.0
    %2084 = vmatprep.subr.mxu0 0.0
    %2085 = vmatpush2.msra.mxu0 0.0
    %2086 = vmatprep.subr.mxu0 0.0
    %2087 = vmatpush2.msra.mxu0 0.0
    %2088 = vmatprep.subr.mxu0 0.0
    %2089 = vmatpush2.msra.mxu0 0.0
    %2090 = vmatprep.subr.mxu0 0.0
    %2091 = vmatpush2.msra.mxu0 0.0
    %2092 = vmatprep.subr.mxu0 0.0
    %2093 = vmatpush2.msra.mxu0 0.0
    %2094 = vmatprep.subr.mxu0 0.0
    %2095 = vmatpush2.msra.mxu0 0.0
    %2096 = vmatprep.subr.mxu0 0.0
    %2097 = vmatpush2.msra.mxu0 0.0
    %2098 = vmatprep.subr.mxu0 0.0
    %2099 = vmatpush2.msra.mxu0 0.0
    %2100 = vmatprep.subr.mxu0 0.0
    %2101 = vmatpush2.msra.mxu0 0.0
    %2102 = vmatprep.subr.mxu0 0.0
    %2103 = vmatpush2.msra.mxu0 0.0
    %2104 = vmatprep.mubr.f32.mxu0 0.0
    %2105 = vmatmul.mubr.f32.gmra.mxu0 %v1968
    %v2106 = vpop.f32.mrf.mxu0
    %v2107 = vadd.f32 %v560, %v2106
    %v2108 = vpop.f32.mrf.mxu0
    %2109 = vdwg.mxu0
    %2110 = vmatprep.subr.mxu0 0.0
    %2111 = vmatpush1.msra.mxu0 0.0
    %2112 = vmatprep.subr.mxu0 0.0
    %2113 = vmatpush1.msra.mxu0 0.0
    %2114 = vmatprep.subr.mxu0 0.0
    %2115 = vmatpush1.msra.mxu0 0.0
    %2116 = vmatprep.subr.mxu0 0.0
    %2117 = vmatpush1.msra.mxu0 0.0
    %2118 = vmatprep.subr.mxu0 0.0
    %2119 = vmatpush1.msra.mxu0 0.0
    %2120 = vmatprep.subr.mxu0 0.0
    %2121 = vmatpush1.msra.mxu0 0.0
    %2122 = vmatprep.subr.mxu0 0.0
    %2123 = vmatpush1.msra.mxu0 0.0
    %2124 = vmatprep.subr.mxu0 0.0
    %2125 = vmatpush1.msra.mxu0 0.0
    %2126 = vmatprep.subr.mxu0 0.0
    %2127 = vmatpush1.msra.mxu0 0.0
    %2128 = vmatprep.subr.mxu0 0.0
    %2129 = vmatpush1.msra.mxu0 0.0
    %2130 = vmatprep.subr.mxu0 0.0
    %2131 = vmatpush1.msra.mxu0 0.0
    %2132 = vmatprep.subr.mxu0 0.0
    %2133 = vmatpush1.msra.mxu0 0.0
    %2134 = vmatprep.subr.mxu0 0.0
    %2135 = vmatpush1.msra.mxu0 %v257
    %2136 = vmatprep.subr.mxu0 0.0
    %2137 = vmatpush1.msra.mxu0 %v256
    %2138 = vmatprep.subr.mxu0 0.0
    %2139 = vmatpush1.msra.mxu0 %v255
    %2140 = vmatprep.subr.mxu0 0.0
    %2141 = vmatpush1.msra.mxu0 %v254
    %2142 = vmatprep.subr.mxu0 0.0
    %2143 = vmatpush2.msra.mxu0 0.0
    %2144 = vmatprep.subr.mxu0 0.0
    %2145 = vmatpush2.msra.mxu0 0.0
    %2146 = vmatprep.subr.mxu0 0.0
    %2147 = vmatpush2.msra.mxu0 0.0
    %2148 = vmatprep.subr.mxu0 0.0
    %2149 = vmatpush2.msra.mxu0 0.0
    %2150 = vmatprep.subr.mxu0 0.0
    %2151 = vmatpush2.msra.mxu0 0.0
    %2152 = vmatprep.subr.mxu0 0.0
    %2153 = vmatpush2.msra.mxu0 0.0
    %2154 = vmatprep.subr.mxu0 0.0
    %2155 = vmatpush2.msra.mxu0 0.0
    %2156 = vmatprep.subr.mxu0 0.0
    %2157 = vmatpush2.msra.mxu0 0.0
    %2158 = vmatprep.subr.mxu0 0.0
    %2159 = vmatpush2.msra.mxu0 0.0
    %2160 = vmatprep.subr.mxu0 0.0
    %2161 = vmatpush2.msra.mxu0 0.0
    %2162 = vmatprep.subr.mxu0 0.0
    %2163 = vmatpush2.msra.mxu0 0.0
    %2164 = vmatprep.subr.mxu0 0.0
    %2165 = vmatpush2.msra.mxu0 0.0
    %2166 = vmatprep.subr.mxu0 0.0
    %2167 = vmatpush2.msra.mxu0 0.0
    %2168 = vmatprep.subr.mxu0 0.0
    %2169 = vmatpush2.msra.mxu0 0.0
    %2170 = vmatprep.subr.mxu0 0.0
    %2171 = vmatpush2.msra.mxu0 0.0
    %2172 = vmatprep.subr.mxu0 0.0
    %2173 = vmatpush2.msra.mxu0 0.0
    %2174 = vmatprep.mubr.f32.mxu0 0.0
    %2175 = vmatmul.mubr.f32.gmra.mxu0 %v1968
    %v2176 = vpop.f32.mrf.mxu0
    %v2177 = vadd.f32 %v632, %v2176
    %v2178 = vpop.f32.mrf.mxu0
    %2179 = vdwg.mxu0
    %v2181 = vrot.slane %v2037, 2
    %v2183 = vadd.f32 %v333, %v2181
    %v2184 = vxor.u32 %v2183, 2147483648
    %v2185 = vmul.f32 %v2184, 1.442695
    %v2186 = vpow.pop %v2185
    %v2187 = vadd.f32 %v2186, 1.0
    %v2188 = vrcp.pop %v2187
    %v2189 = vmul.f32 1.0, %v2188
    %v2191 = vrot.slane %v2107, 2
    %v2193 = vadd.f32 %v407, %v2191
    %v2194 = vxor.u32 %v2193, 2147483648
    %v2195 = vmul.f32 %v2194, 1.442695
    %v2196 = vpow.pop %v2195
    %v2197 = vadd.f32 %v2196, 1.0
    %v2198 = vrcp.pop %v2197
    %v2199 = vmul.f32 1.0, %v2198
    %v2201 = vrot.slane %v2177, 2
    %v2203 = vmul.f32 %v2189, %v2201
    %v2204 = vadd.f32 %v481, %v2203
    %v2205 = vtanh.pop %v2204
    %v2206 = vsub.f32 1.0, %v2199
    %v2207 = vmul.f32 %v2206, %v2205
    %v2208 = vrot.slane %v1963, 7
    %v2210 = vmul.f32 %v2199, %v2208
    %v2211 = vadd.f32 %v2207, %v2210
    %vm2212 = vcmask 260102
    %2213 = vst.msk [vmem:[#allocation2] sm:$0x40] %vm2212, %v2211
    %v2215 = vrot.slane %v2211, 6
    %v2216 = vsel %vm65, %v2215, 0
    %2218 = vmatprep.subr.mxu0 0.0
    %2219 = vmatpush1.msra.mxu0 0.0
    %2220 = vmatprep.subr.mxu0 0.0
    %2221 = vmatpush1.msra.mxu0 0.0
    %2222 = vmatprep.subr.mxu0 0.0
    %2223 = vmatpush1.msra.mxu0 0.0
    %2224 = vmatprep.subr.mxu0 0.0
    %2225 = vmatpush1.msra.mxu0 0.0
    %2226 = vmatprep.subr.mxu0 0.0
    %2227 = vmatpush1.msra.mxu0 0.0
    %2228 = vmatprep.subr.mxu0 0.0
    %2229 = vmatpush1.msra.mxu0 0.0
    %2230 = vmatprep.subr.mxu0 0.0
    %2231 = vmatpush1.msra.mxu0 0.0
    %2232 = vmatprep.subr.mxu0 0.0
    %2233 = vmatpush1.msra.mxu0 0.0
    %2234 = vmatprep.subr.mxu0 0.0
    %2235 = vmatpush1.msra.mxu0 0.0
    %2236 = vmatprep.subr.mxu0 0.0
    %2237 = vmatpush1.msra.mxu0 0.0
    %2238 = vmatprep.subr.mxu0 0.0
    %2239 = vmatpush1.msra.mxu0 0.0
    %2240 = vmatprep.subr.mxu0 0.0
    %2241 = vmatpush1.msra.mxu0 0.0
    %2242 = vmatprep.subr.mxu0 0.0
    %2243 = vmatpush1.msra.mxu0 %v247
    %2244 = vmatprep.subr.mxu0 0.0
    %2245 = vmatpush1.msra.mxu0 %v246
    %2246 = vmatprep.subr.mxu0 0.0
    %2247 = vmatpush1.msra.mxu0 %v245
    %2248 = vmatprep.subr.mxu0 0.0
    %2249 = vmatpush1.msra.mxu0 %v244
    %2250 = vmatprep.subr.mxu0 0.0
    %2251 = vmatpush2.msra.mxu0 0.0
    %2252 = vmatprep.subr.mxu0 0.0
    %2253 = vmatpush2.msra.mxu0 0.0
    %2254 = vmatprep.subr.mxu0 0.0
    %2255 = vmatpush2.msra.mxu0 0.0
    %2256 = vmatprep.subr.mxu0 0.0
    %2257 = vmatpush2.msra.mxu0 0.0
    %2258 = vmatprep.subr.mxu0 0.0
    %2259 = vmatpush2.msra.mxu0 0.0
    %2260 = vmatprep.subr.mxu0 0.0
    %2261 = vmatpush2.msra.mxu0 0.0
    %2262 = vmatprep.subr.mxu0 0.0
    %2263 = vmatpush2.msra.mxu0 0.0
    %2264 = vmatprep.subr.mxu0 0.0
    %2265 = vmatpush2.msra.mxu0 0.0
    %2266 = vmatprep.subr.mxu0 0.0
    %2267 = vmatpush2.msra.mxu0 0.0
    %2268 = vmatprep.subr.mxu0 0.0
    %2269 = vmatpush2.msra.mxu0 0.0
    %2270 = vmatprep.subr.mxu0 0.0
    %2271 = vmatpush2.msra.mxu0 0.0
    %2272 = vmatprep.subr.mxu0 0.0
    %2273 = vmatpush2.msra.mxu0 0.0
    %2274 = vmatprep.subr.mxu0 0.0
    %2275 = vmatpush2.msra.mxu0 0.0
    %2276 = vmatprep.subr.mxu0 0.0
    %2277 = vmatpush2.msra.mxu0 0.0
    %2278 = vmatprep.subr.mxu0 0.0
    %2279 = vmatpush2.msra.mxu0 0.0
    %2280 = vmatprep.subr.mxu0 0.0
    %2281 = vmatpush2.msra.mxu0 0.0
    %2282 = vmatprep.mubr.f32.mxu0 0.0
    %2283 = vmatmul.mubr.f32.gmra.mxu0 %v2216
    %v2284 = vpop.f32.mrf.mxu0
    %v2285 = vadd.f32 %v485, %v2284
    %v2286 = vpop.f32.mrf.mxu0
    %2287 = vdwg.mxu0
    %2288 = vmatprep.subr.mxu0 0.0
    %2289 = vmatpush1.msra.mxu0 0.0
    %2290 = vmatprep.subr.mxu0 0.0
    %2291 = vmatpush1.msra.mxu0 0.0
    %2292 = vmatprep.subr.mxu0 0.0
    %2293 = vmatpush1.msra.mxu0 0.0
    %2294 = vmatprep.subr.mxu0 0.0
    %2295 = vmatpush1.msra.mxu0 0.0
    %2296 = vmatprep.subr.mxu0 0.0
    %2297 = vmatpush1.msra.mxu0 0.0
    %2298 = vmatprep.subr.mxu0 0.0
    %2299 = vmatpush1.msra.mxu0 0.0
    %2300 = vmatprep.subr.mxu0 0.0
    %2301 = vmatpush1.msra.mxu0 0.0
    %2302 = vmatprep.subr.mxu0 0.0
    %2303 = vmatpush1.msra.mxu0 0.0
    %2304 = vmatprep.subr.mxu0 0.0
    %2305 = vmatpush1.msra.mxu0 0.0
    %2306 = vmatprep.subr.mxu0 0.0
    %2307 = vmatpush1.msra.mxu0 0.0
    %2308 = vmatprep.subr.mxu0 0.0
    %2309 = vmatpush1.msra.mxu0 0.0
    %2310 = vmatprep.subr.mxu0 0.0
    %2311 = vmatpush1.msra.mxu0 0.0
    %2312 = vmatprep.subr.mxu0 0.0
    %2313 = vmatpush1.msra.mxu0 %v252
    %2314 = vmatprep.subr.mxu0 0.0
    %2315 = vmatpush1.msra.mxu0 %v251
    %2316 = vmatprep.subr.mxu0 0.0
    %2317 = vmatpush1.msra.mxu0 %v250
    %2318 = vmatprep.subr.mxu0 0.0
    %2319 = vmatpush1.msra.mxu0 %v249
    %2320 = vmatprep.subr.mxu0 0.0
    %2321 = vmatpush2.msra.mxu0 0.0
    %2322 = vmatprep.subr.mxu0 0.0
    %2323 = vmatpush2.msra.mxu0 0.0
    %2324 = vmatprep.subr.mxu0 0.0
    %2325 = vmatpush2.msra.mxu0 0.0
    %2326 = vmatprep.subr.mxu0 0.0
    %2327 = vmatpush2.msra.mxu0 0.0
    %2328 = vmatprep.subr.mxu0 0.0
    %2329 = vmatpush2.msra.mxu0 0.0
    %2330 = vmatprep.subr.mxu0 0.0
    %2331 = vmatpush2.msra.mxu0 0.0
    %2332 = vmatprep.subr.mxu0 0.0
    %2333 = vmatpush2.msra.mxu0 0.0
    %2334 = vmatprep.subr.mxu0 0.0
    %2335 = vmatpush2.msra.mxu0 0.0
    %2336 = vmatprep.subr.mxu0 0.0
    %2337 = vmatpush2.msra.mxu0 0.0
    %2338 = vmatprep.subr.mxu0 0.0
    %2339 = vmatpush2.msra.mxu0 0.0
    %2340 = vmatprep.subr.mxu0 0.0
    %2341 = vmatpush2.msra.mxu0 0.0
    %2342 = vmatprep.subr.mxu0 0.0
    %2343 = vmatpush2.msra.mxu0 0.0
    %2344 = vmatprep.subr.mxu0 0.0
    %2345 = vmatpush2.msra.mxu0 0.0
    %2346 = vmatprep.subr.mxu0 0.0
    %2347 = vmatpush2.msra.mxu0 0.0
    %2348 = vmatprep.subr.mxu0 0.0
    %2349 = vmatpush2.msra.mxu0 0.0
    %2350 = vmatprep.subr.mxu0 0.0
    %2351 = vmatpush2.msra.mxu0 0.0
    %2352 = vmatprep.mubr.f32.mxu0 0.0
    %2353 = vmatmul.mubr.f32.gmra.mxu0 %v2216
    %v2354 = vpop.f32.mrf.mxu0
    %v2355 = vadd.f32 %v560, %v2354
    %v2356 = vpop.f32.mrf.mxu0
    %2357 = vdwg.mxu0
    %2358 = vmatprep.subr.mxu0 0.0
    %2359 = vmatpush1.msra.mxu0 0.0
    %2360 = vmatprep.subr.mxu0 0.0
    %2361 = vmatpush1.msra.mxu0 0.0
    %2362 = vmatprep.subr.mxu0 0.0
    %2363 = vmatpush1.msra.mxu0 0.0
    %2364 = vmatprep.subr.mxu0 0.0
    %2365 = vmatpush1.msra.mxu0 0.0
    %2366 = vmatprep.subr.mxu0 0.0
    %2367 = vmatpush1.msra.mxu0 0.0
    %2368 = vmatprep.subr.mxu0 0.0
    %2369 = vmatpush1.msra.mxu0 0.0
    %2370 = vmatprep.subr.mxu0 0.0
    %2371 = vmatpush1.msra.mxu0 0.0
    %2372 = vmatprep.subr.mxu0 0.0
    %2373 = vmatpush1.msra.mxu0 0.0
    %2374 = vmatprep.subr.mxu0 0.0
    %2375 = vmatpush1.msra.mxu0 0.0
    %2376 = vmatprep.subr.mxu0 0.0
    %2377 = vmatpush1.msra.mxu0 0.0
    %2378 = vmatprep.subr.mxu0 0.0
    %2379 = vmatpush1.msra.mxu0 0.0
    %2380 = vmatprep.subr.mxu0 0.0
    %2381 = vmatpush1.msra.mxu0 0.0
    %2382 = vmatprep.subr.mxu0 0.0
    %2383 = vmatpush1.msra.mxu0 %v257
    %2384 = vmatprep.subr.mxu0 0.0
    %2385 = vmatpush1.msra.mxu0 %v256
    %2386 = vmatprep.subr.mxu0 0.0
    %2387 = vmatpush1.msra.mxu0 %v255
    %2388 = vmatprep.subr.mxu0 0.0
    %2389 = vmatpush1.msra.mxu0 %v254
    %2390 = vmatprep.subr.mxu0 0.0
    %2391 = vmatpush2.msra.mxu0 0.0
    %2392 = vmatprep.subr.mxu0 0.0
    %2393 = vmatpush2.msra.mxu0 0.0
    %2394 = vmatprep.subr.mxu0 0.0
    %2395 = vmatpush2.msra.mxu0 0.0
    %2396 = vmatprep.subr.mxu0 0.0
    %2397 = vmatpush2.msra.mxu0 0.0
    %2398 = vmatprep.subr.mxu0 0.0
    %2399 = vmatpush2.msra.mxu0 0.0
    %2400 = vmatprep.subr.mxu0 0.0
    %2401 = vmatpush2.msra.mxu0 0.0
    %2402 = vmatprep.subr.mxu0 0.0
    %2403 = vmatpush2.msra.mxu0 0.0
    %2404 = vmatprep.subr.mxu0 0.0
    %2405 = vmatpush2.msra.mxu0 0.0
    %2406 = vmatprep.subr.mxu0 0.0
    %2407 = vmatpush2.msra.mxu0 0.0
    %2408 = vmatprep.subr.mxu0 0.0
    %2409 = vmatpush2.msra.mxu0 0.0
    %2410 = vmatprep.subr.mxu0 0.0
    %2411 = vmatpush2.msra.mxu0 0.0
    %2412 = vmatprep.subr.mxu0 0.0
    %2413 = vmatpush2.msra.mxu0 0.0
    %2414 = vmatprep.subr.mxu0 0.0
    %2415 = vmatpush2.msra.mxu0 0.0
    %2416 = vmatprep.subr.mxu0 0.0
    %2417 = vmatpush2.msra.mxu0 0.0
    %2418 = vmatprep.subr.mxu0 0.0
    %2419 = vmatpush2.msra.mxu0 0.0
    %2420 = vmatprep.subr.mxu0 0.0
    %2421 = vmatpush2.msra.mxu0 0.0
    %2422 = vmatprep.mubr.f32.mxu0 0.0
    %2423 = vmatmul.mubr.f32.gmra.mxu0 %v2216
    %v2424 = vpop.f32.mrf.mxu0
    %v2425 = vadd.f32 %v632, %v2424
    %v2426 = vpop.f32.mrf.mxu0
    %2427 = vdwg.mxu0
    %v2429 = vrot.slane %v2285, 1
    %v2431 = vadd.f32 %v333, %v2429
    %v2432 = vxor.u32 %v2431, 2147483648
    %v2433 = vmul.f32 %v2432, 1.442695
    %v2434 = vpow.pop %v2433
    %v2435 = vadd.f32 %v2434, 1.0
    %v2436 = vrcp.pop %v2435
    %v2437 = vmul.f32 1.0, %v2436
    %v2439 = vrot.slane %v2355, 1
    %v2441 = vadd.f32 %v407, %v2439
    %v2442 = vxor.u32 %v2441, 2147483648
    %v2443 = vmul.f32 %v2442, 1.442695
    %v2444 = vpow.pop %v2443
    %v2445 = vadd.f32 %v2444, 1.0
    %v2446 = vrcp.pop %v2445
    %v2447 = vmul.f32 1.0, %v2446
    %v2449 = vrot.slane %v2425, 1
    %v2451 = vmul.f32 %v2437, %v2449
    %v2452 = vadd.f32 %v481, %v2451
    %v2453 = vtanh.pop %v2452
    %v2454 = vsub.f32 1.0, %v2447
    %v2455 = vmul.f32 %v2454, %v2453
    %v2456 = vrot.slane %v2211, 7
    %v2458 = vmul.f32 %v2447, %v2456
    %v2459 = vadd.f32 %v2455, %v2458
    %vm2460 = vcmask 261127
    %2461 = vst.msk [vmem:[#allocation2] sm:$0x80] %vm2460, %v2459
    %v2462 = vld [vmem:[#allocation2] sm:$0xff]
    %v2463 = vld [vmem:[%s7] sm:$0xff]
    %v2464 = vld [vmem:[%s7 + $0x8] sm:$0xff]
    %v2465 = vld [vmem:[%s7 + $0x10] sm:$0xff]
    %v2466 = vld [vmem:[%s7 + $0x18] sm:$0xff]
    %v2467 = vld [vmem:[%s8] sm:$0x1]
    %v2469 = vlaneseq
    %v2470 = vshrl.u32 %v2469, 7
    %v2471 = vsub.s32 0, %v2470
    %v2472 = vrot.slane %v2467, %v2471
    %v2475 = vsel %vm65, %v2462, 0
    %2477 = vmatprep.subr.mxu0 0.0
    %2478 = vmatpush1.msra.mxu0 0.0
    %2479 = vmatprep.subr.mxu0 0.0
    %2480 = vmatpush1.msra.mxu0 0.0
    %2481 = vmatprep.subr.mxu0 0.0
    %2482 = vmatpush1.msra.mxu0 0.0
    %2483 = vmatprep.subr.mxu0 0.0
    %2484 = vmatpush1.msra.mxu0 0.0
    %2485 = vmatprep.subr.mxu0 0.0
    %2486 = vmatpush1.msra.mxu0 0.0
    %2487 = vmatprep.subr.mxu0 0.0
    %2488 = vmatpush1.msra.mxu0 0.0
    %2489 = vmatprep.subr.mxu0 0.0
    %2490 = vmatpush1.msra.mxu0 0.0
    %2491 = vmatprep.subr.mxu0 0.0
    %2492 = vmatpush1.msra.mxu0 0.0
    %2493 = vmatprep.subr.mxu0 0.0
    %2494 = vmatpush1.msra.mxu0 0.0
    %2495 = vmatprep.subr.mxu0 0.0
    %2496 = vmatpush1.msra.mxu0 0.0
    %2497 = vmatprep.subr.mxu0 0.0
    %2498 = vmatpush1.msra.mxu0 0.0
    %2499 = vmatprep.subr.mxu0 0.0
    %2500 = vmatpush1.msra.mxu0 0.0
    %2501 = vmatprep.subr.mxu0 0.0
    %2502 = vmatpush1.msra.mxu0 %v2466
    %2503 = vmatprep.subr.mxu0 0.0
    %2504 = vmatpush1.msra.mxu0 %v2465
    %2505 = vmatprep.subr.mxu0 0.0
    %2506 = vmatpush1.msra.mxu0 %v2464
    %2507 = vmatprep.subr.mxu0 0.0
    %2508 = vmatpush1.msra.mxu0 %v2463
    %2509 = vmatprep.subr.mxu0 0.0
    %2510 = vmatpush2.msra.mxu0 0.0
    %2511 = vmatprep.subr.mxu0 0.0
    %2512 = vmatpush2.msra.mxu0 0.0
    %2513 = vmatprep.subr.mxu0 0.0
    %2514 = vmatpush2.msra.mxu0 0.0
    %2515 = vmatprep.subr.mxu0 0.0
    %2516 = vmatpush2.msra.mxu0 0.0
    %2517 = vmatprep.subr.mxu0 0.0
    %2518 = vmatpush2.msra.mxu0 0.0
    %2519 = vmatprep.subr.mxu0 0.0
    %2520 = vmatpush2.msra.mxu0 0.0
    %2521 = vmatprep.subr.mxu0 0.0
    %2522 = vmatpush2.msra.mxu0 0.0
    %2523 = vmatprep.subr.mxu0 0.0
    %2524 = vmatpush2.msra.mxu0 0.0
    %2525 = vmatprep.subr.mxu0 0.0
    %2526 = vmatpush2.msra.mxu0 0.0
    %2527 = vmatprep.subr.mxu0 0.0
    %2528 = vmatpush2.msra.mxu0 0.0
    %2529 = vmatprep.subr.mxu0 0.0
    %2530 = vmatpush2.msra.mxu0 0.0
    %2531 = vmatprep.subr.mxu0 0.0
    %2532 = vmatpush2.msra.mxu0 0.0
    %2533 = vmatprep.subr.mxu0 0.0
    %2534 = vmatpush2.msra.mxu0 0.0
    %2535 = vmatprep.subr.mxu0 0.0
    %2536 = vmatpush2.msra.mxu0 0.0
    %2537 = vmatprep.subr.mxu0 0.0
    %2538 = vmatpush2.msra.mxu0 0.0
    %2539 = vmatprep.subr.mxu0 0.0
    %2540 = vmatpush2.msra.mxu0 0.0
    %2541 = vmatprep.mubr.f32.mxu0 0.0
    %2542 = vmatmul.mubr.f32.gmra.mxu0 %v2475
    %v2543 = vpop.f32.mrf.mxu0
    %v2544 = vadd.f32 %v2472, %v2543
    %v2545 = vpop.f32.mrf.mxu0
    %2546 = vdwg.mxu0
    %2547 = vmax.xlane.f32.xlu0 %v2544
    %v2548 = vpop.xlane.xlu0 %2547
    %v2549 = vsub.f32 %v2544, %v2548
    %v2550 = vmul.f32 %v2549, 1.442695
    %v2551 = vpow.pop %v2550
    %2552 = vadd.xlane.f32.xlu0 %v2551
    %v2553 = vpop.xlane.xlu0 %2552
    %v2554 = vlog2.pop %v2553
    %v2555 = vmul.f32 %v2554, 0.6931472
    %v2556 = vsub.f32 %v2549, %v2555
    %2557 = vst [vmem:[#allocation6] sm:$0xff] %v2556
    %2558 = vst.msk [vmem:[#allocation7 - $0x7] sm:$0x80] %vm2460, %v2459
    // Predicated region
    $region42: #{tpu_custom_call.1} parent=1 // pred_check
      _
    $region43: #{tpu_custom_call.1} parent=1 // pred_check_branch
      %2560 = sbr.rel (0) target = $region45
    $region44: #{tpu_custom_call.1} parent=1 // pred_region
      %s2562 = ssub.s32 128, 128
      %2563 = vsyncadd [#allocation5], %s2562
      %s2565 = sshll.u32 [#allocation6], 4
      %s2566 = int_to_ptr.vmem [resolvable:$true] %s2565
      %2568 = dma.vmem_to_hbm [thread:$0]  %s2566, 128, %s9, [#allocation5]
    $region45: #{tpu_custom_call.1} parent=1 // pred_fallthru
      _
    // Predicated region
    $region46: #{tpu_custom_call.1} parent=1 // pred_check
      _
    $region47: #{tpu_custom_call.1} parent=1 // pred_check_branch
      %2570 = sbr.rel (0) target = $region49
    $region48: #{tpu_custom_call.1} parent=1 // pred_region
      %s2572 = ssub.s32 16, 16
      %2573 = vsyncadd [#allocation8], %s2572
      %s2575 = sshll.u32 [#allocation7], 4
      %s2576 = int_to_ptr.vmem [resolvable:$true] %s2575
      %2578 = dma.vmem_to_hbm [thread:$0]  %s2576, 16, %s10, [#allocation8]
    $region49: #{tpu_custom_call.1} parent=1 // pred_fallthru
      _
    // Predicated region
    $region50: #{tpu_custom_call.1} parent=1 // pred_check
      _
    $region51: #{tpu_custom_call.1} parent=1 // pred_check_branch
      %2580 = sbr.rel (0) target = $region53
    $region52: #{tpu_custom_call.1} parent=1 // pred_region
      %2581 = dma.done [#allocation5], 128
    $region53: #{tpu_custom_call.1} parent=1 // pred_fallthru
      _
    // Predicated region
    $region54: #{tpu_custom_call.1} parent=1 // pred_check
      _
    $region55: #{tpu_custom_call.1} parent=1 // pred_check_branch
      %2583 = sbr.rel (0) target = $region57
    $region56: #{tpu_custom_call.1} parent=1 // pred_region
      %2584 = dma.done [#allocation8], 16
    $region57: #{tpu_custom_call.1} parent=1 // pred_fallthru
      _
    %2585 = vsyncpa [#allocation4], 1
    %2586 = vsyncpa [#allocation5], 1
    %2587 = vsyncpa [#allocation8], 1

</llo_original>
